<compile_context>
chip_gen: v7x
topology: tpu7x:2x2x1
jax: 0.10.0
libtpu: 0.0.40
codegen_flags: <defaults>
</compile_context>

<pallas_src>
import jax
import jax.numpy as jnp
from jax.experimental import pallas as pl
from jax.experimental.pallas import tpu as pltpu

_VMEM = pltpu.MemorySpace.VMEM


# ----------------------------- Pallas kernels -----------------------------

def _conv_relu_pool_kernel(x_ref, w_ref, b_ref, o_ref):
    """Fused im2col-conv matmul + bias + ReLU + 2x2/2 max-pool.

    x_ref: (4, M, K)  pool-tap-major im2col (tap t = (di, dj) of the 2x2 window)
    w_ref: (K, C)     conv weights in matmul layout
    b_ref: (1, C)
    o_ref: (M, C)     pooled, ReLU'd output; rows in (n, oh, ow) raster order
    """
    w = w_ref[...]

    def tap(t):
        return jnp.dot(x_ref[t], w, preferred_element_type=jnp.float32)

    m = jnp.maximum(jnp.maximum(tap(0), tap(1)), jnp.maximum(tap(2), tap(3)))
    # Bias is tap-independent and ReLU is monotone, so bias/ReLU after the max
    # is identical to PyTorch's maxpool(relu(conv + bias)).
    o_ref[...] = jnp.maximum(m + b_ref[...], 0.0).astype(o_ref.dtype)


def _fc_stack_kernel(x_ref, w1_ref, b1_ref, w2_ref, b2_ref, w3_ref, b3_ref,
                     o_ref):
    """fc1+ReLU -> fc2+ReLU -> fc3 -> softmax, all on VMEM-resident data."""
    h = jnp.dot(x_ref[...], w1_ref[...], preferred_element_type=jnp.float32)
    h = jnp.maximum(h + b1_ref[...], 0.0)
    h = jnp.dot(h, w2_ref[...], preferred_element_type=jnp.float32)
    h = jnp.maximum(h + b2_ref[...], 0.0)
    z = jnp.dot(h, w3_ref[...], preferred_element_type=jnp.float32) + b3_ref[...]
    z = z - jnp.max(z, axis=-1, keepdims=True)
    e = jnp.exp(z)
    inv = pl.reciprocal(jnp.sum(e, axis=-1, keepdims=True), approx=True)
    o_ref[...] = (e * inv).astype(o_ref.dtype)


def conv_relu_pool(x_taps, w, b):
    _, M, K = x_taps.shape
    K2, C = w.shape
    assert K == K2
    return pl.pallas_call(
        _conv_relu_pool_kernel,
        out_shape=jax.ShapeDtypeStruct((M, C), jnp.float32),
        in_specs=[pl.BlockSpec(memory_space=_VMEM)] * 3,
        out_specs=pl.BlockSpec(memory_space=_VMEM),
    )(x_taps, w, b)


def fc_stack(x, w1, b1, w2, b2, w3, b3):
    M = x.shape[0]
    n_out = w3.shape[1]
    return pl.pallas_call(
        _fc_stack_kernel,
        out_shape=jax.ShapeDtypeStruct((M, n_out), jnp.float32),
        in_specs=[pl.BlockSpec(memory_space=_VMEM)] * 7,
        out_specs=pl.BlockSpec(memory_space=_VMEM),
    )(x, w1, b1, w2, b2, w3, b3)


# ------------------------------ XLA glue ops ------------------------------

def pool_tap_im2col(x, k):
    """x: (N, H, W, C) NHWC.  Returns (taps, (N, Hp, Wp)) with
    taps[t, n*Hp*Wp + oh*Wp + ow, (kh*k + kw)*C + c] =
        x[n, 2*oh + di + kh, 2*ow + dj + kw, c],  t = di*2 + dj.
    I.e. the im2col matrix of a valid kxk / stride-1 conv, pre-split into the
    4 taps of the subsequent 2x2 / stride-2 max-pool (pool fused in-kernel)."""
    N, H, W, C = x.shape
    Ho, Wo = H - k + 1, W - k + 1
    Hp, Wp = Ho // 2, Wo // 2
    cols = [x[:, i:i + Ho, j:j + Wo, :] for i in range(k) for j in range(k)]
    p = jnp.concatenate(cols, axis=-1)                      # (N, Ho, Wo, k*k*C)
    taps = jnp.stack([p[:, 0::2, 0::2, :], p[:, 0::2, 1::2, :],
                      p[:, 1::2, 0::2, :], p[:, 1::2, 1::2, :]], axis=0)
    return taps.reshape(4, N * Hp * Wp, k * k * C), (N, Hp, Wp)


# ----------------------------- Net definition -----------------------------

def init_params(key):
    # Deterministic synthetic init, PyTorch-default-style U(-1/sqrt(fan_in), +)
    ks = jax.random.split(key, 10)

    def init(k, shape, fan_in):
        bound = 1.0 / (fan_in ** 0.5)
        return jax.random.uniform(k, shape, jnp.float32, -bound, bound)

    return {
        "conv1_w": init(ks[0], (6, 1, 5, 5), 1 * 5 * 5),
        "conv1_b": init(ks[1], (6,), 1 * 5 * 5),
        "conv2_w": init(ks[2], (16, 6, 5, 5), 6 * 5 * 5),
        "conv2_b": init(ks[3], (16,), 6 * 5 * 5),
        "fc1_w": init(ks[4], (120, 400), 400),
        "fc1_b": init(ks[5], (120,), 400),
        "fc2_w": init(ks[6], (84, 120), 120),
        "fc2_b": init(ks[7], (84,), 120),
        "fc3_w": init(ks[8], (10, 84), 84),
        "fc3_b": init(ks[9], (10,), 84),
    }


def prepare_params(p):
    """One-time conversion of PyTorch-layout params to kernel matmul layouts."""
    # conv weights (Cout, Cin, kh, kw) -> (kh*kw*Cin, Cout); patch order (kh, kw, cin)
    c1 = jnp.transpose(p["conv1_w"], (2, 3, 1, 0)).reshape(25, 6)
    c2 = jnp.transpose(p["conv2_w"], (2, 3, 1, 0)).reshape(150, 16)
    # fc1: PyTorch input columns are (c, h, w); our flatten is (h, w, c) ->
    # permute the columns once here so no transpose/permutation runs per forward.
    f1 = jnp.transpose(p["fc1_w"].reshape(120, 16, 5, 5), (2, 3, 1, 0)).reshape(400, 120)
    f2 = jnp.transpose(p["fc2_w"], (1, 0))
    f3 = jnp.transpose(p["fc3_w"], (1, 0))
    return {
        "conv1_w": c1, "conv1_b": p["conv1_b"].reshape(1, 6),
        "conv2_w": c2, "conv2_b": p["conv2_b"].reshape(1, 16),
        "fc1_w": f1, "fc1_b": p["fc1_b"].reshape(1, 120),
        "fc2_w": f2, "fc2_b": p["fc2_b"].reshape(1, 84),
        "fc3_w": f3, "fc3_b": p["fc3_b"].reshape(1, 10),
    }


@jax.jit
def net_forward(kp, x_nchw):
    # x_nchw: (N, 1, 32, 32) float32 (PyTorch NCHW convention)
    x = jnp.transpose(x_nchw, (0, 2, 3, 1))                    # NHWC (N,32,32,1)
    x1, (N, hp1, wp1) = pool_tap_im2col(x, 5)                  # (4, N*196, 25)
    h1 = conv_relu_pool(x1, kp["conv1_w"], kp["conv1_b"])      # (N*196, 6)
    h1 = h1.reshape(N, hp1, wp1, 6)                            # (N,14,14,6)
    x2, (_, hp2, wp2) = pool_tap_im2col(h1, 5)                 # (4, N*25, 150)
    h2 = conv_relu_pool(x2, kp["conv2_w"], kp["conv2_b"])      # (N*25, 16)
    # Flatten: rows are (n, oh, ow) raster, channels last -> (N, 400) in
    # (h, w, c) order; fc1_w columns were pre-permuted to match PyTorch's
    # x.view(N, -1) over NCHW, so this reshape is a free view.
    h2 = h2.reshape(N, hp2 * wp2 * 16)                         # (N, 400)
    return fc_stack(h2, kp["fc1_w"], kp["fc1_b"],
                    kp["fc2_w"], kp["fc2_b"],
                    kp["fc3_w"], kp["fc3_b"])                  # (N, 10)


if __name__ == "__main__":
    key = jax.random.PRNGKey(0)
    pkey, xkey = jax.random.split(key)
    params = init_params(pkey)
    kparams = prepare_params(params)   # once, outside the jitted forward
    # LeNet geometry requires 32x32 single-channel inputs (16*5*5 fc1 fan-in).
    x = jax.random.normal(xkey, (2, 1, 32, 32), jnp.float32)
    out = net_forward(kparams, x)
    out = jax.block_until_ready(out)
    assert out.shape == (2, 10)
    assert bool(jnp.all(jnp.isfinite(out)))
    # softmax rows sum to ~1 (tolerance relaxed for the approx EUP reciprocal)
    assert bool(jnp.all(jnp.abs(jnp.sum(out, axis=1) - 1.0) < 1e-2))
    print("KERNEL_OK")
</pallas_src>

<mosaic_0001>
module attributes {stable_mosaic.version = 11 : i64} {
  func.func @_conv_relu_pool_kernel(%arg0: memref<4x392x25xf32, #tpu.memory_space<vmem>>, %arg1: memref<25x6xf32, #tpu.memory_space<vmem>>, %arg2: memref<1x6xf32, #tpu.memory_space<vmem>>, %arg3: memref<392x6xf32, #tpu.memory_space<vmem>>) attributes {dimension_semantics = [], scalar_prefetch = 0 : i64, scratch_operands = 0 : i64, tpu.core_type = #tpu.core_type<tc>} {
    %c0 = arith.constant 0 : index
    %c0_0 = arith.constant 0 : index
    %0 = vector.load %arg1[%c0, %c0_0] : memref<25x6xf32, #tpu.memory_space<vmem>>, vector<25x6xf32>
    %c0_1 = arith.constant 0 : index
    %c0_2 = arith.constant 0 : index
    %c0_3 = arith.constant 0 : index
    %1 = vector.load %arg0[%c0_1, %c0_2, %c0_3] : memref<4x392x25xf32, #tpu.memory_space<vmem>>, vector<1x392x25xf32>
    %2 = vector.shape_cast %1 : vector<1x392x25xf32> to vector<392x25xf32>
    %cst = arith.constant dense<0.000000e+00> : vector<392x6xf32>
    %3 = tpu.matmul %2, %0, %cst {dimension_numbers = #tpu.dot_dimension_numbers<[1], [0], [0], [1], [0, 0, 1, 1], [], []>} : vector<392x25xf32>, vector<25x6xf32>, vector<392x6xf32> -> vector<392x6xf32>
    %c1 = arith.constant 1 : index
    %c0_4 = arith.constant 0 : index
    %c0_5 = arith.constant 0 : index
    %4 = vector.load %arg0[%c1, %c0_4, %c0_5] : memref<4x392x25xf32, #tpu.memory_space<vmem>>, vector<1x392x25xf32>
    %5 = vector.shape_cast %4 : vector<1x392x25xf32> to vector<392x25xf32>
    %cst_6 = arith.constant dense<0.000000e+00> : vector<392x6xf32>
    %6 = tpu.matmul %5, %0, %cst_6 {dimension_numbers = #tpu.dot_dimension_numbers<[1], [0], [0], [1], [0, 0, 1, 1], [], []>} : vector<392x25xf32>, vector<25x6xf32>, vector<392x6xf32> -> vector<392x6xf32>
    %7 = arith.maximumf %3, %6 : vector<392x6xf32>
    %c2 = arith.constant 2 : index
    %c0_7 = arith.constant 0 : index
    %c0_8 = arith.constant 0 : index
    %8 = vector.load %arg0[%c2, %c0_7, %c0_8] : memref<4x392x25xf32, #tpu.memory_space<vmem>>, vector<1x392x25xf32>
    %9 = vector.shape_cast %8 : vector<1x392x25xf32> to vector<392x25xf32>
    %cst_9 = arith.constant dense<0.000000e+00> : vector<392x6xf32>
    %10 = tpu.matmul %9, %0, %cst_9 {dimension_numbers = #tpu.dot_dimension_numbers<[1], [0], [0], [1], [0, 0, 1, 1], [], []>} : vector<392x25xf32>, vector<25x6xf32>, vector<392x6xf32> -> vector<392x6xf32>
    %c3 = arith.constant 3 : index
    %c0_10 = arith.constant 0 : index
    %c0_11 = arith.constant 0 : index
    %11 = vector.load %arg0[%c3, %c0_10, %c0_11] : memref<4x392x25xf32, #tpu.memory_space<vmem>>, vector<1x392x25xf32>
    %12 = vector.shape_cast %11 : vector<1x392x25xf32> to vector<392x25xf32>
    %cst_12 = arith.constant dense<0.000000e+00> : vector<392x6xf32>
    %13 = tpu.matmul %12, %0, %cst_12 {dimension_numbers = #tpu.dot_dimension_numbers<[1], [0], [0], [1], [0, 0, 1, 1], [], []>} : vector<392x25xf32>, vector<25x6xf32>, vector<392x6xf32> -> vector<392x6xf32>
    %14 = arith.maximumf %10, %13 : vector<392x6xf32>
    %15 = arith.maximumf %7, %14 : vector<392x6xf32>
    %c0_13 = arith.constant 0 : index
    %c0_14 = arith.constant 0 : index
    %16 = vector.load %arg2[%c0_13, %c0_14] : memref<1x6xf32, #tpu.memory_space<vmem>>, vector<1x6xf32>
    %17 = vector.broadcast %16 : vector<1x6xf32> to vector<392x6xf32>
    %18 = arith.addf %15, %17 : vector<392x6xf32>
    %cst_15 = arith.constant 0.000000e+00 : f32
    %19 = vector.broadcast %cst_15 : f32 to vector<392x6xf32>
    %20 = arith.maximumf %18, %19 : vector<392x6xf32>
    %c0_16 = arith.constant 0 : index
    %c0_17 = arith.constant 0 : index
    %21 = vector.load %arg3[%c0_16, %c0_17] : memref<392x6xf32, #tpu.memory_space<vmem>>, vector<392x6xf32>
    tpu.vector_store %arg3[%c0_16, %c0_17], %20 {strides = array<i32>} : memref<392x6xf32, #tpu.memory_space<vmem>>, vector<392x6xf32>,
    return
  }
}

module attributes {stable_mosaic.version = 11 : i64} {
  func.func @_conv_relu_pool_kernel(%arg0: memref<4x50x150xf32, #tpu.memory_space<vmem>>, %arg1: memref<150x16xf32, #tpu.memory_space<vmem>>, %arg2: memref<1x16xf32, #tpu.memory_space<vmem>>, %arg3: memref<50x16xf32, #tpu.memory_space<vmem>>) attributes {dimension_semantics = [], scalar_prefetch = 0 : i64, scratch_operands = 0 : i64, tpu.core_type = #tpu.core_type<tc>} {
    %c0 = arith.constant 0 : index
    %c0_0 = arith.constant 0 : index
    %0 = vector.load %arg1[%c0, %c0_0] : memref<150x16xf32, #tpu.memory_space<vmem>>, vector<150x16xf32>
    %c0_1 = arith.constant 0 : index
    %c0_2 = arith.constant 0 : index
    %c0_3 = arith.constant 0 : index
    %1 = vector.load %arg0[%c0_1, %c0_2, %c0_3] : memref<4x50x150xf32, #tpu.memory_space<vmem>>, vector<1x50x150xf32>
    %2 = vector.shape_cast %1 : vector<1x50x150xf32> to vector<50x150xf32>
    %cst = arith.constant dense<0.000000e+00> : vector<50x16xf32>
    %3 = tpu.matmul %2, %0, %cst {dimension_numbers = #tpu.dot_dimension_numbers<[1], [0], [0], [1], [0, 0, 1, 1], [], []>} : vector<50x150xf32>, vector<150x16xf32>, vector<50x16xf32> -> vector<50x16xf32>
    %c1 = arith.constant 1 : index
    %c0_4 = arith.constant 0 : index
    %c0_5 = arith.constant 0 : index
    %4 = vector.load %arg0[%c1, %c0_4, %c0_5] : memref<4x50x150xf32, #tpu.memory_space<vmem>>, vector<1x50x150xf32>
    %5 = vector.shape_cast %4 : vector<1x50x150xf32> to vector<50x150xf32>
    %cst_6 = arith.constant dense<0.000000e+00> : vector<50x16xf32>
    %6 = tpu.matmul %5, %0, %cst_6 {dimension_numbers = #tpu.dot_dimension_numbers<[1], [0], [0], [1], [0, 0, 1, 1], [], []>} : vector<50x150xf32>, vector<150x16xf32>, vector<50x16xf32> -> vector<50x16xf32>
    %7 = arith.maximumf %3, %6 : vector<50x16xf32>
    %c2 = arith.constant 2 : index
    %c0_7 = arith.constant 0 : index
    %c0_8 = arith.constant 0 : index
    %8 = vector.load %arg0[%c2, %c0_7, %c0_8] : memref<4x50x150xf32, #tpu.memory_space<vmem>>, vector<1x50x150xf32>
    %9 = vector.shape_cast %8 : vector<1x50x150xf32> to vector<50x150xf32>
    %cst_9 = arith.constant dense<0.000000e+00> : vector<50x16xf32>
    %10 = tpu.matmul %9, %0, %cst_9 {dimension_numbers = #tpu.dot_dimension_numbers<[1], [0], [0], [1], [0, 0, 1, 1], [], []>} : vector<50x150xf32>, vector<150x16xf32>, vector<50x16xf32> -> vector<50x16xf32>
    %c3 = arith.constant 3 : index
    %c0_10 = arith.constant 0 : index
    %c0_11 = arith.constant 0 : index
    %11 = vector.load %arg0[%c3, %c0_10, %c0_11] : memref<4x50x150xf32, #tpu.memory_space<vmem>>, vector<1x50x150xf32>
    %12 = vector.shape_cast %11 : vector<1x50x150xf32> to vector<50x150xf32>
    %cst_12 = arith.constant dense<0.000000e+00> : vector<50x16xf32>
    %13 = tpu.matmul %12, %0, %cst_12 {dimension_numbers = #tpu.dot_dimension_numbers<[1], [0], [0], [1], [0, 0, 1, 1], [], []>} : vector<50x150xf32>, vector<150x16xf32>, vector<50x16xf32> -> vector<50x16xf32>
    %14 = arith.maximumf %10, %13 : vector<50x16xf32>
    %15 = arith.maximumf %7, %14 : vector<50x16xf32>
    %c0_13 = arith.constant 0 : index
    %c0_14 = arith.constant 0 : index
    %16 = vector.load %arg2[%c0_13, %c0_14] : memref<1x16xf32, #tpu.memory_space<vmem>>, vector<1x16xf32>
    %17 = vector.broadcast %16 : vector<1x16xf32> to vector<50x16xf32>
    %18 = arith.addf %15, %17 : vector<50x16xf32>
    %cst_15 = arith.constant 0.000000e+00 : f32
    %19 = vector.broadcast %cst_15 : f32 to vector<50x16xf32>
    %20 = arith.maximumf %18, %19 : vector<50x16xf32>
    %c0_16 = arith.constant 0 : index
    %c0_17 = arith.constant 0 : index
    %21 = vector.load %arg3[%c0_16, %c0_17] : memref<50x16xf32, #tpu.memory_space<vmem>>, vector<50x16xf32>
    tpu.vector_store %arg3[%c0_16, %c0_17], %20 {strides = array<i32>} : memref<50x16xf32, #tpu.memory_space<vmem>>, vector<50x16xf32>,
    return
  }
}

module attributes {stable_mosaic.version = 11 : i64} {
  func.func @_fc_stack_kernel(%arg0: memref<2x400xf32, #tpu.memory_space<vmem>>, %arg1: memref<400x120xf32, #tpu.memory_space<vmem>>, %arg2: memref<1x120xf32, #tpu.memory_space<vmem>>, %arg3: memref<120x84xf32, #tpu.memory_space<vmem>>, %arg4: memref<1x84xf32, #tpu.memory_space<vmem>>, %arg5: memref<84x10xf32, #tpu.memory_space<vmem>>, %arg6: memref<1x10xf32, #tpu.memory_space<vmem>>, %arg7: memref<2x10xf32, #tpu.memory_space<vmem>>) attributes {dimension_semantics = [], scalar_prefetch = 0 : i64, scratch_operands = 0 : i64, tpu.core_type = #tpu.core_type<tc>} {
    %c0 = arith.constant 0 : index
    %c0_0 = arith.constant 0 : index
    %0 = vector.load %arg0[%c0, %c0_0] : memref<2x400xf32, #tpu.memory_space<vmem>>, vector<2x400xf32>
    %c0_1 = arith.constant 0 : index
    %c0_2 = arith.constant 0 : index
    %1 = vector.load %arg1[%c0_1, %c0_2] : memref<400x120xf32, #tpu.memory_space<vmem>>, vector<400x120xf32>
    %cst = arith.constant dense<0.000000e+00> : vector<2x120xf32>
    %2 = tpu.matmul %0, %1, %cst {dimension_numbers = #tpu.dot_dimension_numbers<[1], [0], [0], [1], [0, 0, 1, 1], [], []>} : vector<2x400xf32>, vector<400x120xf32>, vector<2x120xf32> -> vector<2x120xf32>
    %c0_3 = arith.constant 0 : index
    %c0_4 = arith.constant 0 : index
    %3 = vector.load %arg2[%c0_3, %c0_4] : memref<1x120xf32, #tpu.memory_space<vmem>>, vector<1x120xf32>
    %4 = vector.broadcast %3 : vector<1x120xf32> to vector<2x120xf32>
    %5 = arith.addf %2, %4 : vector<2x120xf32>
    %cst_5 = arith.constant 0.000000e+00 : f32
    %6 = vector.broadcast %cst_5 : f32 to vector<2x120xf32>
    %7 = arith.maximumf %5, %6 : vector<2x120xf32>
    %c0_6 = arith.constant 0 : index
    %c0_7 = arith.constant 0 : index
    %8 = vector.load %arg3[%c0_6, %c0_7] : memref<120x84xf32, #tpu.memory_space<vmem>>, vector<120x84xf32>
    %cst_8 = arith.constant dense<0.000000e+00> : vector<2x84xf32>
    %9 = tpu.matmul %7, %8, %cst_8 {dimension_numbers = #tpu.dot_dimension_numbers<[1], [0], [0], [1], [0, 0, 1, 1], [], []>} : vector<2x120xf32>, vector<120x84xf32>, vector<2x84xf32> -> vector<2x84xf32>
    %c0_9 = arith.constant 0 : index
    %c0_10 = arith.constant 0 : index
    %10 = vector.load %arg4[%c0_9, %c0_10] : memref<1x84xf32, #tpu.memory_space<vmem>>, vector<1x84xf32>
    %11 = vector.broadcast %10 : vector<1x84xf32> to vector<2x84xf32>
    %12 = arith.addf %9, %11 : vector<2x84xf32>
    %cst_11 = arith.constant 0.000000e+00 : f32
    %13 = vector.broadcast %cst_11 : f32 to vector<2x84xf32>
    %14 = arith.maximumf %12, %13 : vector<2x84xf32>
    %c0_12 = arith.constant 0 : index
    %c0_13 = arith.constant 0 : index
    %15 = vector.load %arg5[%c0_12, %c0_13] : memref<84x10xf32, #tpu.memory_space<vmem>>, vector<84x10xf32>
    %cst_14 = arith.constant dense<0.000000e+00> : vector<2x10xf32>
    %16 = tpu.matmul %14, %15, %cst_14 {dimension_numbers = #tpu.dot_dimension_numbers<[1], [0], [0], [1], [0, 0, 1, 1], [], []>} : vector<2x84xf32>, vector<84x10xf32>, vector<2x10xf32> -> vector<2x10xf32>
    %c0_15 = arith.constant 0 : index
    %c0_16 = arith.constant 0 : index
    %17 = vector.load %arg6[%c0_15, %c0_16] : memref<1x10xf32, #tpu.memory_space<vmem>>, vector<1x10xf32>
    %18 = vector.broadcast %17 : vector<1x10xf32> to vector<2x10xf32>
    %19 = arith.addf %16, %18 : vector<2x10xf32>
    %cst_17 = arith.constant dense<0xFF800000> : vector<2xf32>
    %20 = vector.multi_reduction <maximumf>, %19, %cst_17 [1] : vector<2x10xf32> to vector<2xf32>
    %21 = vector.shape_cast %20 : vector<2xf32> to vector<2x1xf32>
    %22 = vector.broadcast %21 : vector<2x1xf32> to vector<2x10xf32>
    %23 = arith.subf %19, %22 : vector<2x10xf32>
    %24 = math.exp %23 : vector<2x10xf32>
    %cst_18 = arith.constant dense<0.000000e+00> : vector<2xf32>
    %25 = vector.multi_reduction <add>, %24, %cst_18 [1] : vector<2x10xf32> to vector<2xf32>
    %26 = vector.shape_cast %25 : vector<2xf32> to vector<2x1xf32>
    %27 = tpu.reciprocal %26 {approx = true} : vector<2x1xf32> -> vector<2x1xf32>
    %28 = vector.broadcast %27 : vector<2x1xf32> to vector<2x10xf32>
    %29 = arith.mulf %24, %28 : vector<2x10xf32>
    %c0_19 = arith.constant 0 : index
    %c0_20 = arith.constant 0 : index
    %30 = vector.load %arg7[%c0_19, %c0_20] : memref<2x10xf32, #tpu.memory_space<vmem>>, vector<2x10xf32>
    tpu.vector_store %arg7[%c0_19, %c0_20], %29 {strides = array<i32>} : memref<2x10xf32, #tpu.memory_space<vmem>>, vector<2x10xf32>,
    return
  }
}

</mosaic_0001>

<llo_original>
// kernel: net_forward.3
$region0: #{net_forward.3}
  #allocation0 [shape = 'u32[]', space=smem, size = 0x4, offset = 0x4, fixed_abs, tag = 'smem constant byte address 0x4 - core index']
  #allocation1 [shape = 'u32[144,128]{1,0:T(1,128)}', space=vmem, size = 0x12000, scoped, tag = 'internal scratch']
  %s0 = inlined_call_operand.vmem [shape: f32[4,392,25], index: 0, kind: input, shape index: {}]
  %s1 = inlined_call_operand.vmem [shape: f32[25,6], index: 1, kind: input, shape index: {}]
  %s2 = inlined_call_operand.vmem [shape: f32[1,6], index: 2, kind: input, shape index: {}]
  %s3 = inlined_call_operand.vmem [shape: f32[392,6], index: 3, kind: output, shape index: {}]
  %s4 = sld [smem:[#allocation0]]
  $region22: #{net_forward.3} parent=0
    _
  %s6 = ssub.s32 1, %s4
  %s7 = scalar_select 0, %s6, %s4
  // Predicated region
  $region2: #{net_forward.3} parent=0 // pred_check
    _
  $region3: #{net_forward.3} parent=0 // pred_check_branch
    %9 = sbr.rel (0) target = $region5
  $region4: #{net_forward.3} parent=0 // pred_region
    _
  $region5: #{net_forward.3} parent=0 // pred_fallthru
    _
  // Predicated region
  $region6: #{net_forward.3} parent=0 // pred_check
    _
  $region7: #{net_forward.3} parent=0 // pred_check_branch
    %11 = sbr.rel (0) target = $region9
  $region8: #{net_forward.3} parent=0 // pred_region
    _
  $region9: #{net_forward.3} parent=0 // pred_fallthru
    _
  // Predicated region
  $region10: #{net_forward.3} parent=0 // pred_check
    _
  $region11: #{net_forward.3} parent=0 // pred_check_branch
    %13 = sbr.rel (0) target = $region13
  $region12: #{net_forward.3} parent=0 // pred_region
    _
  $region13: #{net_forward.3} parent=0 // pred_fallthru
    _
  %v14 = vld [vmem:[%s1] sm:$0xff]
  %v15 = vld [vmem:[%s1 + $0x8] sm:$0xff]
  %v16 = vld [vmem:[%s1 + $0x10] sm:$0xff]
  %v17 = vld [vmem:[%s1 + $0x18] sm:$0x1]
  %v18 = vld [vmem:[%s0] sm:$0xff]
  %v19 = vld [vmem:[%s0 + $0x8] sm:$0xff]
  %v20 = vld [vmem:[%s0 + $0x10] sm:$0xff]
  %v21 = vld [vmem:[%s0 + $0x18] sm:$0xff]
  %v22 = vld [vmem:[%s0 + $0x20] sm:$0xff]
  %v23 = vld [vmem:[%s0 + $0x28] sm:$0xff]
  %v24 = vld [vmem:[%s0 + $0x30] sm:$0xff]
  %v25 = vld [vmem:[%s0 + $0x38] sm:$0xff]
  %v26 = vld [vmem:[%s0 + $0x40] sm:$0xff]
  %v27 = vld [vmem:[%s0 + $0x48] sm:$0xff]
  %v28 = vld [vmem:[%s0 + $0x50] sm:$0xff]
  %v29 = vld [vmem:[%s0 + $0x58] sm:$0xff]
  %v30 = vld [vmem:[%s0 + $0x60] sm:$0xff]
  %v31 = vld [vmem:[%s0 + $0x68] sm:$0xff]
  %v32 = vld [vmem:[%s0 + $0x70] sm:$0xff]
  %v33 = vld [vmem:[%s0 + $0x78] sm:$0xff]
  %v34 = vld [vmem:[%s0 + $0x80] sm:$0xff]
  %v35 = vld [vmem:[%s0 + $0x88] sm:$0xff]
  %v36 = vld [vmem:[%s0 + $0x90] sm:$0xff]
  %v37 = vld [vmem:[%s0 + $0x98] sm:$0xff]
  %v38 = vld [vmem:[%s0 + $0xa0] sm:$0xff]
  %v39 = vld [vmem:[%s0 + $0xa8] sm:$0xff]
  %v40 = vld [vmem:[%s0 + $0xb0] sm:$0xff]
  %v41 = vld [vmem:[%s0 + $0xb8] sm:$0xff]
  %v42 = vld [vmem:[%s0 + $0xc0] sm:$0xff]
  %v43 = vld [vmem:[%s0 + $0xc8] sm:$0xff]
  %v44 = vld [vmem:[%s0 + $0xd0] sm:$0xff]
  %v45 = vld [vmem:[%s0 + $0xd8] sm:$0xff]
  %v46 = vld [vmem:[%s0 + $0xe0] sm:$0xff]
  %v47 = vld [vmem:[%s0 + $0xe8] sm:$0xff]
  %v48 = vld [vmem:[%s0 + $0xf0] sm:$0xff]
  %v49 = vld [vmem:[%s0 + $0xf8] sm:$0xff]
  %v50 = vld [vmem:[%s0 + $0x100] sm:$0xff]
  %v51 = vld [vmem:[%s0 + $0x108] sm:$0xff]
  %v52 = vld [vmem:[%s0 + $0x110] sm:$0xff]
  %v53 = vld [vmem:[%s0 + $0x118] sm:$0xff]
  %v54 = vld [vmem:[%s0 + $0x120] sm:$0xff]
  %v55 = vld [vmem:[%s0 + $0x128] sm:$0xff]
  %v56 = vld [vmem:[%s0 + $0x130] sm:$0xff]
  %v57 = vld [vmem:[%s0 + $0x138] sm:$0xff]
  %v58 = vld [vmem:[%s0 + $0x140] sm:$0xff]
  %v59 = vld [vmem:[%s0 + $0x148] sm:$0xff]
  %v60 = vld [vmem:[%s0 + $0x150] sm:$0xff]
  %v61 = vld [vmem:[%s0 + $0x158] sm:$0xff]
  %v62 = vld [vmem:[%s0 + $0x160] sm:$0xff]
  %v63 = vld [vmem:[%s0 + $0x168] sm:$0xff]
  %v64 = vld [vmem:[%s0 + $0x170] sm:$0xff]
  %v65 = vld [vmem:[%s0 + $0x178] sm:$0xff]
  %v66 = vld [vmem:[%s0 + $0x180] sm:$0xff]
  %vm67 = vcmask 203776
  %v69 = vsel %vm67, %v18, 0
  %v72 = vsel %vm67, %v19, 0
  %v75 = vsel %vm67, %v20, 0
  %v78 = vsel %vm67, %v21, 0
  %v81 = vsel %vm67, %v22, 0
  %v84 = vsel %vm67, %v23, 0
  %v87 = vsel %vm67, %v24, 0
  %v90 = vsel %vm67, %v25, 0
  %v93 = vsel %vm67, %v26, 0
  %v96 = vsel %vm67, %v27, 0
  %v99 = vsel %vm67, %v28, 0
  %v102 = vsel %vm67, %v29, 0
  %v105 = vsel %vm67, %v30, 0
  %v108 = vsel %vm67, %v31, 0
  %v111 = vsel %vm67, %v32, 0
  %v114 = vsel %vm67, %v33, 0
  %v117 = vsel %vm67, %v34, 0
  %v120 = vsel %vm67, %v35, 0
  %v123 = vsel %vm67, %v36, 0
  %v126 = vsel %vm67, %v37, 0
  %v129 = vsel %vm67, %v38, 0
  %v132 = vsel %vm67, %v39, 0
  %v135 = vsel %vm67, %v40, 0
  %v138 = vsel %vm67, %v41, 0
  %v141 = vsel %vm67, %v42, 0
  %v144 = vsel %vm67, %v43, 0
  %v147 = vsel %vm67, %v44, 0
  %v150 = vsel %vm67, %v45, 0
  %v153 = vsel %vm67, %v46, 0
  %v156 = vsel %vm67, %v47, 0
  %v159 = vsel %vm67, %v48, 0
  %v162 = vsel %vm67, %v49, 0
  %v165 = vsel %vm67, %v50, 0
  %v168 = vsel %vm67, %v51, 0
  %v171 = vsel %vm67, %v52, 0
  %v174 = vsel %vm67, %v53, 0
  %v177 = vsel %vm67, %v54, 0
  %v180 = vsel %vm67, %v55, 0
  %v183 = vsel %vm67, %v56, 0
  %v186 = vsel %vm67, %v57, 0
  %v189 = vsel %vm67, %v58, 0
  %v192 = vsel %vm67, %v59, 0
  %v195 = vsel %vm67, %v60, 0
  %v198 = vsel %vm67, %v61, 0
  %v201 = vsel %vm67, %v62, 0
  %v204 = vsel %vm67, %v63, 0
  %v207 = vsel %vm67, %v64, 0
  %v210 = vsel %vm67, %v65, 0
  %v213 = vsel %vm67, %v66, 0
  %vm215 = vcmask 1040384
  %v217 = vsel %vm215, %v17, 0
  %219 = vmatprep.subr.mxu0 0.0
  %220 = vmatpush1.msra.mxu0 %v14
  %221 = vmatprep.subr.mxu0 0.0
  %222 = vmatpush1.msra.mxu0 %v15
  %223 = vmatprep.subr.mxu0 0.0
  %224 = vmatpush1.msra.mxu0 %v16
  %225 = vmatprep.subr.mxu0 0.0
  %226 = vmatpush1.msra.mxu0 %v217
  %227 = vmatprep.subr.mxu0 0.0
  %228 = vmatpush1.msra.mxu0 0.0
  %229 = vmatprep.subr.mxu0 0.0
  %230 = vmatpush1.msra.mxu0 0.0
  %231 = vmatprep.subr.mxu0 0.0
  %232 = vmatpush1.msra.mxu0 0.0
  %233 = vmatprep.subr.mxu0 0.0
  %234 = vmatpush1.msra.mxu0 0.0
  %235 = vmatprep.subr.mxu0 0.0
  %236 = vmatpush1.msra.mxu0 0.0
  %237 = vmatprep.subr.mxu0 0.0
  %238 = vmatpush1.msra.mxu0 0.0
  %239 = vmatprep.subr.mxu0 0.0
  %240 = vmatpush1.msra.mxu0 0.0
  %241 = vmatprep.subr.mxu0 0.0
  %242 = vmatpush1.msra.mxu0 0.0
  %243 = vmatprep.subr.mxu0 0.0
  %244 = vmatpush1.msra.mxu0 0.0
  %245 = vmatprep.subr.mxu0 0.0
  %246 = vmatpush1.msra.mxu0 0.0
  %247 = vmatprep.subr.mxu0 0.0
  %248 = vmatpush1.msra.mxu0 0.0
  %249 = vmatprep.subr.mxu0 0.0
  %250 = vmatpush1.msra.mxu0 0.0
  %251 = vmatprep.subr.mxu0 0.0
  %252 = vmatpush1.msra.mxu0 0.0
  %253 = vmatprep.subr.mxu0 0.0
  %254 = vmatpush1.msra.mxu0 0.0
  %255 = vmatprep.subr.mxu0 0.0
  %256 = vmatpush1.msra.mxu0 0.0
  %257 = vmatprep.subr.mxu0 0.0
  %258 = vmatpush1.msra.mxu0 0.0
  %259 = vmatprep.subr.mxu0 0.0
  %260 = vmatpush1.msra.mxu0 0.0
  %261 = vmatprep.subr.mxu0 0.0
  %262 = vmatpush1.msra.mxu0 0.0
  %263 = vmatprep.subr.mxu0 0.0
  %264 = vmatpush1.msra.mxu0 0.0
  %265 = vmatprep.subr.mxu0 0.0
  %266 = vmatpush1.msra.mxu0 0.0
  %267 = vmatprep.subr.mxu0 0.0
  %268 = vmatpush1.msra.mxu0 0.0
  %269 = vmatprep.subr.mxu0 0.0
  %270 = vmatpush1.msra.mxu0 0.0
  %271 = vmatprep.subr.mxu0 0.0
  %272 = vmatpush1.msra.mxu0 0.0
  %273 = vmatprep.subr.mxu0 0.0
  %274 = vmatpush1.msra.mxu0 0.0
  %275 = vmatprep.subr.mxu0 0.0
  %276 = vmatpush1.msra.mxu0 0.0
  %277 = vmatprep.subr.mxu0 0.0
  %278 = vmatpush1.msra.mxu0 0.0
  %279 = vmatprep.subr.mxu0 0.0
  %280 = vmatpush1.msra.mxu0 0.0
  %281 = vmatprep.subr.mxu0 0.0
  %282 = vmatpush1.msra.mxu0 0.0
  %283 = vmatprep.mubr.f32.mxu0 0.0
  %284 = vmatmul.mubr.f32.gmra.mrb[0].mxu0 %v69
  %v285 = vpop.f32.mrb[0].mxu0
  %v286 = vadd.f32 0.0, %v285
  %v287 = vpop.f32.mrb[0].mxu0
  %288 = vmatprep.mubr.f32.mxu0 0.0
  %289 = vmatmul.mubr.f32.gmra.mrb[0].mxu0 %v72
  %v290 = vpop.f32.mrb[0].mxu0
  %v291 = vadd.f32 0.0, %v290
  %v292 = vpop.f32.mrb[0].mxu0
  %293 = vmatprep.mubr.f32.mxu0 0.0
  %294 = vmatmul.mubr.f32.gmra.mrb[0].mxu0 %v75
  %v295 = vpop.f32.mrb[0].mxu0
  %v296 = vadd.f32 0.0, %v295
  %v297 = vpop.f32.mrb[0].mxu0
  %298 = vmatprep.mubr.f32.mxu0 0.0
  %299 = vmatmul.mubr.f32.gmra.mrb[0].mxu0 %v78
  %v300 = vpop.f32.mrb[0].mxu0
  %v301 = vadd.f32 0.0, %v300
  %v302 = vpop.f32.mrb[0].mxu0
  %303 = vmatprep.mubr.f32.mxu0 0.0
  %304 = vmatmul.mubr.f32.gmra.mrb[0].mxu0 %v81
  %v305 = vpop.f32.mrb[0].mxu0
  %v306 = vadd.f32 0.0, %v305
  %v307 = vpop.f32.mrb[0].mxu0
  %308 = vmatprep.mubr.f32.mxu0 0.0
  %309 = vmatmul.mubr.f32.gmra.mrb[0].mxu0 %v84
  %v310 = vpop.f32.mrb[0].mxu0
  %v311 = vadd.f32 0.0, %v310
  %v312 = vpop.f32.mrb[0].mxu0
  %313 = vmatprep.mubr.f32.mxu0 0.0
  %314 = vmatmul.mubr.f32.gmra.mrb[0].mxu0 %v87
  %v315 = vpop.f32.mrb[0].mxu0
  %v316 = vadd.f32 0.0, %v315
  %v317 = vpop.f32.mrb[0].mxu0
  %318 = vmatprep.mubr.f32.mxu0 0.0
  %319 = vmatmul.mubr.f32.gmra.mrb[0].mxu0 %v90
  %v320 = vpop.f32.mrb[0].mxu0
  %v321 = vadd.f32 0.0, %v320
  %v322 = vpop.f32.mrb[0].mxu0
  %323 = vmatprep.mubr.f32.mxu0 0.0
  %324 = vmatmul.mubr.f32.gmra.mrb[0].mxu0 %v93
  %v325 = vpop.f32.mrb[0].mxu0
  %v326 = vadd.f32 0.0, %v325
  %v327 = vpop.f32.mrb[0].mxu0
  %328 = vmatprep.mubr.f32.mxu0 0.0
  %329 = vmatmul.mubr.f32.gmra.mrb[0].mxu0 %v96
  %v330 = vpop.f32.mrb[0].mxu0
  %v331 = vadd.f32 0.0, %v330
  %v332 = vpop.f32.mrb[0].mxu0
  %333 = vmatprep.mubr.f32.mxu0 0.0
  %334 = vmatmul.mubr.f32.gmra.mrb[0].mxu0 %v99
  %v335 = vpop.f32.mrb[0].mxu0
  %v336 = vadd.f32 0.0, %v335
  %v337 = vpop.f32.mrb[0].mxu0
  %338 = vmatprep.mubr.f32.mxu0 0.0
  %339 = vmatmul.mubr.f32.gmra.mrb[0].mxu0 %v102
  %v340 = vpop.f32.mrb[0].mxu0
  %v341 = vadd.f32 0.0, %v340
  %v342 = vpop.f32.mrb[0].mxu0
  %343 = vmatprep.mubr.f32.mxu0 0.0
  %344 = vmatmul.mubr.f32.gmra.mrb[0].mxu0 %v105
  %v345 = vpop.f32.mrb[0].mxu0
  %v346 = vadd.f32 0.0, %v345
  %v347 = vpop.f32.mrb[0].mxu0
  %348 = vmatprep.mubr.f32.mxu0 0.0
  %349 = vmatmul.mubr.f32.gmra.mrb[0].mxu0 %v108
  %v350 = vpop.f32.mrb[0].mxu0
  %v351 = vadd.f32 0.0, %v350
  %v352 = vpop.f32.mrb[0].mxu0
  %353 = vmatprep.mubr.f32.mxu0 0.0
  %354 = vmatmul.mubr.f32.gmra.mrb[0].mxu0 %v111
  %v355 = vpop.f32.mrb[0].mxu0
  %v356 = vadd.f32 0.0, %v355
  %v357 = vpop.f32.mrb[0].mxu0
  %358 = vmatprep.mubr.f32.mxu0 0.0
  %359 = vmatmul.mubr.f32.gmra.mrb[0].mxu0 %v114
  %v360 = vpop.f32.mrb[0].mxu0
  %v361 = vadd.f32 0.0, %v360
  %v362 = vpop.f32.mrb[0].mxu0
  %363 = vmatprep.mubr.f32.mxu0 0.0
  %364 = vmatmul.mubr.f32.gmra.mrb[0].mxu0 %v117
  %v365 = vpop.f32.mrb[0].mxu0
  %v366 = vadd.f32 0.0, %v365
  %v367 = vpop.f32.mrb[0].mxu0
  %368 = vmatprep.mubr.f32.mxu0 0.0
  %369 = vmatmul.mubr.f32.gmra.mrb[0].mxu0 %v120
  %v370 = vpop.f32.mrb[0].mxu0
  %v371 = vadd.f32 0.0, %v370
  %v372 = vpop.f32.mrb[0].mxu0
  %373 = vmatprep.mubr.f32.mxu0 0.0
  %374 = vmatmul.mubr.f32.gmra.mrb[0].mxu0 %v123
  %v375 = vpop.f32.mrb[0].mxu0
  %v376 = vadd.f32 0.0, %v375
  %v377 = vpop.f32.mrb[0].mxu0
  %378 = vmatprep.mubr.f32.mxu0 0.0
  %379 = vmatmul.mubr.f32.gmra.mrb[0].mxu0 %v126
  %v380 = vpop.f32.mrb[0].mxu0
  %v381 = vadd.f32 0.0, %v380
  %v382 = vpop.f32.mrb[0].mxu0
  %383 = vmatprep.mubr.f32.mxu0 0.0
  %384 = vmatmul.mubr.f32.gmra.mrb[0].mxu0 %v129
  %v385 = vpop.f32.mrb[0].mxu0
  %v386 = vadd.f32 0.0, %v385
  %v387 = vpop.f32.mrb[0].mxu0
  %388 = vmatprep.mubr.f32.mxu0 0.0
  %389 = vmatmul.mubr.f32.gmra.mrb[0].mxu0 %v132
  %v390 = vpop.f32.mrb[0].mxu0
  %v391 = vadd.f32 0.0, %v390
  %v392 = vpop.f32.mrb[0].mxu0
  %393 = vmatprep.mubr.f32.mxu0 0.0
  %394 = vmatmul.mubr.f32.gmra.mrb[0].mxu0 %v135
  %v395 = vpop.f32.mrb[0].mxu0
  %v396 = vadd.f32 0.0, %v395
  %v397 = vpop.f32.mrb[0].mxu0
  %398 = vmatprep.mubr.f32.mxu0 0.0
  %399 = vmatmul.mubr.f32.gmra.mrb[0].mxu0 %v138
  %v400 = vpop.f32.mrb[0].mxu0
  %v401 = vadd.f32 0.0, %v400
  %v402 = vpop.f32.mrb[0].mxu0
  %403 = vmatprep.mubr.f32.mxu0 0.0
  %404 = vmatmul.mubr.f32.gmra.mrb[0].mxu0 %v141
  %v405 = vpop.f32.mrb[0].mxu0
  %v406 = vadd.f32 0.0, %v405
  %v407 = vpop.f32.mrb[0].mxu0
  %408 = vmatprep.mubr.f32.mxu0 0.0
  %409 = vmatmul.mubr.f32.gmra.mrb[0].mxu0 %v144
  %v410 = vpop.f32.mrb[0].mxu0
  %v411 = vadd.f32 0.0, %v410
  %v412 = vpop.f32.mrb[0].mxu0
  %413 = vmatprep.mubr.f32.mxu0 0.0
  %414 = vmatmul.mubr.f32.gmra.mrb[0].mxu0 %v147
  %v415 = vpop.f32.mrb[0].mxu0
  %v416 = vadd.f32 0.0, %v415
  %v417 = vpop.f32.mrb[0].mxu0
  %418 = vmatprep.mubr.f32.mxu0 0.0
  %419 = vmatmul.mubr.f32.gmra.mrb[0].mxu0 %v150
  %v420 = vpop.f32.mrb[0].mxu0
  %v421 = vadd.f32 0.0, %v420
  %v422 = vpop.f32.mrb[0].mxu0
  %423 = vmatprep.mubr.f32.mxu0 0.0
  %424 = vmatmul.mubr.f32.gmra.mrb[0].mxu0 %v153
  %v425 = vpop.f32.mrb[0].mxu0
  %v426 = vadd.f32 0.0, %v425
  %v427 = vpop.f32.mrb[0].mxu0
  %428 = vmatprep.mubr.f32.mxu0 0.0
  %429 = vmatmul.mubr.f32.gmra.mrb[0].mxu0 %v156
  %v430 = vpop.f32.mrb[0].mxu0
  %v431 = vadd.f32 0.0, %v430
  %v432 = vpop.f32.mrb[0].mxu0
  %433 = vmatprep.mubr.f32.mxu0 0.0
  %434 = vmatmul.mubr.f32.gmra.mrb[0].mxu0 %v159
  %v435 = vpop.f32.mrb[0].mxu0
  %v436 = vadd.f32 0.0, %v435
  %v437 = vpop.f32.mrb[0].mxu0
  %438 = vmatprep.mubr.f32.mxu0 0.0
  %439 = vmatmul.mubr.f32.gmra.mrb[0].mxu0 %v162
  %v440 = vpop.f32.mrb[0].mxu0
  %v441 = vadd.f32 0.0, %v440
  %v442 = vpop.f32.mrb[0].mxu0
  %443 = vmatprep.mubr.f32.mxu0 0.0
  %444 = vmatmul.mubr.f32.gmra.mrb[0].mxu0 %v165
  %v445 = vpop.f32.mrb[0].mxu0
  %v446 = vadd.f32 0.0, %v445
  %v447 = vpop.f32.mrb[0].mxu0
  %448 = vmatprep.mubr.f32.mxu0 0.0
  %449 = vmatmul.mubr.f32.gmra.mrb[0].mxu0 %v168
  %v450 = vpop.f32.mrb[0].mxu0
  %v451 = vadd.f32 0.0, %v450
  %v452 = vpop.f32.mrb[0].mxu0
  %453 = vmatprep.mubr.f32.mxu0 0.0
  %454 = vmatmul.mubr.f32.gmra.mrb[0].mxu0 %v171
  %v455 = vpop.f32.mrb[0].mxu0
  %v456 = vadd.f32 0.0, %v455
  %v457 = vpop.f32.mrb[0].mxu0
  %458 = vmatprep.mubr.f32.mxu0 0.0
  %459 = vmatmul.mubr.f32.gmra.mrb[0].mxu0 %v174
  %v460 = vpop.f32.mrb[0].mxu0
  %v461 = vadd.f32 0.0, %v460
  %v462 = vpop.f32.mrb[0].mxu0
  %463 = vmatprep.mubr.f32.mxu0 0.0
  %464 = vmatmul.mubr.f32.gmra.mrb[0].mxu0 %v177
  %v465 = vpop.f32.mrb[0].mxu0
  %v466 = vadd.f32 0.0, %v465
  %v467 = vpop.f32.mrb[0].mxu0
  %468 = vmatprep.mubr.f32.mxu0 0.0
  %469 = vmatmul.mubr.f32.gmra.mrb[0].mxu0 %v180
  %v470 = vpop.f32.mrb[0].mxu0
  %v471 = vadd.f32 0.0, %v470
  %v472 = vpop.f32.mrb[0].mxu0
  %473 = vmatprep.mubr.f32.mxu0 0.0
  %474 = vmatmul.mubr.f32.gmra.mrb[0].mxu0 %v183
  %v475 = vpop.f32.mrb[0].mxu0
  %v476 = vadd.f32 0.0, %v475
  %v477 = vpop.f32.mrb[0].mxu0
  %478 = vmatprep.mubr.f32.mxu0 0.0
  %479 = vmatmul.mubr.f32.gmra.mrb[0].mxu0 %v186
  %v480 = vpop.f32.mrb[0].mxu0
  %v481 = vadd.f32 0.0, %v480
  %v482 = vpop.f32.mrb[0].mxu0
  %483 = vmatprep.mubr.f32.mxu0 0.0
  %484 = vmatmul.mubr.f32.gmra.mrb[0].mxu0 %v189
  %v485 = vpop.f32.mrb[0].mxu0
  %v486 = vadd.f32 0.0, %v485
  %v487 = vpop.f32.mrb[0].mxu0
  %488 = vmatprep.mubr.f32.mxu0 0.0
  %489 = vmatmul.mubr.f32.gmra.mrb[0].mxu0 %v192
  %v490 = vpop.f32.mrb[0].mxu0
  %v491 = vadd.f32 0.0, %v490
  %v492 = vpop.f32.mrb[0].mxu0
  %493 = vmatprep.mubr.f32.mxu0 0.0
  %494 = vmatmul.mubr.f32.gmra.mrb[0].mxu0 %v195
  %v495 = vpop.f32.mrb[0].mxu0
  %v496 = vadd.f32 0.0, %v495
  %v497 = vpop.f32.mrb[0].mxu0
  %498 = vmatprep.mubr.f32.mxu0 0.0
  %499 = vmatmul.mubr.f32.gmra.mrb[0].mxu0 %v198
  %v500 = vpop.f32.mrb[0].mxu0
  %v501 = vadd.f32 0.0, %v500
  %v502 = vpop.f32.mrb[0].mxu0
  %503 = vmatprep.mubr.f32.mxu0 0.0
  %504 = vmatmul.mubr.f32.gmra.mrb[0].mxu0 %v201
  %v505 = vpop.f32.mrb[0].mxu0
  %v506 = vadd.f32 0.0, %v505
  %v507 = vpop.f32.mrb[0].mxu0
  %508 = vmatprep.mubr.f32.mxu0 0.0
  %509 = vmatmul.mubr.f32.gmra.mrb[0].mxu0 %v204
  %v510 = vpop.f32.mrb[0].mxu0
  %v511 = vadd.f32 0.0, %v510
  %v512 = vpop.f32.mrb[0].mxu0
  %513 = vmatprep.mubr.f32.mxu0 0.0
  %514 = vmatmul.mubr.f32.gmra.mrb[0].mxu0 %v207
  %v515 = vpop.f32.mrb[0].mxu0
  %v516 = vadd.f32 0.0, %v515
  %v517 = vpop.f32.mrb[0].mxu0
  %518 = vmatprep.mubr.f32.mxu0 0.0
  %519 = vmatmul.mubr.f32.gmra.mrb[0].mxu0 %v210
  %v520 = vpop.f32.mrb[0].mxu0
  %v521 = vadd.f32 0.0, %v520
  %v522 = vpop.f32.mrb[0].mxu0
  %523 = vmatprep.mubr.f32.mxu0 0.0
  %524 = vmatmul.mubr.f32.gmra.mrb[0].mxu0 %v213
  %v525 = vpop.f32.mrb[0].mxu0
  %v526 = vadd.f32 0.0, %v525
  %v527 = vpop.f32.mrb[0].mxu0
  %528 = vdwg.mxu0
  %s529 = scalar_lea.vmem %s0, 392
  %v530 = vld [vmem:[%s529] sm:$0xff]
  %v531 = vld [vmem:[%s529 + $0x8] sm:$0xff]
  %v532 = vld [vmem:[%s529 + $0x10] sm:$0xff]
  %v533 = vld [vmem:[%s529 + $0x18] sm:$0xff]
  %v534 = vld [vmem:[%s529 + $0x20] sm:$0xff]
  %v535 = vld [vmem:[%s529 + $0x28] sm:$0xff]
  %v536 = vld [vmem:[%s529 + $0x30] sm:$0xff]
  %v537 = vld [vmem:[%s529 + $0x38] sm:$0xff]
  %v538 = vld [vmem:[%s529 + $0x40] sm:$0xff]
  %v539 = vld [vmem:[%s529 + $0x48] sm:$0xff]
  %v540 = vld [vmem:[%s529 + $0x50] sm:$0xff]
  %v541 = vld [vmem:[%s529 + $0x58] sm:$0xff]
  %v542 = vld [vmem:[%s529 + $0x60] sm:$0xff]
  %v543 = vld [vmem:[%s529 + $0x68] sm:$0xff]
  %v544 = vld [vmem:[%s529 + $0x70] sm:$0xff]
  %v545 = vld [vmem:[%s529 + $0x78] sm:$0xff]
  %v546 = vld [vmem:[%s529 + $0x80] sm:$0xff]
  %v547 = vld [vmem:[%s529 + $0x88] sm:$0xff]
  %v548 = vld [vmem:[%s529 + $0x90] sm:$0xff]
  %v549 = vld [vmem:[%s529 + $0x98] sm:$0xff]
  %v550 = vld [vmem:[%s529 + $0xa0] sm:$0xff]
  %v551 = vld [vmem:[%s529 + $0xa8] sm:$0xff]
  %v552 = vld [vmem:[%s529 + $0xb0] sm:$0xff]
  %v553 = vld [vmem:[%s529 + $0xb8] sm:$0xff]
  %v554 = vld [vmem:[%s529 + $0xc0] sm:$0xff]
  %v555 = vld [vmem:[%s529 + $0xc8] sm:$0xff]
  %v556 = vld [vmem:[%s529 + $0xd0] sm:$0xff]
  %v557 = vld [vmem:[%s529 + $0xd8] sm:$0xff]
  %v558 = vld [vmem:[%s529 + $0xe0] sm:$0xff]
  %v559 = vld [vmem:[%s529 + $0xe8] sm:$0xff]
  %v560 = vld [vmem:[%s529 + $0xf0] sm:$0xff]
  %v561 = vld [vmem:[%s529 + $0xf8] sm:$0xff]
  %v562 = vld [vmem:[%s529 + $0x100] sm:$0xff]
  %v563 = vld [vmem:[%s529 + $0x108] sm:$0xff]
  %v564 = vld [vmem:[%s529 + $0x110] sm:$0xff]
  %v565 = vld [vmem:[%s529 + $0x118] sm:$0xff]
  %v566 = vld [vmem:[%s529 + $0x120] sm:$0xff]
  %v567 = vld [vmem:[%s529 + $0x128] sm:$0xff]
  %v568 = vld [vmem:[%s529 + $0x130] sm:$0xff]
  %v569 = vld [vmem:[%s529 + $0x138] sm:$0xff]
  %v570 = vld [vmem:[%s529 + $0x140] sm:$0xff]
  %v571 = vld [vmem:[%s529 + $0x148] sm:$0xff]
  %v572 = vld [vmem:[%s529 + $0x150] sm:$0xff]
  %v573 = vld [vmem:[%s529 + $0x158] sm:$0xff]
  %v574 = vld [vmem:[%s529 + $0x160] sm:$0xff]
  %v575 = vld [vmem:[%s529 + $0x168] sm:$0xff]
  %v576 = vld [vmem:[%s529 + $0x170] sm:$0xff]
  %v577 = vld [vmem:[%s529 + $0x178] sm:$0xff]
  %v578 = vld [vmem:[%s529 + $0x180] sm:$0xff]
  %v580 = vsel %vm67, %v530, 0
  %v583 = vsel %vm67, %v531, 0
  %v586 = vsel %vm67, %v532, 0
  %v589 = vsel %vm67, %v533, 0
  %v592 = vsel %vm67, %v534, 0
  %v595 = vsel %vm67, %v535, 0
  %v598 = vsel %vm67, %v536, 0
  %v601 = vsel %vm67, %v537, 0
  %v604 = vsel %vm67, %v538, 0
  %v607 = vsel %vm67, %v539, 0
  %v610 = vsel %vm67, %v540, 0
  %v613 = vsel %vm67, %v541, 0
  %v616 = vsel %vm67, %v542, 0
  %v619 = vsel %vm67, %v543, 0
  %v622 = vsel %vm67, %v544, 0
  %v625 = vsel %vm67, %v545, 0
  %v628 = vsel %vm67, %v546, 0
  %v631 = vsel %vm67, %v547, 0
  %v634 = vsel %vm67, %v548, 0
  %v637 = vsel %vm67, %v549, 0
  %v640 = vsel %vm67, %v550, 0
  %v643 = vsel %vm67, %v551, 0
  %v646 = vsel %vm67, %v552, 0
  %v649 = vsel %vm67, %v553, 0
  %v652 = vsel %vm67, %v554, 0
  %v655 = vsel %vm67, %v555, 0
  %v658 = vsel %vm67, %v556, 0
  %v661 = vsel %vm67, %v557, 0
  %v664 = vsel %vm67, %v558, 0
  %v667 = vsel %vm67, %v559, 0
  %v670 = vsel %vm67, %v560, 0
  %v673 = vsel %vm67, %v561, 0
  %v676 = vsel %vm67, %v562, 0
  %v679 = vsel %vm67, %v563, 0
  %v682 = vsel %vm67, %v564, 0
  %v685 = vsel %vm67, %v565, 0
  %v688 = vsel %vm67, %v566, 0
  %v691 = vsel %vm67, %v567, 0
  %v694 = vsel %vm67, %v568, 0
  %v697 = vsel %vm67, %v569, 0
  %v700 = vsel %vm67, %v570, 0
  %v703 = vsel %vm67, %v571, 0
  %v706 = vsel %vm67, %v572, 0
  %v709 = vsel %vm67, %v573, 0
  %v712 = vsel %vm67, %v574, 0
  %v715 = vsel %vm67, %v575, 0
  %v718 = vsel %vm67, %v576, 0
  %v721 = vsel %vm67, %v577, 0
  %v724 = vsel %vm67, %v578, 0
  %726 = vmatprep.subr.mxu0 0.0
  %727 = vmatpush1.msra.mxu0 %v14
  %728 = vmatprep.subr.mxu0 0.0
  %729 = vmatpush1.msra.mxu0 %v15
  %730 = vmatprep.subr.mxu0 0.0
  %731 = vmatpush1.msra.mxu0 %v16
  %732 = vmatprep.subr.mxu0 0.0
  %733 = vmatpush1.msra.mxu0 %v217
  %734 = vmatprep.subr.mxu0 0.0
  %735 = vmatpush1.msra.mxu0 0.0
  %736 = vmatprep.subr.mxu0 0.0
  %737 = vmatpush1.msra.mxu0 0.0
  %738 = vmatprep.subr.mxu0 0.0
  %739 = vmatpush1.msra.mxu0 0.0
  %740 = vmatprep.subr.mxu0 0.0
  %741 = vmatpush1.msra.mxu0 0.0
  %742 = vmatprep.subr.mxu0 0.0
  %743 = vmatpush1.msra.mxu0 0.0
  %744 = vmatprep.subr.mxu0 0.0
  %745 = vmatpush1.msra.mxu0 0.0
  %746 = vmatprep.subr.mxu0 0.0
  %747 = vmatpush1.msra.mxu0 0.0
  %748 = vmatprep.subr.mxu0 0.0
  %749 = vmatpush1.msra.mxu0 0.0
  %750 = vmatprep.subr.mxu0 0.0
  %751 = vmatpush1.msra.mxu0 0.0
  %752 = vmatprep.subr.mxu0 0.0
  %753 = vmatpush1.msra.mxu0 0.0
  %754 = vmatprep.subr.mxu0 0.0
  %755 = vmatpush1.msra.mxu0 0.0
  %756 = vmatprep.subr.mxu0 0.0
  %757 = vmatpush1.msra.mxu0 0.0
  %758 = vmatprep.subr.mxu0 0.0
  %759 = vmatpush1.msra.mxu0 0.0
  %760 = vmatprep.subr.mxu0 0.0
  %761 = vmatpush1.msra.mxu0 0.0
  %762 = vmatprep.subr.mxu0 0.0
  %763 = vmatpush1.msra.mxu0 0.0
  %764 = vmatprep.subr.mxu0 0.0
  %765 = vmatpush1.msra.mxu0 0.0
  %766 = vmatprep.subr.mxu0 0.0
  %767 = vmatpush1.msra.mxu0 0.0
  %768 = vmatprep.subr.mxu0 0.0
  %769 = vmatpush1.msra.mxu0 0.0
  %770 = vmatprep.subr.mxu0 0.0
  %771 = vmatpush1.msra.mxu0 0.0
  %772 = vmatprep.subr.mxu0 0.0
  %773 = vmatpush1.msra.mxu0 0.0
  %774 = vmatprep.subr.mxu0 0.0
  %775 = vmatpush1.msra.mxu0 0.0
  %776 = vmatprep.subr.mxu0 0.0
  %777 = vmatpush1.msra.mxu0 0.0
  %778 = vmatprep.subr.mxu0 0.0
  %779 = vmatpush1.msra.mxu0 0.0
  %780 = vmatprep.subr.mxu0 0.0
  %781 = vmatpush1.msra.mxu0 0.0
  %782 = vmatprep.subr.mxu0 0.0
  %783 = vmatpush1.msra.mxu0 0.0
  %784 = vmatprep.subr.mxu0 0.0
  %785 = vmatpush1.msra.mxu0 0.0
  %786 = vmatprep.subr.mxu0 0.0
  %787 = vmatpush1.msra.mxu0 0.0
  %788 = vmatprep.subr.mxu0 0.0
  %789 = vmatpush1.msra.mxu0 0.0
  %790 = vmatprep.mubr.f32.mxu0 0.0
  %791 = vmatmul.mubr.f32.gmra.mrb[0].mxu0 %v580
  %v792 = vpop.f32.mrb[0].mxu0
  %v793 = vadd.f32 0.0, %v792
  %v794 = vpop.f32.mrb[0].mxu0
  %795 = vmatprep.mubr.f32.mxu0 0.0
  %796 = vmatmul.mubr.f32.gmra.mrb[0].mxu0 %v583
  %v797 = vpop.f32.mrb[0].mxu0
  %v798 = vadd.f32 0.0, %v797
  %v799 = vpop.f32.mrb[0].mxu0
  %800 = vmatprep.mubr.f32.mxu0 0.0
  %801 = vmatmul.mubr.f32.gmra.mrb[0].mxu0 %v586
  %v802 = vpop.f32.mrb[0].mxu0
  %v803 = vadd.f32 0.0, %v802
  %v804 = vpop.f32.mrb[0].mxu0
  %805 = vmatprep.mubr.f32.mxu0 0.0
  %806 = vmatmul.mubr.f32.gmra.mrb[0].mxu0 %v589
  %v807 = vpop.f32.mrb[0].mxu0
  %v808 = vadd.f32 0.0, %v807
  %v809 = vpop.f32.mrb[0].mxu0
  %810 = vmatprep.mubr.f32.mxu0 0.0
  %811 = vmatmul.mubr.f32.gmra.mrb[0].mxu0 %v592
  %v812 = vpop.f32.mrb[0].mxu0
  %v813 = vadd.f32 0.0, %v812
  %v814 = vpop.f32.mrb[0].mxu0
  %815 = vmatprep.mubr.f32.mxu0 0.0
  %816 = vmatmul.mubr.f32.gmra.mrb[0].mxu0 %v595
  %v817 = vpop.f32.mrb[0].mxu0
  %v818 = vadd.f32 0.0, %v817
  %v819 = vpop.f32.mrb[0].mxu0
  %820 = vmatprep.mubr.f32.mxu0 0.0
  %821 = vmatmul.mubr.f32.gmra.mrb[0].mxu0 %v598
  %v822 = vpop.f32.mrb[0].mxu0
  %v823 = vadd.f32 0.0, %v822
  %v824 = vpop.f32.mrb[0].mxu0
  %825 = vmatprep.mubr.f32.mxu0 0.0
  %826 = vmatmul.mubr.f32.gmra.mrb[0].mxu0 %v601
  %v827 = vpop.f32.mrb[0].mxu0
  %v828 = vadd.f32 0.0, %v827
  %v829 = vpop.f32.mrb[0].mxu0
  %830 = vmatprep.mubr.f32.mxu0 0.0
  %831 = vmatmul.mubr.f32.gmra.mrb[0].mxu0 %v604
  %v832 = vpop.f32.mrb[0].mxu0
  %v833 = vadd.f32 0.0, %v832
  %v834 = vpop.f32.mrb[0].mxu0
  %835 = vmatprep.mubr.f32.mxu0 0.0
  %836 = vmatmul.mubr.f32.gmra.mrb[0].mxu0 %v607
  %v837 = vpop.f32.mrb[0].mxu0
  %v838 = vadd.f32 0.0, %v837
  %v839 = vpop.f32.mrb[0].mxu0
  %840 = vmatprep.mubr.f32.mxu0 0.0
  %841 = vmatmul.mubr.f32.gmra.mrb[0].mxu0 %v610
  %v842 = vpop.f32.mrb[0].mxu0
  %v843 = vadd.f32 0.0, %v842
  %v844 = vpop.f32.mrb[0].mxu0
  %845 = vmatprep.mubr.f32.mxu0 0.0
  %846 = vmatmul.mubr.f32.gmra.mrb[0].mxu0 %v613
  %v847 = vpop.f32.mrb[0].mxu0
  %v848 = vadd.f32 0.0, %v847
  %v849 = vpop.f32.mrb[0].mxu0
  %850 = vmatprep.mubr.f32.mxu0 0.0
  %851 = vmatmul.mubr.f32.gmra.mrb[0].mxu0 %v616
  %v852 = vpop.f32.mrb[0].mxu0
  %v853 = vadd.f32 0.0, %v852
  %v854 = vpop.f32.mrb[0].mxu0
  %855 = vmatprep.mubr.f32.mxu0 0.0
  %856 = vmatmul.mubr.f32.gmra.mrb[0].mxu0 %v619
  %v857 = vpop.f32.mrb[0].mxu0
  %v858 = vadd.f32 0.0, %v857
  %v859 = vpop.f32.mrb[0].mxu0
  %860 = vmatprep.mubr.f32.mxu0 0.0
  %861 = vmatmul.mubr.f32.gmra.mrb[0].mxu0 %v622
  %v862 = vpop.f32.mrb[0].mxu0
  %v863 = vadd.f32 0.0, %v862
  %v864 = vpop.f32.mrb[0].mxu0
  %865 = vmatprep.mubr.f32.mxu0 0.0
  %866 = vmatmul.mubr.f32.gmra.mrb[0].mxu0 %v625
  %v867 = vpop.f32.mrb[0].mxu0
  %v868 = vadd.f32 0.0, %v867
  %v869 = vpop.f32.mrb[0].mxu0
  %870 = vmatprep.mubr.f32.mxu0 0.0
  %871 = vmatmul.mubr.f32.gmra.mrb[0].mxu0 %v628
  %v872 = vpop.f32.mrb[0].mxu0
  %v873 = vadd.f32 0.0, %v872
  %v874 = vpop.f32.mrb[0].mxu0
  %875 = vmatprep.mubr.f32.mxu0 0.0
  %876 = vmatmul.mubr.f32.gmra.mrb[0].mxu0 %v631
  %v877 = vpop.f32.mrb[0].mxu0
  %v878 = vadd.f32 0.0, %v877
  %v879 = vpop.f32.mrb[0].mxu0
  %880 = vmatprep.mubr.f32.mxu0 0.0
  %881 = vmatmul.mubr.f32.gmra.mrb[0].mxu0 %v634
  %v882 = vpop.f32.mrb[0].mxu0
  %v883 = vadd.f32 0.0, %v882
  %v884 = vpop.f32.mrb[0].mxu0
  %885 = vmatprep.mubr.f32.mxu0 0.0
  %886 = vmatmul.mubr.f32.gmra.mrb[0].mxu0 %v637
  %v887 = vpop.f32.mrb[0].mxu0
  %v888 = vadd.f32 0.0, %v887
  %v889 = vpop.f32.mrb[0].mxu0
  %890 = vmatprep.mubr.f32.mxu0 0.0
  %891 = vmatmul.mubr.f32.gmra.mrb[0].mxu0 %v640
  %v892 = vpop.f32.mrb[0].mxu0
  %v893 = vadd.f32 0.0, %v892
  %v894 = vpop.f32.mrb[0].mxu0
  %895 = vmatprep.mubr.f32.mxu0 0.0
  %896 = vmatmul.mubr.f32.gmra.mrb[0].mxu0 %v643
  %v897 = vpop.f32.mrb[0].mxu0
  %v898 = vadd.f32 0.0, %v897
  %v899 = vpop.f32.mrb[0].mxu0
  %900 = vmatprep.mubr.f32.mxu0 0.0
  %901 = vmatmul.mubr.f32.gmra.mrb[0].mxu0 %v646
  %v902 = vpop.f32.mrb[0].mxu0
  %v903 = vadd.f32 0.0, %v902
  %v904 = vpop.f32.mrb[0].mxu0
  %905 = vmatprep.mubr.f32.mxu0 0.0
  %906 = vmatmul.mubr.f32.gmra.mrb[0].mxu0 %v649
  %v907 = vpop.f32.mrb[0].mxu0
  %v908 = vadd.f32 0.0, %v907
  %v909 = vpop.f32.mrb[0].mxu0
  %910 = vmatprep.mubr.f32.mxu0 0.0
  %911 = vmatmul.mubr.f32.gmra.mrb[0].mxu0 %v652
  %v912 = vpop.f32.mrb[0].mxu0
  %v913 = vadd.f32 0.0, %v912
  %v914 = vpop.f32.mrb[0].mxu0
  %915 = vmatprep.mubr.f32.mxu0 0.0
  %916 = vmatmul.mubr.f32.gmra.mrb[0].mxu0 %v655
  %v917 = vpop.f32.mrb[0].mxu0
  %v918 = vadd.f32 0.0, %v917
  %v919 = vpop.f32.mrb[0].mxu0
  %920 = vmatprep.mubr.f32.mxu0 0.0
  %921 = vmatmul.mubr.f32.gmra.mrb[0].mxu0 %v658
  %v922 = vpop.f32.mrb[0].mxu0
  %v923 = vadd.f32 0.0, %v922
  %v924 = vpop.f32.mrb[0].mxu0
  %925 = vmatprep.mubr.f32.mxu0 0.0
  %926 = vmatmul.mubr.f32.gmra.mrb[0].mxu0 %v661
  %v927 = vpop.f32.mrb[0].mxu0
  %v928 = vadd.f32 0.0, %v927
  %v929 = vpop.f32.mrb[0].mxu0
  %930 = vmatprep.mubr.f32.mxu0 0.0
  %931 = vmatmul.mubr.f32.gmra.mrb[0].mxu0 %v664
  %v932 = vpop.f32.mrb[0].mxu0
  %v933 = vadd.f32 0.0, %v932
  %v934 = vpop.f32.mrb[0].mxu0
  %935 = vmatprep.mubr.f32.mxu0 0.0
  %936 = vmatmul.mubr.f32.gmra.mrb[0].mxu0 %v667
  %v937 = vpop.f32.mrb[0].mxu0
  %v938 = vadd.f32 0.0, %v937
  %v939 = vpop.f32.mrb[0].mxu0
  %940 = vmatprep.mubr.f32.mxu0 0.0
  %941 = vmatmul.mubr.f32.gmra.mrb[0].mxu0 %v670
  %v942 = vpop.f32.mrb[0].mxu0
  %v943 = vadd.f32 0.0, %v942
  %v944 = vpop.f32.mrb[0].mxu0
  %945 = vmatprep.mubr.f32.mxu0 0.0
  %946 = vmatmul.mubr.f32.gmra.mrb[0].mxu0 %v673
  %v947 = vpop.f32.mrb[0].mxu0
  %v948 = vadd.f32 0.0, %v947
  %v949 = vpop.f32.mrb[0].mxu0
  %950 = vmatprep.mubr.f32.mxu0 0.0
  %951 = vmatmul.mubr.f32.gmra.mrb[0].mxu0 %v676
  %v952 = vpop.f32.mrb[0].mxu0
  %v953 = vadd.f32 0.0, %v952
  %v954 = vpop.f32.mrb[0].mxu0
  %955 = vmatprep.mubr.f32.mxu0 0.0
  %956 = vmatmul.mubr.f32.gmra.mrb[0].mxu0 %v679
  %v957 = vpop.f32.mrb[0].mxu0
  %v958 = vadd.f32 0.0, %v957
  %v959 = vpop.f32.mrb[0].mxu0
  %960 = vmatprep.mubr.f32.mxu0 0.0
  %961 = vmatmul.mubr.f32.gmra.mrb[0].mxu0 %v682
  %v962 = vpop.f32.mrb[0].mxu0
  %v963 = vadd.f32 0.0, %v962
  %v964 = vpop.f32.mrb[0].mxu0
  %965 = vmatprep.mubr.f32.mxu0 0.0
  %966 = vmatmul.mubr.f32.gmra.mrb[0].mxu0 %v685
  %v967 = vpop.f32.mrb[0].mxu0
  %v968 = vadd.f32 0.0, %v967
  %v969 = vpop.f32.mrb[0].mxu0
  %970 = vmatprep.mubr.f32.mxu0 0.0
  %971 = vmatmul.mubr.f32.gmra.mrb[0].mxu0 %v688
  %v972 = vpop.f32.mrb[0].mxu0
  %v973 = vadd.f32 0.0, %v972
  %v974 = vpop.f32.mrb[0].mxu0
  %975 = vmatprep.mubr.f32.mxu0 0.0
  %976 = vmatmul.mubr.f32.gmra.mrb[0].mxu0 %v691
  %v977 = vpop.f32.mrb[0].mxu0
  %v978 = vadd.f32 0.0, %v977
  %v979 = vpop.f32.mrb[0].mxu0
  %980 = vmatprep.mubr.f32.mxu0 0.0
  %981 = vmatmul.mubr.f32.gmra.mrb[0].mxu0 %v694
  %v982 = vpop.f32.mrb[0].mxu0
  %v983 = vadd.f32 0.0, %v982
  %v984 = vpop.f32.mrb[0].mxu0
  %985 = vmatprep.mubr.f32.mxu0 0.0
  %986 = vmatmul.mubr.f32.gmra.mrb[0].mxu0 %v697
  %v987 = vpop.f32.mrb[0].mxu0
  %v988 = vadd.f32 0.0, %v987
  %v989 = vpop.f32.mrb[0].mxu0
  %990 = vmatprep.mubr.f32.mxu0 0.0
  %991 = vmatmul.mubr.f32.gmra.mrb[0].mxu0 %v700
  %v992 = vpop.f32.mrb[0].mxu0
  %v993 = vadd.f32 0.0, %v992
  %v994 = vpop.f32.mrb[0].mxu0
  %995 = vmatprep.mubr.f32.mxu0 0.0
  %996 = vmatmul.mubr.f32.gmra.mrb[0].mxu0 %v703
  %v997 = vpop.f32.mrb[0].mxu0
  %v998 = vadd.f32 0.0, %v997
  %v999 = vpop.f32.mrb[0].mxu0
  %1000 = vmatprep.mubr.f32.mxu0 0.0
  %1001 = vmatmul.mubr.f32.gmra.mrb[0].mxu0 %v706
  %v1002 = vpop.f32.mrb[0].mxu0
  %v1003 = vadd.f32 0.0, %v1002
  %v1004 = vpop.f32.mrb[0].mxu0
  %1005 = vmatprep.mubr.f32.mxu0 0.0
  %1006 = vmatmul.mubr.f32.gmra.mrb[0].mxu0 %v709
  %v1007 = vpop.f32.mrb[0].mxu0
  %v1008 = vadd.f32 0.0, %v1007
  %v1009 = vpop.f32.mrb[0].mxu0
  %1010 = vmatprep.mubr.f32.mxu0 0.0
  %1011 = vmatmul.mubr.f32.gmra.mrb[0].mxu0 %v712
  %v1012 = vpop.f32.mrb[0].mxu0
  %v1013 = vadd.f32 0.0, %v1012
  %v1014 = vpop.f32.mrb[0].mxu0
  %1015 = vmatprep.mubr.f32.mxu0 0.0
  %1016 = vmatmul.mubr.f32.gmra.mrb[0].mxu0 %v715
  %v1017 = vpop.f32.mrb[0].mxu0
  %v1018 = vadd.f32 0.0, %v1017
  %v1019 = vpop.f32.mrb[0].mxu0
  %1020 = vmatprep.mubr.f32.mxu0 0.0
  %1021 = vmatmul.mubr.f32.gmra.mrb[0].mxu0 %v718
  %v1022 = vpop.f32.mrb[0].mxu0
  %v1023 = vadd.f32 0.0, %v1022
  %v1024 = vpop.f32.mrb[0].mxu0
  %1025 = vmatprep.mubr.f32.mxu0 0.0
  %1026 = vmatmul.mubr.f32.gmra.mrb[0].mxu0 %v721
  %v1027 = vpop.f32.mrb[0].mxu0
  %v1028 = vadd.f32 0.0, %v1027
  %v1029 = vpop.f32.mrb[0].mxu0
  %1030 = vmatprep.mubr.f32.mxu0 0.0
  %1031 = vmatmul.mubr.f32.gmra.mrb[0].mxu0 %v724
  %v1032 = vpop.f32.mrb[0].mxu0
  %v1033 = vadd.f32 0.0, %v1032
  %v1034 = vpop.f32.mrb[0].mxu0
  %1035 = vdwg.mxu0
  %v1036 = vmax.f32 %v286, %v793
  %v1037 = vmax.f32 %v291, %v798
  %v1038 = vmax.f32 %v296, %v803
  %v1039 = vmax.f32 %v301, %v808
  %v1040 = vmax.f32 %v306, %v813
  %v1041 = vmax.f32 %v311, %v818
  %v1042 = vmax.f32 %v316, %v823
  %v1043 = vmax.f32 %v321, %v828
  %v1044 = vmax.f32 %v326, %v833
  %v1045 = vmax.f32 %v331, %v838
  %v1046 = vmax.f32 %v336, %v843
  %v1047 = vmax.f32 %v341, %v848
  %v1048 = vmax.f32 %v346, %v853
  %v1049 = vmax.f32 %v351, %v858
  %v1050 = vmax.f32 %v356, %v863
  %v1051 = vmax.f32 %v361, %v868
  %v1052 = vmax.f32 %v366, %v873
  %v1053 = vmax.f32 %v371, %v878
  %v1054 = vmax.f32 %v376, %v883
  %v1055 = vmax.f32 %v381, %v888
  %v1056 = vmax.f32 %v386, %v893
  %v1057 = vmax.f32 %v391, %v898
  %v1058 = vmax.f32 %v396, %v903
  %v1059 = vmax.f32 %v401, %v908
  %v1060 = vmax.f32 %v406, %v913
  %v1061 = vmax.f32 %v411, %v918
  %v1062 = vmax.f32 %v416, %v923
  %v1063 = vmax.f32 %v421, %v928
  %v1064 = vmax.f32 %v426, %v933
  %v1065 = vmax.f32 %v431, %v938
  %v1066 = vmax.f32 %v436, %v943
  %v1067 = vmax.f32 %v441, %v948
  %v1068 = vmax.f32 %v446, %v953
  %v1069 = vmax.f32 %v451, %v958
  %v1070 = vmax.f32 %v456, %v963
  %v1071 = vmax.f32 %v461, %v968
  %v1072 = vmax.f32 %v466, %v973
  %v1073 = vmax.f32 %v471, %v978
  %v1074 = vmax.f32 %v476, %v983
  %v1075 = vmax.f32 %v481, %v988
  %v1076 = vmax.f32 %v486, %v993
  %v1077 = vmax.f32 %v491, %v998
  %v1078 = vmax.f32 %v496, %v1003
  %v1079 = vmax.f32 %v501, %v1008
  %v1080 = vmax.f32 %v506, %v1013
  %v1081 = vmax.f32 %v511, %v1018
  %v1082 = vmax.f32 %v516, %v1023
  %v1083 = vmax.f32 %v521, %v1028
  %v1084 = vmax.f32 %v526, %v1033
  %s1085 = scalar_lea.vmem %s0, 784
  %v1086 = vld [vmem:[%s1085] sm:$0xff]
  %v1087 = vld [vmem:[%s1085 + $0x8] sm:$0xff]
  %v1088 = vld [vmem:[%s1085 + $0x10] sm:$0xff]
  %v1089 = vld [vmem:[%s1085 + $0x18] sm:$0xff]
  %v1090 = vld [vmem:[%s1085 + $0x20] sm:$0xff]
  %v1091 = vld [vmem:[%s1085 + $0x28] sm:$0xff]
  %v1092 = vld [vmem:[%s1085 + $0x30] sm:$0xff]
  %v1093 = vld [vmem:[%s1085 + $0x38] sm:$0xff]
  %v1094 = vld [vmem:[%s1085 + $0x40] sm:$0xff]
  %v1095 = vld [vmem:[%s1085 + $0x48] sm:$0xff]
  %v1096 = vld [vmem:[%s1085 + $0x50] sm:$0xff]
  %v1097 = vld [vmem:[%s1085 + $0x58] sm:$0xff]
  %v1098 = vld [vmem:[%s1085 + $0x60] sm:$0xff]
  %v1099 = vld [vmem:[%s1085 + $0x68] sm:$0xff]
  %v1100 = vld [vmem:[%s1085 + $0x70] sm:$0xff]
  %v1101 = vld [vmem:[%s1085 + $0x78] sm:$0xff]
  %v1102 = vld [vmem:[%s1085 + $0x80] sm:$0xff]
  %v1103 = vld [vmem:[%s1085 + $0x88] sm:$0xff]
  %v1104 = vld [vmem:[%s1085 + $0x90] sm:$0xff]
  %v1105 = vld [vmem:[%s1085 + $0x98] sm:$0xff]
  %v1106 = vld [vmem:[%s1085 + $0xa0] sm:$0xff]
  %v1107 = vld [vmem:[%s1085 + $0xa8] sm:$0xff]
  %v1108 = vld [vmem:[%s1085 + $0xb0] sm:$0xff]
  %v1109 = vld [vmem:[%s1085 + $0xb8] sm:$0xff]
  %v1110 = vld [vmem:[%s1085 + $0xc0] sm:$0xff]
  %v1111 = vld [vmem:[%s1085 + $0xc8] sm:$0xff]
  %v1112 = vld [vmem:[%s1085 + $0xd0] sm:$0xff]
  %v1113 = vld [vmem:[%s1085 + $0xd8] sm:$0xff]
  %v1114 = vld [vmem:[%s1085 + $0xe0] sm:$0xff]
  %v1115 = vld [vmem:[%s1085 + $0xe8] sm:$0xff]
  %v1116 = vld [vmem:[%s1085 + $0xf0] sm:$0xff]
  %v1117 = vld [vmem:[%s1085 + $0xf8] sm:$0xff]
  %v1118 = vld [vmem:[%s1085 + $0x100] sm:$0xff]
  %v1119 = vld [vmem:[%s1085 + $0x108] sm:$0xff]
  %v1120 = vld [vmem:[%s1085 + $0x110] sm:$0xff]
  %v1121 = vld [vmem:[%s1085 + $0x118] sm:$0xff]
  %v1122 = vld [vmem:[%s1085 + $0x120] sm:$0xff]
  %v1123 = vld [vmem:[%s1085 + $0x128] sm:$0xff]
  %v1124 = vld [vmem:[%s1085 + $0x130] sm:$0xff]
  %v1125 = vld [vmem:[%s1085 + $0x138] sm:$0xff]
  %v1126 = vld [vmem:[%s1085 + $0x140] sm:$0xff]
  %v1127 = vld [vmem:[%s1085 + $0x148] sm:$0xff]
  %v1128 = vld [vmem:[%s1085 + $0x150] sm:$0xff]
  %v1129 = vld [vmem:[%s1085 + $0x158] sm:$0xff]
  %v1130 = vld [vmem:[%s1085 + $0x160] sm:$0xff]
  %v1131 = vld [vmem:[%s1085 + $0x168] sm:$0xff]
  %v1132 = vld [vmem:[%s1085 + $0x170] sm:$0xff]
  %v1133 = vld [vmem:[%s1085 + $0x178] sm:$0xff]
  %v1134 = vld [vmem:[%s1085 + $0x180] sm:$0xff]
  %v1136 = vsel %vm67, %v1086, 0
  %v1139 = vsel %vm67, %v1087, 0
  %v1142 = vsel %vm67, %v1088, 0
  %v1145 = vsel %vm67, %v1089, 0
  %v1148 = vsel %vm67, %v1090, 0
  %v1151 = vsel %vm67, %v1091, 0
  %v1154 = vsel %vm67, %v1092, 0
  %v1157 = vsel %vm67, %v1093, 0
  %v1160 = vsel %vm67, %v1094, 0
  %v1163 = vsel %vm67, %v1095, 0
  %v1166 = vsel %vm67, %v1096, 0
  %v1169 = vsel %vm67, %v1097, 0
  %v1172 = vsel %vm67, %v1098, 0
  %v1175 = vsel %vm67, %v1099, 0
  %v1178 = vsel %vm67, %v1100, 0
  %v1181 = vsel %vm67, %v1101, 0
  %v1184 = vsel %vm67, %v1102, 0
  %v1187 = vsel %vm67, %v1103, 0
  %v1190 = vsel %vm67, %v1104, 0
  %v1193 = vsel %vm67, %v1105, 0
  %v1196 = vsel %vm67, %v1106, 0
  %v1199 = vsel %vm67, %v1107, 0
  %v1202 = vsel %vm67, %v1108, 0
  %v1205 = vsel %vm67, %v1109, 0
  %v1208 = vsel %vm67, %v1110, 0
  %v1211 = vsel %vm67, %v1111, 0
  %v1214 = vsel %vm67, %v1112, 0
  %v1217 = vsel %vm67, %v1113, 0
  %v1220 = vsel %vm67, %v1114, 0
  %v1223 = vsel %vm67, %v1115, 0
  %v1226 = vsel %vm67, %v1116, 0
  %v1229 = vsel %vm67, %v1117, 0
  %v1232 = vsel %vm67, %v1118, 0
  %v1235 = vsel %vm67, %v1119, 0
  %v1238 = vsel %vm67, %v1120, 0
  %v1241 = vsel %vm67, %v1121, 0
  %v1244 = vsel %vm67, %v1122, 0
  %v1247 = vsel %vm67, %v1123, 0
  %v1250 = vsel %vm67, %v1124, 0
  %v1253 = vsel %vm67, %v1125, 0
  %v1256 = vsel %vm67, %v1126, 0
  %v1259 = vsel %vm67, %v1127, 0
  %v1262 = vsel %vm67, %v1128, 0
  %v1265 = vsel %vm67, %v1129, 0
  %v1268 = vsel %vm67, %v1130, 0
  %v1271 = vsel %vm67, %v1131, 0
  %v1274 = vsel %vm67, %v1132, 0
  %v1277 = vsel %vm67, %v1133, 0
  %v1280 = vsel %vm67, %v1134, 0
  %1282 = vmatprep.subr.mxu0 0.0
  %1283 = vmatpush1.msra.mxu0 %v14
  %1284 = vmatprep.subr.mxu0 0.0
  %1285 = vmatpush1.msra.mxu0 %v15
  %1286 = vmatprep.subr.mxu0 0.0
  %1287 = vmatpush1.msra.mxu0 %v16
  %1288 = vmatprep.subr.mxu0 0.0
  %1289 = vmatpush1.msra.mxu0 %v217
  %1290 = vmatprep.subr.mxu0 0.0
  %1291 = vmatpush1.msra.mxu0 0.0
  %1292 = vmatprep.subr.mxu0 0.0
  %1293 = vmatpush1.msra.mxu0 0.0
  %1294 = vmatprep.subr.mxu0 0.0
  %1295 = vmatpush1.msra.mxu0 0.0
  %1296 = vmatprep.subr.mxu0 0.0
  %1297 = vmatpush1.msra.mxu0 0.0
  %1298 = vmatprep.subr.mxu0 0.0
  %1299 = vmatpush1.msra.mxu0 0.0
  %1300 = vmatprep.subr.mxu0 0.0
  %1301 = vmatpush1.msra.mxu0 0.0
  %1302 = vmatprep.subr.mxu0 0.0
  %1303 = vmatpush1.msra.mxu0 0.0
  %1304 = vmatprep.subr.mxu0 0.0
  %1305 = vmatpush1.msra.mxu0 0.0
  %1306 = vmatprep.subr.mxu0 0.0
  %1307 = vmatpush1.msra.mxu0 0.0
  %1308 = vmatprep.subr.mxu0 0.0
  %1309 = vmatpush1.msra.mxu0 0.0
  %1310 = vmatprep.subr.mxu0 0.0
  %1311 = vmatpush1.msra.mxu0 0.0
  %1312 = vmatprep.subr.mxu0 0.0
  %1313 = vmatpush1.msra.mxu0 0.0
  %1314 = vmatprep.subr.mxu0 0.0
  %1315 = vmatpush1.msra.mxu0 0.0
  %1316 = vmatprep.subr.mxu0 0.0
  %1317 = vmatpush1.msra.mxu0 0.0
  %1318 = vmatprep.subr.mxu0 0.0
  %1319 = vmatpush1.msra.mxu0 0.0
  %1320 = vmatprep.subr.mxu0 0.0
  %1321 = vmatpush1.msra.mxu0 0.0
  %1322 = vmatprep.subr.mxu0 0.0
  %1323 = vmatpush1.msra.mxu0 0.0
  %1324 = vmatprep.subr.mxu0 0.0
  %1325 = vmatpush1.msra.mxu0 0.0
  %1326 = vmatprep.subr.mxu0 0.0
  %1327 = vmatpush1.msra.mxu0 0.0
  %1328 = vmatprep.subr.mxu0 0.0
  %1329 = vmatpush1.msra.mxu0 0.0
  %1330 = vmatprep.subr.mxu0 0.0
  %1331 = vmatpush1.msra.mxu0 0.0
  %1332 = vmatprep.subr.mxu0 0.0
  %1333 = vmatpush1.msra.mxu0 0.0
  %1334 = vmatprep.subr.mxu0 0.0
  %1335 = vmatpush1.msra.mxu0 0.0
  %1336 = vmatprep.subr.mxu0 0.0
  %1337 = vmatpush1.msra.mxu0 0.0
  %1338 = vmatprep.subr.mxu0 0.0
  %1339 = vmatpush1.msra.mxu0 0.0
  %1340 = vmatprep.subr.mxu0 0.0
  %1341 = vmatpush1.msra.mxu0 0.0
  %1342 = vmatprep.subr.mxu0 0.0
  %1343 = vmatpush1.msra.mxu0 0.0
  %1344 = vmatprep.subr.mxu0 0.0
  %1345 = vmatpush1.msra.mxu0 0.0
  %1346 = vmatprep.mubr.f32.mxu0 0.0
  %1347 = vmatmul.mubr.f32.gmra.mrb[0].mxu0 %v1136
  %v1348 = vpop.f32.mrb[0].mxu0
  %v1349 = vadd.f32 0.0, %v1348
  %v1350 = vpop.f32.mrb[0].mxu0
  %1351 = vmatprep.mubr.f32.mxu0 0.0
  %1352 = vmatmul.mubr.f32.gmra.mrb[0].mxu0 %v1139
  %v1353 = vpop.f32.mrb[0].mxu0
  %v1354 = vadd.f32 0.0, %v1353
  %v1355 = vpop.f32.mrb[0].mxu0
  %1356 = vmatprep.mubr.f32.mxu0 0.0
  %1357 = vmatmul.mubr.f32.gmra.mrb[0].mxu0 %v1142
  %v1358 = vpop.f32.mrb[0].mxu0
  %v1359 = vadd.f32 0.0, %v1358
  %v1360 = vpop.f32.mrb[0].mxu0
  %1361 = vmatprep.mubr.f32.mxu0 0.0
  %1362 = vmatmul.mubr.f32.gmra.mrb[0].mxu0 %v1145
  %v1363 = vpop.f32.mrb[0].mxu0
  %v1364 = vadd.f32 0.0, %v1363
  %v1365 = vpop.f32.mrb[0].mxu0
  %1366 = vmatprep.mubr.f32.mxu0 0.0
  %1367 = vmatmul.mubr.f32.gmra.mrb[0].mxu0 %v1148
  %v1368 = vpop.f32.mrb[0].mxu0
  %v1369 = vadd.f32 0.0, %v1368
  %v1370 = vpop.f32.mrb[0].mxu0
  %1371 = vmatprep.mubr.f32.mxu0 0.0
  %1372 = vmatmul.mubr.f32.gmra.mrb[0].mxu0 %v1151
  %v1373 = vpop.f32.mrb[0].mxu0
  %v1374 = vadd.f32 0.0, %v1373
  %v1375 = vpop.f32.mrb[0].mxu0
  %1376 = vmatprep.mubr.f32.mxu0 0.0
  %1377 = vmatmul.mubr.f32.gmra.mrb[0].mxu0 %v1154
  %v1378 = vpop.f32.mrb[0].mxu0
  %v1379 = vadd.f32 0.0, %v1378
  %v1380 = vpop.f32.mrb[0].mxu0
  %1381 = vmatprep.mubr.f32.mxu0 0.0
  %1382 = vmatmul.mubr.f32.gmra.mrb[0].mxu0 %v1157
  %v1383 = vpop.f32.mrb[0].mxu0
  %v1384 = vadd.f32 0.0, %v1383
  %v1385 = vpop.f32.mrb[0].mxu0
  %1386 = vmatprep.mubr.f32.mxu0 0.0
  %1387 = vmatmul.mubr.f32.gmra.mrb[0].mxu0 %v1160
  %v1388 = vpop.f32.mrb[0].mxu0
  %v1389 = vadd.f32 0.0, %v1388
  %v1390 = vpop.f32.mrb[0].mxu0
  %1391 = vmatprep.mubr.f32.mxu0 0.0
  %1392 = vmatmul.mubr.f32.gmra.mrb[0].mxu0 %v1163
  %v1393 = vpop.f32.mrb[0].mxu0
  %v1394 = vadd.f32 0.0, %v1393
  %v1395 = vpop.f32.mrb[0].mxu0
  %1396 = vmatprep.mubr.f32.mxu0 0.0
  %1397 = vmatmul.mubr.f32.gmra.mrb[0].mxu0 %v1166
  %v1398 = vpop.f32.mrb[0].mxu0
  %v1399 = vadd.f32 0.0, %v1398
  %v1400 = vpop.f32.mrb[0].mxu0
  %1401 = vmatprep.mubr.f32.mxu0 0.0
  %1402 = vmatmul.mubr.f32.gmra.mrb[0].mxu0 %v1169
  %v1403 = vpop.f32.mrb[0].mxu0
  %v1404 = vadd.f32 0.0, %v1403
  %v1405 = vpop.f32.mrb[0].mxu0
  %1406 = vmatprep.mubr.f32.mxu0 0.0
  %1407 = vmatmul.mubr.f32.gmra.mrb[0].mxu0 %v1172
  %v1408 = vpop.f32.mrb[0].mxu0
  %v1409 = vadd.f32 0.0, %v1408
  %v1410 = vpop.f32.mrb[0].mxu0
  %1411 = vmatprep.mubr.f32.mxu0 0.0
  %1412 = vmatmul.mubr.f32.gmra.mrb[0].mxu0 %v1175
  %v1413 = vpop.f32.mrb[0].mxu0
  %v1414 = vadd.f32 0.0, %v1413
  %v1415 = vpop.f32.mrb[0].mxu0
  %1416 = vmatprep.mubr.f32.mxu0 0.0
  %1417 = vmatmul.mubr.f32.gmra.mrb[0].mxu0 %v1178
  %v1418 = vpop.f32.mrb[0].mxu0
  %v1419 = vadd.f32 0.0, %v1418
  %v1420 = vpop.f32.mrb[0].mxu0
  %1421 = vmatprep.mubr.f32.mxu0 0.0
  %1422 = vmatmul.mubr.f32.gmra.mrb[0].mxu0 %v1181
  %v1423 = vpop.f32.mrb[0].mxu0
  %v1424 = vadd.f32 0.0, %v1423
  %v1425 = vpop.f32.mrb[0].mxu0
  %1426 = vmatprep.mubr.f32.mxu0 0.0
  %1427 = vmatmul.mubr.f32.gmra.mrb[0].mxu0 %v1184
  %v1428 = vpop.f32.mrb[0].mxu0
  %v1429 = vadd.f32 0.0, %v1428
  %v1430 = vpop.f32.mrb[0].mxu0
  %1431 = vmatprep.mubr.f32.mxu0 0.0
  %1432 = vmatmul.mubr.f32.gmra.mrb[0].mxu0 %v1187
  %v1433 = vpop.f32.mrb[0].mxu0
  %v1434 = vadd.f32 0.0, %v1433
  %v1435 = vpop.f32.mrb[0].mxu0
  %1436 = vmatprep.mubr.f32.mxu0 0.0
  %1437 = vmatmul.mubr.f32.gmra.mrb[0].mxu0 %v1190
  %v1438 = vpop.f32.mrb[0].mxu0
  %v1439 = vadd.f32 0.0, %v1438
  %v1440 = vpop.f32.mrb[0].mxu0
  %1441 = vmatprep.mubr.f32.mxu0 0.0
  %1442 = vmatmul.mubr.f32.gmra.mrb[0].mxu0 %v1193
  %v1443 = vpop.f32.mrb[0].mxu0
  %v1444 = vadd.f32 0.0, %v1443
  %v1445 = vpop.f32.mrb[0].mxu0
  %1446 = vmatprep.mubr.f32.mxu0 0.0
  %1447 = vmatmul.mubr.f32.gmra.mrb[0].mxu0 %v1196
  %v1448 = vpop.f32.mrb[0].mxu0
  %v1449 = vadd.f32 0.0, %v1448
  %v1450 = vpop.f32.mrb[0].mxu0
  %1451 = vmatprep.mubr.f32.mxu0 0.0
  %1452 = vmatmul.mubr.f32.gmra.mrb[0].mxu0 %v1199
  %v1453 = vpop.f32.mrb[0].mxu0
  %v1454 = vadd.f32 0.0, %v1453
  %v1455 = vpop.f32.mrb[0].mxu0
  %1456 = vmatprep.mubr.f32.mxu0 0.0
  %1457 = vmatmul.mubr.f32.gmra.mrb[0].mxu0 %v1202
  %v1458 = vpop.f32.mrb[0].mxu0
  %v1459 = vadd.f32 0.0, %v1458
  %v1460 = vpop.f32.mrb[0].mxu0
  %1461 = vmatprep.mubr.f32.mxu0 0.0
  %1462 = vmatmul.mubr.f32.gmra.mrb[0].mxu0 %v1205
  %v1463 = vpop.f32.mrb[0].mxu0
  %v1464 = vadd.f32 0.0, %v1463
  %v1465 = vpop.f32.mrb[0].mxu0
  %1466 = vmatprep.mubr.f32.mxu0 0.0
  %1467 = vmatmul.mubr.f32.gmra.mrb[0].mxu0 %v1208
  %v1468 = vpop.f32.mrb[0].mxu0
  %v1469 = vadd.f32 0.0, %v1468
  %v1470 = vpop.f32.mrb[0].mxu0
  %1471 = vmatprep.mubr.f32.mxu0 0.0
  %1472 = vmatmul.mubr.f32.gmra.mrb[0].mxu0 %v1211
  %v1473 = vpop.f32.mrb[0].mxu0
  %v1474 = vadd.f32 0.0, %v1473
  %v1475 = vpop.f32.mrb[0].mxu0
  %1476 = vmatprep.mubr.f32.mxu0 0.0
  %1477 = vmatmul.mubr.f32.gmra.mrb[0].mxu0 %v1214
  %v1478 = vpop.f32.mrb[0].mxu0
  %v1479 = vadd.f32 0.0, %v1478
  %v1480 = vpop.f32.mrb[0].mxu0
  %1481 = vmatprep.mubr.f32.mxu0 0.0
  %1482 = vmatmul.mubr.f32.gmra.mrb[0].mxu0 %v1217
  %v1483 = vpop.f32.mrb[0].mxu0
  %v1484 = vadd.f32 0.0, %v1483
  %v1485 = vpop.f32.mrb[0].mxu0
  %1486 = vmatprep.mubr.f32.mxu0 0.0
  %1487 = vmatmul.mubr.f32.gmra.mrb[0].mxu0 %v1220
  %v1488 = vpop.f32.mrb[0].mxu0
  %v1489 = vadd.f32 0.0, %v1488
  %v1490 = vpop.f32.mrb[0].mxu0
  %1491 = vmatprep.mubr.f32.mxu0 0.0
  %1492 = vmatmul.mubr.f32.gmra.mrb[0].mxu0 %v1223
  %v1493 = vpop.f32.mrb[0].mxu0
  %v1494 = vadd.f32 0.0, %v1493
  %v1495 = vpop.f32.mrb[0].mxu0
  %1496 = vmatprep.mubr.f32.mxu0 0.0
  %1497 = vmatmul.mubr.f32.gmra.mrb[0].mxu0 %v1226
  %v1498 = vpop.f32.mrb[0].mxu0
  %v1499 = vadd.f32 0.0, %v1498
  %v1500 = vpop.f32.mrb[0].mxu0
  %1501 = vmatprep.mubr.f32.mxu0 0.0
  %1502 = vmatmul.mubr.f32.gmra.mrb[0].mxu0 %v1229
  %v1503 = vpop.f32.mrb[0].mxu0
  %v1504 = vadd.f32 0.0, %v1503
  %v1505 = vpop.f32.mrb[0].mxu0
  %1506 = vmatprep.mubr.f32.mxu0 0.0
  %1507 = vmatmul.mubr.f32.gmra.mrb[0].mxu0 %v1232
  %v1508 = vpop.f32.mrb[0].mxu0
  %v1509 = vadd.f32 0.0, %v1508
  %v1510 = vpop.f32.mrb[0].mxu0
  %1511 = vmatprep.mubr.f32.mxu0 0.0
  %1512 = vmatmul.mubr.f32.gmra.mrb[0].mxu0 %v1235
  %v1513 = vpop.f32.mrb[0].mxu0
  %v1514 = vadd.f32 0.0, %v1513
  %v1515 = vpop.f32.mrb[0].mxu0
  %1516 = vmatprep.mubr.f32.mxu0 0.0
  %1517 = vmatmul.mubr.f32.gmra.mrb[0].mxu0 %v1238
  %v1518 = vpop.f32.mrb[0].mxu0
  %v1519 = vadd.f32 0.0, %v1518
  %v1520 = vpop.f32.mrb[0].mxu0
  %1521 = vmatprep.mubr.f32.mxu0 0.0
  %1522 = vmatmul.mubr.f32.gmra.mrb[0].mxu0 %v1241
  %v1523 = vpop.f32.mrb[0].mxu0
  %v1524 = vadd.f32 0.0, %v1523
  %v1525 = vpop.f32.mrb[0].mxu0
  %1526 = vmatprep.mubr.f32.mxu0 0.0
  %1527 = vmatmul.mubr.f32.gmra.mrb[0].mxu0 %v1244
  %v1528 = vpop.f32.mrb[0].mxu0
  %v1529 = vadd.f32 0.0, %v1528
  %v1530 = vpop.f32.mrb[0].mxu0
  %1531 = vmatprep.mubr.f32.mxu0 0.0
  %1532 = vmatmul.mubr.f32.gmra.mrb[0].mxu0 %v1247
  %v1533 = vpop.f32.mrb[0].mxu0
  %v1534 = vadd.f32 0.0, %v1533
  %v1535 = vpop.f32.mrb[0].mxu0
  %1536 = vmatprep.mubr.f32.mxu0 0.0
  %1537 = vmatmul.mubr.f32.gmra.mrb[0].mxu0 %v1250
  %v1538 = vpop.f32.mrb[0].mxu0
  %v1539 = vadd.f32 0.0, %v1538
  %v1540 = vpop.f32.mrb[0].mxu0
  %1541 = vmatprep.mubr.f32.mxu0 0.0
  %1542 = vmatmul.mubr.f32.gmra.mrb[0].mxu0 %v1253
  %v1543 = vpop.f32.mrb[0].mxu0
  %v1544 = vadd.f32 0.0, %v1543
  %v1545 = vpop.f32.mrb[0].mxu0
  %1546 = vmatprep.mubr.f32.mxu0 0.0
  %1547 = vmatmul.mubr.f32.gmra.mrb[0].mxu0 %v1256
  %v1548 = vpop.f32.mrb[0].mxu0
  %v1549 = vadd.f32 0.0, %v1548
  %v1550 = vpop.f32.mrb[0].mxu0
  %1551 = vmatprep.mubr.f32.mxu0 0.0
  %1552 = vmatmul.mubr.f32.gmra.mrb[0].mxu0 %v1259
  %v1553 = vpop.f32.mrb[0].mxu0
  %v1554 = vadd.f32 0.0, %v1553
  %v1555 = vpop.f32.mrb[0].mxu0
  %1556 = vmatprep.mubr.f32.mxu0 0.0
  %1557 = vmatmul.mubr.f32.gmra.mrb[0].mxu0 %v1262
  %v1558 = vpop.f32.mrb[0].mxu0
  %v1559 = vadd.f32 0.0, %v1558
  %v1560 = vpop.f32.mrb[0].mxu0
  %1561 = vmatprep.mubr.f32.mxu0 0.0
  %1562 = vmatmul.mubr.f32.gmra.mrb[0].mxu0 %v1265
  %v1563 = vpop.f32.mrb[0].mxu0
  %v1564 = vadd.f32 0.0, %v1563
  %v1565 = vpop.f32.mrb[0].mxu0
  %1566 = vmatprep.mubr.f32.mxu0 0.0
  %1567 = vmatmul.mubr.f32.gmra.mrb[0].mxu0 %v1268
  %v1568 = vpop.f32.mrb[0].mxu0
  %v1569 = vadd.f32 0.0, %v1568
  %v1570 = vpop.f32.mrb[0].mxu0
  %1571 = vmatprep.mubr.f32.mxu0 0.0
  %1572 = vmatmul.mubr.f32.gmra.mrb[0].mxu0 %v1271
  %v1573 = vpop.f32.mrb[0].mxu0
  %v1574 = vadd.f32 0.0, %v1573
  %v1575 = vpop.f32.mrb[0].mxu0
  %1576 = vmatprep.mubr.f32.mxu0 0.0
  %1577 = vmatmul.mubr.f32.gmra.mrb[0].mxu0 %v1274
  %v1578 = vpop.f32.mrb[0].mxu0
  %v1579 = vadd.f32 0.0, %v1578
  %v1580 = vpop.f32.mrb[0].mxu0
  %1581 = vmatprep.mubr.f32.mxu0 0.0
  %1582 = vmatmul.mubr.f32.gmra.mrb[0].mxu0 %v1277
  %v1583 = vpop.f32.mrb[0].mxu0
  %v1584 = vadd.f32 0.0, %v1583
  %v1585 = vpop.f32.mrb[0].mxu0
  %1586 = vmatprep.mubr.f32.mxu0 0.0
  %1587 = vmatmul.mubr.f32.gmra.mrb[0].mxu0 %v1280
  %v1588 = vpop.f32.mrb[0].mxu0
  %v1589 = vadd.f32 0.0, %v1588
  %v1590 = vpop.f32.mrb[0].mxu0
  %1591 = vdwg.mxu0
  %s1592 = scalar_lea.vmem %s0, 1176
  %v1593 = vld [vmem:[%s1592] sm:$0xff]
  %v1594 = vld [vmem:[%s1592 + $0x8] sm:$0xff]
  %v1595 = vld [vmem:[%s1592 + $0x10] sm:$0xff]
  %v1596 = vld [vmem:[%s1592 + $0x18] sm:$0xff]
  %v1597 = vld [vmem:[%s1592 + $0x20] sm:$0xff]
  %v1598 = vld [vmem:[%s1592 + $0x28] sm:$0xff]
  %v1599 = vld [vmem:[%s1592 + $0x30] sm:$0xff]
  %v1600 = vld [vmem:[%s1592 + $0x38] sm:$0xff]
  %v1601 = vld [vmem:[%s1592 + $0x40] sm:$0xff]
  %v1602 = vld [vmem:[%s1592 + $0x48] sm:$0xff]
  %v1603 = vld [vmem:[%s1592 + $0x50] sm:$0xff]
  %v1604 = vld [vmem:[%s1592 + $0x58] sm:$0xff]
  %v1605 = vld [vmem:[%s1592 + $0x60] sm:$0xff]
  %v1606 = vld [vmem:[%s1592 + $0x68] sm:$0xff]
  %v1607 = vld [vmem:[%s1592 + $0x70] sm:$0xff]
  %v1608 = vld [vmem:[%s1592 + $0x78] sm:$0xff]
  %v1609 = vld [vmem:[%s1592 + $0x80] sm:$0xff]
  %v1610 = vld [vmem:[%s1592 + $0x88] sm:$0xff]
  %v1611 = vld [vmem:[%s1592 + $0x90] sm:$0xff]
  %v1612 = vld [vmem:[%s1592 + $0x98] sm:$0xff]
  %v1613 = vld [vmem:[%s1592 + $0xa0] sm:$0xff]
  %v1614 = vld [vmem:[%s1592 + $0xa8] sm:$0xff]
  %v1615 = vld [vmem:[%s1592 + $0xb0] sm:$0xff]
  %v1616 = vld [vmem:[%s1592 + $0xb8] sm:$0xff]
  %v1617 = vld [vmem:[%s1592 + $0xc0] sm:$0xff]
  %v1618 = vld [vmem:[%s1592 + $0xc8] sm:$0xff]
  %v1619 = vld [vmem:[%s1592 + $0xd0] sm:$0xff]
  %v1620 = vld [vmem:[%s1592 + $0xd8] sm:$0xff]
  %v1621 = vld [vmem:[%s1592 + $0xe0] sm:$0xff]
  %v1622 = vld [vmem:[%s1592 + $0xe8] sm:$0xff]
  %v1623 = vld [vmem:[%s1592 + $0xf0] sm:$0xff]
  %v1624 = vld [vmem:[%s1592 + $0xf8] sm:$0xff]
  %v1625 = vld [vmem:[%s1592 + $0x100] sm:$0xff]
  %v1626 = vld [vmem:[%s1592 + $0x108] sm:$0xff]
  %v1627 = vld [vmem:[%s1592 + $0x110] sm:$0xff]
  %v1628 = vld [vmem:[%s1592 + $0x118] sm:$0xff]
  %v1629 = vld [vmem:[%s1592 + $0x120] sm:$0xff]
  %v1630 = vld [vmem:[%s1592 + $0x128] sm:$0xff]
  %v1631 = vld [vmem:[%s1592 + $0x130] sm:$0xff]
  %v1632 = vld [vmem:[%s1592 + $0x138] sm:$0xff]
  %v1633 = vld [vmem:[%s1592 + $0x140] sm:$0xff]
  %v1634 = vld [vmem:[%s1592 + $0x148] sm:$0xff]
  %v1635 = vld [vmem:[%s1592 + $0x150] sm:$0xff]
  %v1636 = vld [vmem:[%s1592 + $0x158] sm:$0xff]
  %v1637 = vld [vmem:[%s1592 + $0x160] sm:$0xff]
  %v1638 = vld [vmem:[%s1592 + $0x168] sm:$0xff]
  %v1639 = vld [vmem:[%s1592 + $0x170] sm:$0xff]
  %v1640 = vld [vmem:[%s1592 + $0x178] sm:$0xff]
  %v1641 = vld [vmem:[%s1592 + $0x180] sm:$0xff]
  %v1643 = vsel %vm67, %v1593, 0
  %v1646 = vsel %vm67, %v1594, 0
  %v1649 = vsel %vm67, %v1595, 0
  %v1652 = vsel %vm67, %v1596, 0
  %v1655 = vsel %vm67, %v1597, 0
  %v1658 = vsel %vm67, %v1598, 0
  %v1661 = vsel %vm67, %v1599, 0
  %v1664 = vsel %vm67, %v1600, 0
  %v1667 = vsel %vm67, %v1601, 0
  %v1670 = vsel %vm67, %v1602, 0
  %v1673 = vsel %vm67, %v1603, 0
  %v1676 = vsel %vm67, %v1604, 0
  %v1679 = vsel %vm67, %v1605, 0
  %v1682 = vsel %vm67, %v1606, 0
  %v1685 = vsel %vm67, %v1607, 0
  %v1688 = vsel %vm67, %v1608, 0
  %v1691 = vsel %vm67, %v1609, 0
  %v1694 = vsel %vm67, %v1610, 0
  %v1697 = vsel %vm67, %v1611, 0
  %v1700 = vsel %vm67, %v1612, 0
  %v1703 = vsel %vm67, %v1613, 0
  %v1706 = vsel %vm67, %v1614, 0
  %v1709 = vsel %vm67, %v1615, 0
  %v1712 = vsel %vm67, %v1616, 0
  %v1715 = vsel %vm67, %v1617, 0
  %v1718 = vsel %vm67, %v1618, 0
  %v1721 = vsel %vm67, %v1619, 0
  %v1724 = vsel %vm67, %v1620, 0
  %v1727 = vsel %vm67, %v1621, 0
  %v1730 = vsel %vm67, %v1622, 0
  %v1733 = vsel %vm67, %v1623, 0
  %v1736 = vsel %vm67, %v1624, 0
  %v1739 = vsel %vm67, %v1625, 0
  %v1742 = vsel %vm67, %v1626, 0
  %v1745 = vsel %vm67, %v1627, 0
  %v1748 = vsel %vm67, %v1628, 0
  %v1751 = vsel %vm67, %v1629, 0
  %v1754 = vsel %vm67, %v1630, 0
  %v1757 = vsel %vm67, %v1631, 0
  %v1760 = vsel %vm67, %v1632, 0
  %v1763 = vsel %vm67, %v1633, 0
  %v1766 = vsel %vm67, %v1634, 0
  %v1769 = vsel %vm67, %v1635, 0
  %v1772 = vsel %vm67, %v1636, 0
  %v1775 = vsel %vm67, %v1637, 0
  %v1778 = vsel %vm67, %v1638, 0
  %v1781 = vsel %vm67, %v1639, 0
  %v1784 = vsel %vm67, %v1640, 0
  %v1787 = vsel %vm67, %v1641, 0
  %1789 = vmatprep.subr.mxu0 0.0
  %1790 = vmatpush1.msra.mxu0 %v14
  %1791 = vmatprep.subr.mxu0 0.0
  %1792 = vmatpush1.msra.mxu0 %v15
  %1793 = vmatprep.subr.mxu0 0.0
  %1794 = vmatpush1.msra.mxu0 %v16
  %1795 = vmatprep.subr.mxu0 0.0
  %1796 = vmatpush1.msra.mxu0 %v217
  %1797 = vmatprep.subr.mxu0 0.0
  %1798 = vmatpush1.msra.mxu0 0.0
  %1799 = vmatprep.subr.mxu0 0.0
  %1800 = vmatpush1.msra.mxu0 0.0
  %1801 = vmatprep.subr.mxu0 0.0
  %1802 = vmatpush1.msra.mxu0 0.0
  %1803 = vmatprep.subr.mxu0 0.0
  %1804 = vmatpush1.msra.mxu0 0.0
  %1805 = vmatprep.subr.mxu0 0.0
  %1806 = vmatpush1.msra.mxu0 0.0
  %1807 = vmatprep.subr.mxu0 0.0
  %1808 = vmatpush1.msra.mxu0 0.0
  %1809 = vmatprep.subr.mxu0 0.0
  %1810 = vmatpush1.msra.mxu0 0.0
  %1811 = vmatprep.subr.mxu0 0.0
  %1812 = vmatpush1.msra.mxu0 0.0
  %1813 = vmatprep.subr.mxu0 0.0
  %1814 = vmatpush1.msra.mxu0 0.0
  %1815 = vmatprep.subr.mxu0 0.0
  %1816 = vmatpush1.msra.mxu0 0.0
  %1817 = vmatprep.subr.mxu0 0.0
  %1818 = vmatpush1.msra.mxu0 0.0
  %1819 = vmatprep.subr.mxu0 0.0
  %1820 = vmatpush1.msra.mxu0 0.0
  %1821 = vmatprep.subr.mxu0 0.0
  %1822 = vmatpush1.msra.mxu0 0.0
  %1823 = vmatprep.subr.mxu0 0.0
  %1824 = vmatpush1.msra.mxu0 0.0
  %1825 = vmatprep.subr.mxu0 0.0
  %1826 = vmatpush1.msra.mxu0 0.0
  %1827 = vmatprep.subr.mxu0 0.0
  %1828 = vmatpush1.msra.mxu0 0.0
  %1829 = vmatprep.subr.mxu0 0.0
  %1830 = vmatpush1.msra.mxu0 0.0
  %1831 = vmatprep.subr.mxu0 0.0
  %1832 = vmatpush1.msra.mxu0 0.0
  %1833 = vmatprep.subr.mxu0 0.0
  %1834 = vmatpush1.msra.mxu0 0.0
  %1835 = vmatprep.subr.mxu0 0.0
  %1836 = vmatpush1.msra.mxu0 0.0
  %1837 = vmatprep.subr.mxu0 0.0
  %1838 = vmatpush1.msra.mxu0 0.0
  %1839 = vmatprep.subr.mxu0 0.0
  %1840 = vmatpush1.msra.mxu0 0.0
  %1841 = vmatprep.subr.mxu0 0.0
  %1842 = vmatpush1.msra.mxu0 0.0
  %1843 = vmatprep.subr.mxu0 0.0
  %1844 = vmatpush1.msra.mxu0 0.0
  %1845 = vmatprep.subr.mxu0 0.0
  %1846 = vmatpush1.msra.mxu0 0.0
  %1847 = vmatprep.subr.mxu0 0.0
  %1848 = vmatpush1.msra.mxu0 0.0
  %1849 = vmatprep.subr.mxu0 0.0
  %1850 = vmatpush1.msra.mxu0 0.0
  %1851 = vmatprep.subr.mxu0 0.0
  %1852 = vmatpush1.msra.mxu0 0.0
  %1853 = vmatprep.mubr.f32.mxu0 0.0
  %1854 = vmatmul.mubr.f32.gmra.mrb[0].mxu0 %v1643
  %v1855 = vpop.f32.mrb[0].mxu0
  %v1856 = vadd.f32 0.0, %v1855
  %v1857 = vpop.f32.mrb[0].mxu0
  %1858 = vmatprep.mubr.f32.mxu0 0.0
  %1859 = vmatmul.mubr.f32.gmra.mrb[0].mxu0 %v1646
  %v1860 = vpop.f32.mrb[0].mxu0
  %v1861 = vadd.f32 0.0, %v1860
  %v1862 = vpop.f32.mrb[0].mxu0
  %1863 = vmatprep.mubr.f32.mxu0 0.0
  %1864 = vmatmul.mubr.f32.gmra.mrb[0].mxu0 %v1649
  %v1865 = vpop.f32.mrb[0].mxu0
  %v1866 = vadd.f32 0.0, %v1865
  %v1867 = vpop.f32.mrb[0].mxu0
  %1868 = vmatprep.mubr.f32.mxu0 0.0
  %1869 = vmatmul.mubr.f32.gmra.mrb[0].mxu0 %v1652
  %v1870 = vpop.f32.mrb[0].mxu0
  %v1871 = vadd.f32 0.0, %v1870
  %v1872 = vpop.f32.mrb[0].mxu0
  %1873 = vmatprep.mubr.f32.mxu0 0.0
  %1874 = vmatmul.mubr.f32.gmra.mrb[0].mxu0 %v1655
  %v1875 = vpop.f32.mrb[0].mxu0
  %v1876 = vadd.f32 0.0, %v1875
  %v1877 = vpop.f32.mrb[0].mxu0
  %1878 = vmatprep.mubr.f32.mxu0 0.0
  %1879 = vmatmul.mubr.f32.gmra.mrb[0].mxu0 %v1658
  %v1880 = vpop.f32.mrb[0].mxu0
  %v1881 = vadd.f32 0.0, %v1880
  %v1882 = vpop.f32.mrb[0].mxu0
  %1883 = vmatprep.mubr.f32.mxu0 0.0
  %1884 = vmatmul.mubr.f32.gmra.mrb[0].mxu0 %v1661
  %v1885 = vpop.f32.mrb[0].mxu0
  %v1886 = vadd.f32 0.0, %v1885
  %v1887 = vpop.f32.mrb[0].mxu0
  %1888 = vmatprep.mubr.f32.mxu0 0.0
  %1889 = vmatmul.mubr.f32.gmra.mrb[0].mxu0 %v1664
  %v1890 = vpop.f32.mrb[0].mxu0
  %v1891 = vadd.f32 0.0, %v1890
  %v1892 = vpop.f32.mrb[0].mxu0
  %1893 = vmatprep.mubr.f32.mxu0 0.0
  %1894 = vmatmul.mubr.f32.gmra.mrb[0].mxu0 %v1667
  %v1895 = vpop.f32.mrb[0].mxu0
  %v1896 = vadd.f32 0.0, %v1895
  %v1897 = vpop.f32.mrb[0].mxu0
  %1898 = vmatprep.mubr.f32.mxu0 0.0
  %1899 = vmatmul.mubr.f32.gmra.mrb[0].mxu0 %v1670
  %v1900 = vpop.f32.mrb[0].mxu0
  %v1901 = vadd.f32 0.0, %v1900
  %v1902 = vpop.f32.mrb[0].mxu0
  %1903 = vmatprep.mubr.f32.mxu0 0.0
  %1904 = vmatmul.mubr.f32.gmra.mrb[0].mxu0 %v1673
  %v1905 = vpop.f32.mrb[0].mxu0
  %v1906 = vadd.f32 0.0, %v1905
  %v1907 = vpop.f32.mrb[0].mxu0
  %1908 = vmatprep.mubr.f32.mxu0 0.0
  %1909 = vmatmul.mubr.f32.gmra.mrb[0].mxu0 %v1676
  %v1910 = vpop.f32.mrb[0].mxu0
  %v1911 = vadd.f32 0.0, %v1910
  %v1912 = vpop.f32.mrb[0].mxu0
  %1913 = vmatprep.mubr.f32.mxu0 0.0
  %1914 = vmatmul.mubr.f32.gmra.mrb[0].mxu0 %v1679
  %v1915 = vpop.f32.mrb[0].mxu0
  %v1916 = vadd.f32 0.0, %v1915
  %v1917 = vpop.f32.mrb[0].mxu0
  %1918 = vmatprep.mubr.f32.mxu0 0.0
  %1919 = vmatmul.mubr.f32.gmra.mrb[0].mxu0 %v1682
  %v1920 = vpop.f32.mrb[0].mxu0
  %v1921 = vadd.f32 0.0, %v1920
  %v1922 = vpop.f32.mrb[0].mxu0
  %1923 = vmatprep.mubr.f32.mxu0 0.0
  %1924 = vmatmul.mubr.f32.gmra.mrb[0].mxu0 %v1685
  %v1925 = vpop.f32.mrb[0].mxu0
  %v1926 = vadd.f32 0.0, %v1925
  %v1927 = vpop.f32.mrb[0].mxu0
  %1928 = vmatprep.mubr.f32.mxu0 0.0
  %1929 = vmatmul.mubr.f32.gmra.mrb[0].mxu0 %v1688
  %v1930 = vpop.f32.mrb[0].mxu0
  %v1931 = vadd.f32 0.0, %v1930
  %v1932 = vpop.f32.mrb[0].mxu0
  %1933 = vmatprep.mubr.f32.mxu0 0.0
  %1934 = vmatmul.mubr.f32.gmra.mrb[0].mxu0 %v1691
  %v1935 = vpop.f32.mrb[0].mxu0
  %v1936 = vadd.f32 0.0, %v1935
  %v1937 = vpop.f32.mrb[0].mxu0
  %1938 = vmatprep.mubr.f32.mxu0 0.0
  %1939 = vmatmul.mubr.f32.gmra.mrb[0].mxu0 %v1694
  %v1940 = vpop.f32.mrb[0].mxu0
  %v1941 = vadd.f32 0.0, %v1940
  %v1942 = vpop.f32.mrb[0].mxu0
  %1943 = vmatprep.mubr.f32.mxu0 0.0
  %1944 = vmatmul.mubr.f32.gmra.mrb[0].mxu0 %v1697
  %v1945 = vpop.f32.mrb[0].mxu0
  %v1946 = vadd.f32 0.0, %v1945
  %v1947 = vpop.f32.mrb[0].mxu0
  %1948 = vmatprep.mubr.f32.mxu0 0.0
  %1949 = vmatmul.mubr.f32.gmra.mrb[0].mxu0 %v1700
  %v1950 = vpop.f32.mrb[0].mxu0
  %v1951 = vadd.f32 0.0, %v1950
  %v1952 = vpop.f32.mrb[0].mxu0
  %1953 = vmatprep.mubr.f32.mxu0 0.0
  %1954 = vmatmul.mubr.f32.gmra.mrb[0].mxu0 %v1703
  %v1955 = vpop.f32.mrb[0].mxu0
  %v1956 = vadd.f32 0.0, %v1955
  %v1957 = vpop.f32.mrb[0].mxu0
  %1958 = vmatprep.mubr.f32.mxu0 0.0
  %1959 = vmatmul.mubr.f32.gmra.mrb[0].mxu0 %v1706
  %v1960 = vpop.f32.mrb[0].mxu0
  %v1961 = vadd.f32 0.0, %v1960
  %v1962 = vpop.f32.mrb[0].mxu0
  %1963 = vmatprep.mubr.f32.mxu0 0.0
  %1964 = vmatmul.mubr.f32.gmra.mrb[0].mxu0 %v1709
  %v1965 = vpop.f32.mrb[0].mxu0
  %v1966 = vadd.f32 0.0, %v1965
  %v1967 = vpop.f32.mrb[0].mxu0
  %1968 = vmatprep.mubr.f32.mxu0 0.0
  %1969 = vmatmul.mubr.f32.gmra.mrb[0].mxu0 %v1712
  %v1970 = vpop.f32.mrb[0].mxu0
  %v1971 = vadd.f32 0.0, %v1970
  %v1972 = vpop.f32.mrb[0].mxu0
  %1973 = vmatprep.mubr.f32.mxu0 0.0
  %1974 = vmatmul.mubr.f32.gmra.mrb[0].mxu0 %v1715
  %v1975 = vpop.f32.mrb[0].mxu0
  %v1976 = vadd.f32 0.0, %v1975
  %v1977 = vpop.f32.mrb[0].mxu0
  %1978 = vmatprep.mubr.f32.mxu0 0.0
  %1979 = vmatmul.mubr.f32.gmra.mrb[0].mxu0 %v1718
  %v1980 = vpop.f32.mrb[0].mxu0
  %v1981 = vadd.f32 0.0, %v1980
  %v1982 = vpop.f32.mrb[0].mxu0
  %1983 = vmatprep.mubr.f32.mxu0 0.0
  %1984 = vmatmul.mubr.f32.gmra.mrb[0].mxu0 %v1721
  %v1985 = vpop.f32.mrb[0].mxu0
  %v1986 = vadd.f32 0.0, %v1985
  %v1987 = vpop.f32.mrb[0].mxu0
  %1988 = vmatprep.mubr.f32.mxu0 0.0
  %1989 = vmatmul.mubr.f32.gmra.mrb[0].mxu0 %v1724
  %v1990 = vpop.f32.mrb[0].mxu0
  %v1991 = vadd.f32 0.0, %v1990
  %v1992 = vpop.f32.mrb[0].mxu0
  %1993 = vmatprep.mubr.f32.mxu0 0.0
  %1994 = vmatmul.mubr.f32.gmra.mrb[0].mxu0 %v1727
  %v1995 = vpop.f32.mrb[0].mxu0
  %v1996 = vadd.f32 0.0, %v1995
  %v1997 = vpop.f32.mrb[0].mxu0
  %1998 = vmatprep.mubr.f32.mxu0 0.0
  %1999 = vmatmul.mubr.f32.gmra.mrb[0].mxu0 %v1730
  %v2000 = vpop.f32.mrb[0].mxu0
  %v2001 = vadd.f32 0.0, %v2000
  %v2002 = vpop.f32.mrb[0].mxu0
  %2003 = vmatprep.mubr.f32.mxu0 0.0
  %2004 = vmatmul.mubr.f32.gmra.mrb[0].mxu0 %v1733
  %v2005 = vpop.f32.mrb[0].mxu0
  %v2006 = vadd.f32 0.0, %v2005
  %v2007 = vpop.f32.mrb[0].mxu0
  %2008 = vmatprep.mubr.f32.mxu0 0.0
  %2009 = vmatmul.mubr.f32.gmra.mrb[0].mxu0 %v1736
  %v2010 = vpop.f32.mrb[0].mxu0
  %v2011 = vadd.f32 0.0, %v2010
  %v2012 = vpop.f32.mrb[0].mxu0
  %2013 = vmatprep.mubr.f32.mxu0 0.0
  %2014 = vmatmul.mubr.f32.gmra.mrb[0].mxu0 %v1739
  %v2015 = vpop.f32.mrb[0].mxu0
  %v2016 = vadd.f32 0.0, %v2015
  %v2017 = vpop.f32.mrb[0].mxu0
  %2018 = vmatprep.mubr.f32.mxu0 0.0
  %2019 = vmatmul.mubr.f32.gmra.mrb[0].mxu0 %v1742
  %v2020 = vpop.f32.mrb[0].mxu0
  %v2021 = vadd.f32 0.0, %v2020
  %v2022 = vpop.f32.mrb[0].mxu0
  %2023 = vmatprep.mubr.f32.mxu0 0.0
  %2024 = vmatmul.mubr.f32.gmra.mrb[0].mxu0 %v1745
  %v2025 = vpop.f32.mrb[0].mxu0
  %v2026 = vadd.f32 0.0, %v2025
  %v2027 = vpop.f32.mrb[0].mxu0
  %2028 = vmatprep.mubr.f32.mxu0 0.0
  %2029 = vmatmul.mubr.f32.gmra.mrb[0].mxu0 %v1748
  %v2030 = vpop.f32.mrb[0].mxu0
  %v2031 = vadd.f32 0.0, %v2030
  %v2032 = vpop.f32.mrb[0].mxu0
  %2033 = vmatprep.mubr.f32.mxu0 0.0
  %2034 = vmatmul.mubr.f32.gmra.mrb[0].mxu0 %v1751
  %v2035 = vpop.f32.mrb[0].mxu0
  %v2036 = vadd.f32 0.0, %v2035
  %v2037 = vpop.f32.mrb[0].mxu0
  %2038 = vmatprep.mubr.f32.mxu0 0.0
  %2039 = vmatmul.mubr.f32.gmra.mrb[0].mxu0 %v1754
  %v2040 = vpop.f32.mrb[0].mxu0
  %v2041 = vadd.f32 0.0, %v2040
  %v2042 = vpop.f32.mrb[0].mxu0
  %2043 = vmatprep.mubr.f32.mxu0 0.0
  %2044 = vmatmul.mubr.f32.gmra.mrb[0].mxu0 %v1757
  %v2045 = vpop.f32.mrb[0].mxu0
  %v2046 = vadd.f32 0.0, %v2045
  %v2047 = vpop.f32.mrb[0].mxu0
  %2048 = vmatprep.mubr.f32.mxu0 0.0
  %2049 = vmatmul.mubr.f32.gmra.mrb[0].mxu0 %v1760
  %v2050 = vpop.f32.mrb[0].mxu0
  %v2051 = vadd.f32 0.0, %v2050
  %v2052 = vpop.f32.mrb[0].mxu0
  %2053 = vmatprep.mubr.f32.mxu0 0.0
  %2054 = vmatmul.mubr.f32.gmra.mrb[0].mxu0 %v1763
  %v2055 = vpop.f32.mrb[0].mxu0
  %v2056 = vadd.f32 0.0, %v2055
  %v2057 = vpop.f32.mrb[0].mxu0
  %2058 = vmatprep.mubr.f32.mxu0 0.0
  %2059 = vmatmul.mubr.f32.gmra.mrb[0].mxu0 %v1766
  %v2060 = vpop.f32.mrb[0].mxu0
  %v2061 = vadd.f32 0.0, %v2060
  %v2062 = vpop.f32.mrb[0].mxu0
  %2063 = vmatprep.mubr.f32.mxu0 0.0
  %2064 = vmatmul.mubr.f32.gmra.mrb[0].mxu0 %v1769
  %v2065 = vpop.f32.mrb[0].mxu0
  %v2066 = vadd.f32 0.0, %v2065
  %v2067 = vpop.f32.mrb[0].mxu0
  %2068 = vmatprep.mubr.f32.mxu0 0.0
  %2069 = vmatmul.mubr.f32.gmra.mrb[0].mxu0 %v1772
  %v2070 = vpop.f32.mrb[0].mxu0
  %v2071 = vadd.f32 0.0, %v2070
  %v2072 = vpop.f32.mrb[0].mxu0
  %2073 = vmatprep.mubr.f32.mxu0 0.0
  %2074 = vmatmul.mubr.f32.gmra.mrb[0].mxu0 %v1775
  %v2075 = vpop.f32.mrb[0].mxu0
  %v2076 = vadd.f32 0.0, %v2075
  %v2077 = vpop.f32.mrb[0].mxu0
  %2078 = vmatprep.mubr.f32.mxu0 0.0
  %2079 = vmatmul.mubr.f32.gmra.mrb[0].mxu0 %v1778
  %v2080 = vpop.f32.mrb[0].mxu0
  %v2081 = vadd.f32 0.0, %v2080
  %v2082 = vpop.f32.mrb[0].mxu0
  %2083 = vmatprep.mubr.f32.mxu0 0.0
  %2084 = vmatmul.mubr.f32.gmra.mrb[0].mxu0 %v1781
  %v2085 = vpop.f32.mrb[0].mxu0
  %v2086 = vadd.f32 0.0, %v2085
  %v2087 = vpop.f32.mrb[0].mxu0
  %2088 = vmatprep.mubr.f32.mxu0 0.0
  %2089 = vmatmul.mubr.f32.gmra.mrb[0].mxu0 %v1784
  %v2090 = vpop.f32.mrb[0].mxu0
  %v2091 = vadd.f32 0.0, %v2090
  %v2092 = vpop.f32.mrb[0].mxu0
  %2093 = vmatprep.mubr.f32.mxu0 0.0
  %2094 = vmatmul.mubr.f32.gmra.mrb[0].mxu0 %v1787
  %v2095 = vpop.f32.mrb[0].mxu0
  %v2096 = vadd.f32 0.0, %v2095
  %v2097 = vpop.f32.mrb[0].mxu0
  %2098 = vdwg.mxu0
  %v2099 = vmax.f32 %v1349, %v1856
  %v2100 = vmax.f32 %v1354, %v1861
  %v2101 = vmax.f32 %v1359, %v1866
  %v2102 = vmax.f32 %v1364, %v1871
  %v2103 = vmax.f32 %v1369, %v1876
  %v2104 = vmax.f32 %v1374, %v1881
  %v2105 = vmax.f32 %v1379, %v1886
  %v2106 = vmax.f32 %v1384, %v1891
  %v2107 = vmax.f32 %v1389, %v1896
  %v2108 = vmax.f32 %v1394, %v1901
  %v2109 = vmax.f32 %v1399, %v1906
  %v2110 = vmax.f32 %v1404, %v1911
  %v2111 = vmax.f32 %v1409, %v1916
  %v2112 = vmax.f32 %v1414, %v1921
  %v2113 = vmax.f32 %v1419, %v1926
  %v2114 = vmax.f32 %v1424, %v1931
  %v2115 = vmax.f32 %v1429, %v1936
  %v2116 = vmax.f32 %v1434, %v1941
  %v2117 = vmax.f32 %v1439, %v1946
  %v2118 = vmax.f32 %v1444, %v1951
  %v2119 = vmax.f32 %v1449, %v1956
  %v2120 = vmax.f32 %v1454, %v1961
  %v2121 = vmax.f32 %v1459, %v1966
  %v2122 = vmax.f32 %v1464, %v1971
  %v2123 = vmax.f32 %v1469, %v1976
  %v2124 = vmax.f32 %v1474, %v1981
  %v2125 = vmax.f32 %v1479, %v1986
  %v2126 = vmax.f32 %v1484, %v1991
  %v2127 = vmax.f32 %v1489, %v1996
  %v2128 = vmax.f32 %v1494, %v2001
  %v2129 = vmax.f32 %v1499, %v2006
  %v2130 = vmax.f32 %v1504, %v2011
  %v2131 = vmax.f32 %v1509, %v2016
  %v2132 = vmax.f32 %v1514, %v2021
  %v2133 = vmax.f32 %v1519, %v2026
  %v2134 = vmax.f32 %v1524, %v2031
  %v2135 = vmax.f32 %v1529, %v2036
  %v2136 = vmax.f32 %v1534, %v2041
  %v2137 = vmax.f32 %v1539, %v2046
  %v2138 = vmax.f32 %v1544, %v2051
  %v2139 = vmax.f32 %v1549, %v2056
  %v2140 = vmax.f32 %v1554, %v2061
  %v2141 = vmax.f32 %v1559, %v2066
  %v2142 = vmax.f32 %v1564, %v2071
  %v2143 = vmax.f32 %v1569, %v2076
  %v2144 = vmax.f32 %v1574, %v2081
  %v2145 = vmax.f32 %v1579, %v2086
  %v2146 = vmax.f32 %v1584, %v2091
  %v2147 = vmax.f32 %v1589, %v2096
  %v2148 = vmax.f32 %v1036, %v2099
  %v2149 = vmax.f32 %v1037, %v2100
  %v2150 = vmax.f32 %v1038, %v2101
  %v2151 = vmax.f32 %v1039, %v2102
  %v2152 = vmax.f32 %v1040, %v2103
  %v2153 = vmax.f32 %v1041, %v2104
  %v2154 = vmax.f32 %v1042, %v2105
  %v2155 = vmax.f32 %v1043, %v2106
  %v2156 = vmax.f32 %v1044, %v2107
  %v2157 = vmax.f32 %v1045, %v2108
  %v2158 = vmax.f32 %v1046, %v2109
  %v2159 = vmax.f32 %v1047, %v2110
  %v2160 = vmax.f32 %v1048, %v2111
  %v2161 = vmax.f32 %v1049, %v2112
  %v2162 = vmax.f32 %v1050, %v2113
  %v2163 = vmax.f32 %v1051, %v2114
  %v2164 = vmax.f32 %v1052, %v2115
  %v2165 = vmax.f32 %v1053, %v2116
  %v2166 = vmax.f32 %v1054, %v2117
  %v2167 = vmax.f32 %v1055, %v2118
  %v2168 = vmax.f32 %v1056, %v2119
  %v2169 = vmax.f32 %v1057, %v2120
  %v2170 = vmax.f32 %v1058, %v2121
  %v2171 = vmax.f32 %v1059, %v2122
  %v2172 = vmax.f32 %v1060, %v2123
  %v2173 = vmax.f32 %v1061, %v2124
  %v2174 = vmax.f32 %v1062, %v2125
  %v2175 = vmax.f32 %v1063, %v2126
  %v2176 = vmax.f32 %v1064, %v2127
  %v2177 = vmax.f32 %v1065, %v2128
  %v2178 = vmax.f32 %v1066, %v2129
  %v2179 = vmax.f32 %v1067, %v2130
  %v2180 = vmax.f32 %v1068, %v2131
  %v2181 = vmax.f32 %v1069, %v2132
  %v2182 = vmax.f32 %v1070, %v2133
  %v2183 = vmax.f32 %v1071, %v2134
  %v2184 = vmax.f32 %v1072, %v2135
  %v2185 = vmax.f32 %v1073, %v2136
  %v2186 = vmax.f32 %v1074, %v2137
  %v2187 = vmax.f32 %v1075, %v2138
  %v2188 = vmax.f32 %v1076, %v2139
  %v2189 = vmax.f32 %v1077, %v2140
  %v2190 = vmax.f32 %v1078, %v2141
  %v2191 = vmax.f32 %v1079, %v2142
  %v2192 = vmax.f32 %v1080, %v2143
  %v2193 = vmax.f32 %v1081, %v2144
  %v2194 = vmax.f32 %v1082, %v2145
  %v2195 = vmax.f32 %v1083, %v2146
  %v2196 = vmax.f32 %v1084, %v2147
  %v2197 = vld [vmem:[%s2] sm:$0x1]
  %v2199 = vlaneseq
  %v2200 = vshrl.u32 %v2199, 7
  %v2201 = vsub.s32 0, %v2200
  %v2202 = vrot.slane %v2197, %v2201
  %v2204 = vadd.f32 %v2148, %v2202
  %v2205 = vadd.f32 %v2149, %v2202
  %v2206 = vadd.f32 %v2150, %v2202
  %v2207 = vadd.f32 %v2151, %v2202
  %v2208 = vadd.f32 %v2152, %v2202
  %v2209 = vadd.f32 %v2153, %v2202
  %v2210 = vadd.f32 %v2154, %v2202
  %v2211 = vadd.f32 %v2155, %v2202
  %v2212 = vadd.f32 %v2156, %v2202
  %v2213 = vadd.f32 %v2157, %v2202
  %v2214 = vadd.f32 %v2158, %v2202
  %v2215 = vadd.f32 %v2159, %v2202
  %v2216 = vadd.f32 %v2160, %v2202
  %v2217 = vadd.f32 %v2161, %v2202
  %v2218 = vadd.f32 %v2162, %v2202
  %v2219 = vadd.f32 %v2163, %v2202
  %v2220 = vadd.f32 %v2164, %v2202
  %v2221 = vadd.f32 %v2165, %v2202
  %v2222 = vadd.f32 %v2166, %v2202
  %v2223 = vadd.f32 %v2167, %v2202
  %v2224 = vadd.f32 %v2168, %v2202
  %v2225 = vadd.f32 %v2169, %v2202
  %v2226 = vadd.f32 %v2170, %v2202
  %v2227 = vadd.f32 %v2171, %v2202
  %v2228 = vadd.f32 %v2172, %v2202
  %v2229 = vadd.f32 %v2173, %v2202
  %v2230 = vadd.f32 %v2174, %v2202
  %v2231 = vadd.f32 %v2175, %v2202
  %v2232 = vadd.f32 %v2176, %v2202
  %v2233 = vadd.f32 %v2177, %v2202
  %v2234 = vadd.f32 %v2178, %v2202
  %v2235 = vadd.f32 %v2179, %v2202
  %v2236 = vadd.f32 %v2180, %v2202
  %v2237 = vadd.f32 %v2181, %v2202
  %v2238 = vadd.f32 %v2182, %v2202
  %v2239 = vadd.f32 %v2183, %v2202
  %v2240 = vadd.f32 %v2184, %v2202
  %v2241 = vadd.f32 %v2185, %v2202
  %v2242 = vadd.f32 %v2186, %v2202
  %v2243 = vadd.f32 %v2187, %v2202
  %v2244 = vadd.f32 %v2188, %v2202
  %v2245 = vadd.f32 %v2189, %v2202
  %v2246 = vadd.f32 %v2190, %v2202
  %v2247 = vadd.f32 %v2191, %v2202
  %v2248 = vadd.f32 %v2192, %v2202
  %v2249 = vadd.f32 %v2193, %v2202
  %v2250 = vadd.f32 %v2194, %v2202
  %v2251 = vadd.f32 %v2195, %v2202
  %v2252 = vadd.f32 %v2196, %v2202
  %v2253 = vmax.f32 %v2204, 0.0
  %v2254 = vmax.f32 %v2205, 0.0
  %v2255 = vmax.f32 %v2206, 0.0
  %v2256 = vmax.f32 %v2207, 0.0
  %v2257 = vmax.f32 %v2208, 0.0
  %v2258 = vmax.f32 %v2209, 0.0
  %v2259 = vmax.f32 %v2210, 0.0
  %v2260 = vmax.f32 %v2211, 0.0
  %v2261 = vmax.f32 %v2212, 0.0
  %v2262 = vmax.f32 %v2213, 0.0
  %v2263 = vmax.f32 %v2214, 0.0
  %v2264 = vmax.f32 %v2215, 0.0
  %v2265 = vmax.f32 %v2216, 0.0
  %v2266 = vmax.f32 %v2217, 0.0
  %v2267 = vmax.f32 %v2218, 0.0
  %v2268 = vmax.f32 %v2219, 0.0
  %v2269 = vmax.f32 %v2220, 0.0
  %v2270 = vmax.f32 %v2221, 0.0
  %v2271 = vmax.f32 %v2222, 0.0
  %v2272 = vmax.f32 %v2223, 0.0
  %v2273 = vmax.f32 %v2224, 0.0
  %v2274 = vmax.f32 %v2225, 0.0
  %v2275 = vmax.f32 %v2226, 0.0
  %v2276 = vmax.f32 %v2227, 0.0
  %v2277 = vmax.f32 %v2228, 0.0
  %v2278 = vmax.f32 %v2229, 0.0
  %v2279 = vmax.f32 %v2230, 0.0
  %v2280 = vmax.f32 %v2231, 0.0
  %v2281 = vmax.f32 %v2232, 0.0
  %v2282 = vmax.f32 %v2233, 0.0
  %v2283 = vmax.f32 %v2234, 0.0
  %v2284 = vmax.f32 %v2235, 0.0
  %v2285 = vmax.f32 %v2236, 0.0
  %v2286 = vmax.f32 %v2237, 0.0
  %v2287 = vmax.f32 %v2238, 0.0
  %v2288 = vmax.f32 %v2239, 0.0
  %v2289 = vmax.f32 %v2240, 0.0
  %v2290 = vmax.f32 %v2241, 0.0
  %v2291 = vmax.f32 %v2242, 0.0
  %v2292 = vmax.f32 %v2243, 0.0
  %v2293 = vmax.f32 %v2244, 0.0
  %v2294 = vmax.f32 %v2245, 0.0
  %v2295 = vmax.f32 %v2246, 0.0
  %v2296 = vmax.f32 %v2247, 0.0
  %v2297 = vmax.f32 %v2248, 0.0
  %v2298 = vmax.f32 %v2249, 0.0
  %v2299 = vmax.f32 %v2250, 0.0
  %v2300 = vmax.f32 %v2251, 0.0
  %v2301 = vmax.f32 %v2252, 0.0
  %vm2302 = vcmask 48128
  %2303 = vst.msk [vmem:[%s3] sm:$0xff] %vm2302, %v2253
  %2304 = vst.msk [vmem:[%s3 + $0x8] sm:$0xff] %vm2302, %v2254
  %2305 = vst.msk [vmem:[%s3 + $0x10] sm:$0xff] %vm2302, %v2255
  %2306 = vst.msk [vmem:[%s3 + $0x18] sm:$0xff] %vm2302, %v2256
  %2307 = vst.msk [vmem:[%s3 + $0x20] sm:$0xff] %vm2302, %v2257
  %2308 = vst.msk [vmem:[%s3 + $0x28] sm:$0xff] %vm2302, %v2258
  %2309 = vst.msk [vmem:[%s3 + $0x30] sm:$0xff] %vm2302, %v2259
  %2310 = vst.msk [vmem:[%s3 + $0x38] sm:$0xff] %vm2302, %v2260
  %2311 = vst.msk [vmem:[%s3 + $0x40] sm:$0xff] %vm2302, %v2261
  %2312 = vst.msk [vmem:[%s3 + $0x48] sm:$0xff] %vm2302, %v2262
  %2313 = vst.msk [vmem:[%s3 + $0x50] sm:$0xff] %vm2302, %v2263
  %2314 = vst.msk [vmem:[%s3 + $0x58] sm:$0xff] %vm2302, %v2264
  %2315 = vst.msk [vmem:[%s3 + $0x60] sm:$0xff] %vm2302, %v2265
  %2316 = vst.msk [vmem:[%s3 + $0x68] sm:$0xff] %vm2302, %v2266
  %2317 = vst.msk [vmem:[%s3 + $0x70] sm:$0xff] %vm2302, %v2267
  %2318 = vst.msk [vmem:[%s3 + $0x78] sm:$0xff] %vm2302, %v2268
  %2319 = vst.msk [vmem:[%s3 + $0x80] sm:$0xff] %vm2302, %v2269
  %2320 = vst.msk [vmem:[%s3 + $0x88] sm:$0xff] %vm2302, %v2270
  %2321 = vst.msk [vmem:[%s3 + $0x90] sm:$0xff] %vm2302, %v2271
  %2322 = vst.msk [vmem:[%s3 + $0x98] sm:$0xff] %vm2302, %v2272
  %2323 = vst.msk [vmem:[%s3 + $0xa0] sm:$0xff] %vm2302, %v2273
  %2324 = vst.msk [vmem:[%s3 + $0xa8] sm:$0xff] %vm2302, %v2274
  %2325 = vst.msk [vmem:[%s3 + $0xb0] sm:$0xff] %vm2302, %v2275
  %2326 = vst.msk [vmem:[%s3 + $0xb8] sm:$0xff] %vm2302, %v2276
  %2327 = vst.msk [vmem:[%s3 + $0xc0] sm:$0xff] %vm2302, %v2277
  %2328 = vst.msk [vmem:[%s3 + $0xc8] sm:$0xff] %vm2302, %v2278
  %2329 = vst.msk [vmem:[%s3 + $0xd0] sm:$0xff] %vm2302, %v2279
  %2330 = vst.msk [vmem:[%s3 + $0xd8] sm:$0xff] %vm2302, %v2280
  %2331 = vst.msk [vmem:[%s3 + $0xe0] sm:$0xff] %vm2302, %v2281
  %2332 = vst.msk [vmem:[%s3 + $0xe8] sm:$0xff] %vm2302, %v2282
  %2333 = vst.msk [vmem:[%s3 + $0xf0] sm:$0xff] %vm2302, %v2283
  %2334 = vst.msk [vmem:[%s3 + $0xf8] sm:$0xff] %vm2302, %v2284
  %2335 = vst.msk [vmem:[%s3 + $0x100] sm:$0xff] %vm2302, %v2285
  %2336 = vst.msk [vmem:[%s3 + $0x108] sm:$0xff] %vm2302, %v2286
  %2337 = vst.msk [vmem:[%s3 + $0x110] sm:$0xff] %vm2302, %v2287
  %2338 = vst.msk [vmem:[%s3 + $0x118] sm:$0xff] %vm2302, %v2288
  %2339 = vst.msk [vmem:[%s3 + $0x120] sm:$0xff] %vm2302, %v2289
  %2340 = vst.msk [vmem:[%s3 + $0x128] sm:$0xff] %vm2302, %v2290
  %2341 = vst.msk [vmem:[%s3 + $0x130] sm:$0xff] %vm2302, %v2291
  %2342 = vst.msk [vmem:[%s3 + $0x138] sm:$0xff] %vm2302, %v2292
  %2343 = vst.msk [vmem:[%s3 + $0x140] sm:$0xff] %vm2302, %v2293
  %2344 = vst.msk [vmem:[%s3 + $0x148] sm:$0xff] %vm2302, %v2294
  %2345 = vst.msk [vmem:[%s3 + $0x150] sm:$0xff] %vm2302, %v2295
  %2346 = vst.msk [vmem:[%s3 + $0x158] sm:$0xff] %vm2302, %v2296
  %2347 = vst.msk [vmem:[%s3 + $0x160] sm:$0xff] %vm2302, %v2297
  %2348 = vst.msk [vmem:[%s3 + $0x168] sm:$0xff] %vm2302, %v2298
  %2349 = vst.msk [vmem:[%s3 + $0x170] sm:$0xff] %vm2302, %v2299
  %2350 = vst.msk [vmem:[%s3 + $0x178] sm:$0xff] %vm2302, %v2300
  %2351 = vst.msk [vmem:[%s3 + $0x180] sm:$0xff] %vm2302, %v2301
  // Predicated region
  $region14: #{net_forward.3} parent=0 // pred_check
    _
  $region15: #{net_forward.3} parent=0 // pred_check_branch
    %2353 = sbr.rel (0) target = $region17
  $region16: #{net_forward.3} parent=0 // pred_region
    _
  $region17: #{net_forward.3} parent=0 // pred_fallthru
    _
  // Predicated region
  $region18: #{net_forward.3} parent=0 // pred_check
    _
  $region19: #{net_forward.3} parent=0 // pred_check_branch
    %2355 = sbr.rel (0) target = $region21
  $region20: #{net_forward.3} parent=0 // pred_region
    _
  $region21: #{net_forward.3} parent=0 // pred_fallthru
    _

// kernel: net_forward.4
$region0: #{net_forward.4}
  #allocation0 [shape = 'u32[]', space=smem, size = 0x4, offset = 0x4, fixed_abs, tag = 'smem constant byte address 0x4 - core index']
  #allocation1 [shape = 'u32[144,128]{1,0:T(1,128)}', space=vmem, size = 0x12000, scoped, tag = 'internal scratch']
  %s0 = inlined_call_operand.vmem [shape: f32[4,50,150], index: 0, kind: input, shape index: {}]
  %s1 = inlined_call_operand.vmem [shape: f32[150,16], index: 1, kind: input, shape index: {}]
  %s2 = inlined_call_operand.vmem [shape: f32[1,16], index: 2, kind: input, shape index: {}]
  %s3 = inlined_call_operand.vmem [shape: f32[50,16], index: 3, kind: output, shape index: {}]
  %s4 = sld [smem:[#allocation0]]
  $region22: #{net_forward.4} parent=0
    _
  %s6 = ssub.s32 1, %s4
  %s7 = scalar_select 0, %s6, %s4
  // Predicated region
  $region2: #{net_forward.4} parent=0 // pred_check
    _
  $region3: #{net_forward.4} parent=0 // pred_check_branch
    %9 = sbr.rel (0) target = $region5
  $region4: #{net_forward.4} parent=0 // pred_region
    _
  $region5: #{net_forward.4} parent=0 // pred_fallthru
    _
  // Predicated region
  $region6: #{net_forward.4} parent=0 // pred_check
    _
  $region7: #{net_forward.4} parent=0 // pred_check_branch
    %11 = sbr.rel (0) target = $region9
  $region8: #{net_forward.4} parent=0 // pred_region
    _
  $region9: #{net_forward.4} parent=0 // pred_fallthru
    _
  // Predicated region
  $region10: #{net_forward.4} parent=0 // pred_check
    _
  $region11: #{net_forward.4} parent=0 // pred_check_branch
    %13 = sbr.rel (0) target = $region13
  $region12: #{net_forward.4} parent=0 // pred_region
    _
  $region13: #{net_forward.4} parent=0 // pred_fallthru
    _
  %v14 = vld [vmem:[%s1] sm:$0xff]
  %v15 = vld [vmem:[%s1 + $0x8] sm:$0xff]
  %v16 = vld [vmem:[%s1 + $0x10] sm:$0xff]
  %v17 = vld [vmem:[%s1 + $0x18] sm:$0xff]
  %v18 = vld [vmem:[%s1 + $0x20] sm:$0xff]
  %v19 = vld [vmem:[%s1 + $0x28] sm:$0xff]
  %v20 = vld [vmem:[%s1 + $0x30] sm:$0xff]
  %v21 = vld [vmem:[%s1 + $0x38] sm:$0xff]
  %v22 = vld [vmem:[%s1 + $0x40] sm:$0xff]
  %v23 = vld [vmem:[%s1 + $0x48] sm:$0xff]
  %v24 = vld [vmem:[%s1 + $0x50] sm:$0xff]
  %v25 = vld [vmem:[%s1 + $0x58] sm:$0xff]
  %v26 = vld [vmem:[%s1 + $0x60] sm:$0xff]
  %v27 = vld [vmem:[%s1 + $0x68] sm:$0xff]
  %v28 = vld [vmem:[%s1 + $0x70] sm:$0xff]
  %v29 = vld [vmem:[%s1 + $0x78] sm:$0xff]
  %v30 = vld [vmem:[%s1 + $0x80] sm:$0xff]
  %v31 = vld [vmem:[%s1 + $0x88] sm:$0xff]
  %v32 = vld [vmem:[%s1 + $0x90] sm:$0x3f]
  %v33 = vld [vmem:[%s0] sm:$0xff]
  %v34 = vld [vmem:[%s0 + $0x8] sm:$0xff]
  %v35 = vld [vmem:[%s0 + $0x10] sm:$0xff]
  %v36 = vld [vmem:[%s0 + $0x18] sm:$0xff]
  %v37 = vld [vmem:[%s0 + $0x20] sm:$0xff]
  %v38 = vld [vmem:[%s0 + $0x28] sm:$0xff]
  %v39 = vld [vmem:[%s0 + $0x30] sm:$0xff]
  %v40 = vld [vmem:[%s0 + $0x38] sm:$0xff]
  %v41 = vld [vmem:[%s0 + $0x40] sm:$0xff]
  %v42 = vld [vmem:[%s0 + $0x48] sm:$0xff]
  %v43 = vld [vmem:[%s0 + $0x50] sm:$0xff]
  %v44 = vld [vmem:[%s0 + $0x58] sm:$0xff]
  %v45 = vld [vmem:[%s0 + $0x60] sm:$0x3]
  %v46 = vld [vmem:[%s0 + $0x68] sm:$0x3]
  %vm47 = vcmask 179200
  %v49 = vsel %vm47, %v34, 0
  %v52 = vsel %vm47, %v36, 0
  %v55 = vsel %vm47, %v38, 0
  %v58 = vsel %vm47, %v40, 0
  %v61 = vsel %vm47, %v42, 0
  %v64 = vsel %vm47, %v44, 0
  %v67 = vsel %vm47, %v46, 0
  %vm69 = vcmask 1045504
  %v71 = vsel %vm69, %v32, 0
  %73 = vmatprep.subr.mxu0 0.0
  %74 = vmatpush1.msra.mxu0 %v14
  %75 = vmatprep.subr.mxu0 0.0
  %76 = vmatpush1.msra.mxu0 %v15
  %77 = vmatprep.subr.mxu0 0.0
  %78 = vmatpush1.msra.mxu0 %v16
  %79 = vmatprep.subr.mxu0 0.0
  %80 = vmatpush1.msra.mxu0 %v17
  %81 = vmatprep.subr.mxu0 0.0
  %82 = vmatpush1.msra.mxu0 %v18
  %83 = vmatprep.subr.mxu0 0.0
  %84 = vmatpush1.msra.mxu0 %v19
  %85 = vmatprep.subr.mxu0 0.0
  %86 = vmatpush1.msra.mxu0 %v20
  %87 = vmatprep.subr.mxu0 0.0
  %88 = vmatpush1.msra.mxu0 %v21
  %89 = vmatprep.subr.mxu0 0.0
  %90 = vmatpush1.msra.mxu0 %v22
  %91 = vmatprep.subr.mxu0 0.0
  %92 = vmatpush1.msra.mxu0 %v23
  %93 = vmatprep.subr.mxu0 0.0
  %94 = vmatpush1.msra.mxu0 %v24
  %95 = vmatprep.subr.mxu0 0.0
  %96 = vmatpush1.msra.mxu0 %v25
  %97 = vmatprep.subr.mxu0 0.0
  %98 = vmatpush1.msra.mxu0 %v26
  %99 = vmatprep.subr.mxu0 0.0
  %100 = vmatpush1.msra.mxu0 %v27
  %101 = vmatprep.subr.mxu0 0.0
  %102 = vmatpush1.msra.mxu0 %v28
  %103 = vmatprep.subr.mxu0 0.0
  %104 = vmatpush1.msra.mxu0 %v29
  %105 = vmatprep.subr.mxu0 0.0
  %106 = vmatpush1.msra.mxu0 %v30
  %107 = vmatprep.subr.mxu0 0.0
  %108 = vmatpush1.msra.mxu0 %v31
  %109 = vmatprep.subr.mxu0 0.0
  %110 = vmatpush1.msra.mxu0 %v71
  %111 = vmatprep.subr.mxu0 0.0
  %112 = vmatpush1.msra.mxu0 0.0
  %113 = vmatprep.subr.mxu0 0.0
  %114 = vmatpush1.msra.mxu0 0.0
  %115 = vmatprep.subr.mxu0 0.0
  %116 = vmatpush1.msra.mxu0 0.0
  %117 = vmatprep.subr.mxu0 0.0
  %118 = vmatpush1.msra.mxu0 0.0
  %119 = vmatprep.subr.mxu0 0.0
  %120 = vmatpush1.msra.mxu0 0.0
  %121 = vmatprep.subr.mxu0 0.0
  %122 = vmatpush1.msra.mxu0 0.0
  %123 = vmatprep.subr.mxu0 0.0
  %124 = vmatpush1.msra.mxu0 0.0
  %125 = vmatprep.subr.mxu0 0.0
  %126 = vmatpush1.msra.mxu0 0.0
  %127 = vmatprep.subr.mxu0 0.0
  %128 = vmatpush1.msra.mxu0 0.0
  %129 = vmatprep.subr.mxu0 0.0
  %130 = vmatpush1.msra.mxu0 0.0
  %131 = vmatprep.subr.mxu0 0.0
  %132 = vmatpush1.msra.mxu0 0.0
  %133 = vmatprep.subr.mxu0 0.0
  %134 = vmatpush1.msra.mxu0 0.0
  %135 = vmatprep.subr.mxu0 0.0
  %136 = vmatpush1.msra.mxu0 0.0
  %137 = vmatprep.mubr.f32.mxu0 %v49
  %138 = vmatmul.mubr.f32.gmra.mrb[0].mxu0 %v33
  %v139 = vpop.f32.mrb[0].mxu0
  %v140 = vadd.f32 0.0, %v139
  %v141 = vpop.f32.mrb[0].mxu0
  %142 = vmatprep.mubr.f32.mxu0 %v52
  %143 = vmatmul.mubr.f32.gmra.mrb[0].mxu0 %v35
  %v144 = vpop.f32.mrb[0].mxu0
  %v145 = vadd.f32 0.0, %v144
  %v146 = vpop.f32.mrb[0].mxu0
  %147 = vmatprep.mubr.f32.mxu0 %v55
  %148 = vmatmul.mubr.f32.gmra.mrb[0].mxu0 %v37
  %v149 = vpop.f32.mrb[0].mxu0
  %v150 = vadd.f32 0.0, %v149
  %v151 = vpop.f32.mrb[0].mxu0
  %152 = vmatprep.mubr.f32.mxu0 %v58
  %153 = vmatmul.mubr.f32.gmra.mrb[0].mxu0 %v39
  %v154 = vpop.f32.mrb[0].mxu0
  %v155 = vadd.f32 0.0, %v154
  %v156 = vpop.f32.mrb[0].mxu0
  %157 = vmatprep.mubr.f32.mxu0 %v61
  %158 = vmatmul.mubr.f32.gmra.mrb[0].mxu0 %v41
  %v159 = vpop.f32.mrb[0].mxu0
  %v160 = vadd.f32 0.0, %v159
  %v161 = vpop.f32.mrb[0].mxu0
  %162 = vmatprep.mubr.f32.mxu0 %v64
  %163 = vmatmul.mubr.f32.gmra.mrb[0].mxu0 %v43
  %v164 = vpop.f32.mrb[0].mxu0
  %v165 = vadd.f32 0.0, %v164
  %v166 = vpop.f32.mrb[0].mxu0
  %167 = vmatprep.mubr.f32.mxu0 %v67
  %168 = vmatmul.mubr.f32.gmra.mrb[0].mxu0 %v45
  %v169 = vpop.f32.mrb[0].mxu0
  %v170 = vadd.f32 0.0, %v169
  %v171 = vpop.f32.mrb[0].mxu0
  %172 = vdwg.mxu0
  %s173 = scalar_lea.vmem %s0, 112
  %v174 = vld [vmem:[%s173] sm:$0xff]
  %v175 = vld [vmem:[%s173 + $0x8] sm:$0xff]
  %v176 = vld [vmem:[%s173 + $0x10] sm:$0xff]
  %v177 = vld [vmem:[%s173 + $0x18] sm:$0xff]
  %v178 = vld [vmem:[%s173 + $0x20] sm:$0xff]
  %v179 = vld [vmem:[%s173 + $0x28] sm:$0xff]
  %v180 = vld [vmem:[%s173 + $0x30] sm:$0xff]
  %v181 = vld [vmem:[%s173 + $0x38] sm:$0xff]
  %v182 = vld [vmem:[%s173 + $0x40] sm:$0xff]
  %v183 = vld [vmem:[%s173 + $0x48] sm:$0xff]
  %v184 = vld [vmem:[%s173 + $0x50] sm:$0xff]
  %v185 = vld [vmem:[%s173 + $0x58] sm:$0xff]
  %v186 = vld [vmem:[%s173 + $0x60] sm:$0x3]
  %v187 = vld [vmem:[%s173 + $0x68] sm:$0x3]
  %v189 = vsel %vm47, %v175, 0
  %v192 = vsel %vm47, %v177, 0
  %v195 = vsel %vm47, %v179, 0
  %v198 = vsel %vm47, %v181, 0
  %v201 = vsel %vm47, %v183, 0
  %v204 = vsel %vm47, %v185, 0
  %v207 = vsel %vm47, %v187, 0
  %209 = vmatprep.subr.mxu0 0.0
  %210 = vmatpush1.msra.mxu0 %v14
  %211 = vmatprep.subr.mxu0 0.0
  %212 = vmatpush1.msra.mxu0 %v15
  %213 = vmatprep.subr.mxu0 0.0
  %214 = vmatpush1.msra.mxu0 %v16
  %215 = vmatprep.subr.mxu0 0.0
  %216 = vmatpush1.msra.mxu0 %v17
  %217 = vmatprep.subr.mxu0 0.0
  %218 = vmatpush1.msra.mxu0 %v18
  %219 = vmatprep.subr.mxu0 0.0
  %220 = vmatpush1.msra.mxu0 %v19
  %221 = vmatprep.subr.mxu0 0.0
  %222 = vmatpush1.msra.mxu0 %v20
  %223 = vmatprep.subr.mxu0 0.0
  %224 = vmatpush1.msra.mxu0 %v21
  %225 = vmatprep.subr.mxu0 0.0
  %226 = vmatpush1.msra.mxu0 %v22
  %227 = vmatprep.subr.mxu0 0.0
  %228 = vmatpush1.msra.mxu0 %v23
  %229 = vmatprep.subr.mxu0 0.0
  %230 = vmatpush1.msra.mxu0 %v24
  %231 = vmatprep.subr.mxu0 0.0
  %232 = vmatpush1.msra.mxu0 %v25
  %233 = vmatprep.subr.mxu0 0.0
  %234 = vmatpush1.msra.mxu0 %v26
  %235 = vmatprep.subr.mxu0 0.0
  %236 = vmatpush1.msra.mxu0 %v27
  %237 = vmatprep.subr.mxu0 0.0
  %238 = vmatpush1.msra.mxu0 %v28
  %239 = vmatprep.subr.mxu0 0.0
  %240 = vmatpush1.msra.mxu0 %v29
  %241 = vmatprep.subr.mxu0 0.0
  %242 = vmatpush1.msra.mxu0 %v30
  %243 = vmatprep.subr.mxu0 0.0
  %244 = vmatpush1.msra.mxu0 %v31
  %245 = vmatprep.subr.mxu0 0.0
  %246 = vmatpush1.msra.mxu0 %v71
  %247 = vmatprep.subr.mxu0 0.0
  %248 = vmatpush1.msra.mxu0 0.0
  %249 = vmatprep.subr.mxu0 0.0
  %250 = vmatpush1.msra.mxu0 0.0
  %251 = vmatprep.subr.mxu0 0.0
  %252 = vmatpush1.msra.mxu0 0.0
  %253 = vmatprep.subr.mxu0 0.0
  %254 = vmatpush1.msra.mxu0 0.0
  %255 = vmatprep.subr.mxu0 0.0
  %256 = vmatpush1.msra.mxu0 0.0
  %257 = vmatprep.subr.mxu0 0.0
  %258 = vmatpush1.msra.mxu0 0.0
  %259 = vmatprep.subr.mxu0 0.0
  %260 = vmatpush1.msra.mxu0 0.0
  %261 = vmatprep.subr.mxu0 0.0
  %262 = vmatpush1.msra.mxu0 0.0
  %263 = vmatprep.subr.mxu0 0.0
  %264 = vmatpush1.msra.mxu0 0.0
  %265 = vmatprep.subr.mxu0 0.0
  %266 = vmatpush1.msra.mxu0 0.0
  %267 = vmatprep.subr.mxu0 0.0
  %268 = vmatpush1.msra.mxu0 0.0
  %269 = vmatprep.subr.mxu0 0.0
  %270 = vmatpush1.msra.mxu0 0.0
  %271 = vmatprep.subr.mxu0 0.0
  %272 = vmatpush1.msra.mxu0 0.0
  %273 = vmatprep.mubr.f32.mxu0 %v189
  %274 = vmatmul.mubr.f32.gmra.mrb[0].mxu0 %v174
  %v275 = vpop.f32.mrb[0].mxu0
  %v276 = vadd.f32 0.0, %v275
  %v277 = vpop.f32.mrb[0].mxu0
  %278 = vmatprep.mubr.f32.mxu0 %v192
  %279 = vmatmul.mubr.f32.gmra.mrb[0].mxu0 %v176
  %v280 = vpop.f32.mrb[0].mxu0
  %v281 = vadd.f32 0.0, %v280
  %v282 = vpop.f32.mrb[0].mxu0
  %283 = vmatprep.mubr.f32.mxu0 %v195
  %284 = vmatmul.mubr.f32.gmra.mrb[0].mxu0 %v178
  %v285 = vpop.f32.mrb[0].mxu0
  %v286 = vadd.f32 0.0, %v285
  %v287 = vpop.f32.mrb[0].mxu0
  %288 = vmatprep.mubr.f32.mxu0 %v198
  %289 = vmatmul.mubr.f32.gmra.mrb[0].mxu0 %v180
  %v290 = vpop.f32.mrb[0].mxu0
  %v291 = vadd.f32 0.0, %v290
  %v292 = vpop.f32.mrb[0].mxu0
  %293 = vmatprep.mubr.f32.mxu0 %v201
  %294 = vmatmul.mubr.f32.gmra.mrb[0].mxu0 %v182
  %v295 = vpop.f32.mrb[0].mxu0
  %v296 = vadd.f32 0.0, %v295
  %v297 = vpop.f32.mrb[0].mxu0
  %298 = vmatprep.mubr.f32.mxu0 %v204
  %299 = vmatmul.mubr.f32.gmra.mrb[0].mxu0 %v184
  %v300 = vpop.f32.mrb[0].mxu0
  %v301 = vadd.f32 0.0, %v300
  %v302 = vpop.f32.mrb[0].mxu0
  %303 = vmatprep.mubr.f32.mxu0 %v207
  %304 = vmatmul.mubr.f32.gmra.mrb[0].mxu0 %v186
  %v305 = vpop.f32.mrb[0].mxu0
  %v306 = vadd.f32 0.0, %v305
  %v307 = vpop.f32.mrb[0].mxu0
  %308 = vdwg.mxu0
  %v309 = vmax.f32 %v140, %v276
  %v310 = vmax.f32 %v145, %v281
  %v311 = vmax.f32 %v150, %v286
  %v312 = vmax.f32 %v155, %v291
  %v313 = vmax.f32 %v160, %v296
  %v314 = vmax.f32 %v165, %v301
  %v315 = vmax.f32 %v170, %v306
  %s316 = scalar_lea.vmem %s0, 224
  %v317 = vld [vmem:[%s316] sm:$0xff]
  %v318 = vld [vmem:[%s316 + $0x8] sm:$0xff]
  %v319 = vld [vmem:[%s316 + $0x10] sm:$0xff]
  %v320 = vld [vmem:[%s316 + $0x18] sm:$0xff]
  %v321 = vld [vmem:[%s316 + $0x20] sm:$0xff]
  %v322 = vld [vmem:[%s316 + $0x28] sm:$0xff]
  %v323 = vld [vmem:[%s316 + $0x30] sm:$0xff]
  %v324 = vld [vmem:[%s316 + $0x38] sm:$0xff]
  %v325 = vld [vmem:[%s316 + $0x40] sm:$0xff]
  %v326 = vld [vmem:[%s316 + $0x48] sm:$0xff]
  %v327 = vld [vmem:[%s316 + $0x50] sm:$0xff]
  %v328 = vld [vmem:[%s316 + $0x58] sm:$0xff]
  %v329 = vld [vmem:[%s316 + $0x60] sm:$0x3]
  %v330 = vld [vmem:[%s316 + $0x68] sm:$0x3]
  %v332 = vsel %vm47, %v318, 0
  %v335 = vsel %vm47, %v320, 0
  %v338 = vsel %vm47, %v322, 0
  %v341 = vsel %vm47, %v324, 0
  %v344 = vsel %vm47, %v326, 0
  %v347 = vsel %vm47, %v328, 0
  %v350 = vsel %vm47, %v330, 0
  %352 = vmatprep.subr.mxu0 0.0
  %353 = vmatpush1.msra.mxu0 %v14
  %354 = vmatprep.subr.mxu0 0.0
  %355 = vmatpush1.msra.mxu0 %v15
  %356 = vmatprep.subr.mxu0 0.0
  %357 = vmatpush1.msra.mxu0 %v16
  %358 = vmatprep.subr.mxu0 0.0
  %359 = vmatpush1.msra.mxu0 %v17
  %360 = vmatprep.subr.mxu0 0.0
  %361 = vmatpush1.msra.mxu0 %v18
  %362 = vmatprep.subr.mxu0 0.0
  %363 = vmatpush1.msra.mxu0 %v19
  %364 = vmatprep.subr.mxu0 0.0
  %365 = vmatpush1.msra.mxu0 %v20
  %366 = vmatprep.subr.mxu0 0.0
  %367 = vmatpush1.msra.mxu0 %v21
  %368 = vmatprep.subr.mxu0 0.0
  %369 = vmatpush1.msra.mxu0 %v22
  %370 = vmatprep.subr.mxu0 0.0
  %371 = vmatpush1.msra.mxu0 %v23
  %372 = vmatprep.subr.mxu0 0.0
  %373 = vmatpush1.msra.mxu0 %v24
  %374 = vmatprep.subr.mxu0 0.0
  %375 = vmatpush1.msra.mxu0 %v25
  %376 = vmatprep.subr.mxu0 0.0
  %377 = vmatpush1.msra.mxu0 %v26
  %378 = vmatprep.subr.mxu0 0.0
  %379 = vmatpush1.msra.mxu0 %v27
  %380 = vmatprep.subr.mxu0 0.0
  %381 = vmatpush1.msra.mxu0 %v28
  %382 = vmatprep.subr.mxu0 0.0
  %383 = vmatpush1.msra.mxu0 %v29
  %384 = vmatprep.subr.mxu0 0.0
  %385 = vmatpush1.msra.mxu0 %v30
  %386 = vmatprep.subr.mxu0 0.0
  %387 = vmatpush1.msra.mxu0 %v31
  %388 = vmatprep.subr.mxu0 0.0
  %389 = vmatpush1.msra.mxu0 %v71
  %390 = vmatprep.subr.mxu0 0.0
  %391 = vmatpush1.msra.mxu0 0.0
  %392 = vmatprep.subr.mxu0 0.0
  %393 = vmatpush1.msra.mxu0 0.0
  %394 = vmatprep.subr.mxu0 0.0
  %395 = vmatpush1.msra.mxu0 0.0
  %396 = vmatprep.subr.mxu0 0.0
  %397 = vmatpush1.msra.mxu0 0.0
  %398 = vmatprep.subr.mxu0 0.0
  %399 = vmatpush1.msra.mxu0 0.0
  %400 = vmatprep.subr.mxu0 0.0
  %401 = vmatpush1.msra.mxu0 0.0
  %402 = vmatprep.subr.mxu0 0.0
  %403 = vmatpush1.msra.mxu0 0.0
  %404 = vmatprep.subr.mxu0 0.0
  %405 = vmatpush1.msra.mxu0 0.0
  %406 = vmatprep.subr.mxu0 0.0
  %407 = vmatpush1.msra.mxu0 0.0
  %408 = vmatprep.subr.mxu0 0.0
  %409 = vmatpush1.msra.mxu0 0.0
  %410 = vmatprep.subr.mxu0 0.0
  %411 = vmatpush1.msra.mxu0 0.0
  %412 = vmatprep.subr.mxu0 0.0
  %413 = vmatpush1.msra.mxu0 0.0
  %414 = vmatprep.subr.mxu0 0.0
  %415 = vmatpush1.msra.mxu0 0.0
  %416 = vmatprep.mubr.f32.mxu0 %v332
  %417 = vmatmul.mubr.f32.gmra.mrb[0].mxu0 %v317
  %v418 = vpop.f32.mrb[0].mxu0
  %v419 = vadd.f32 0.0, %v418
  %v420 = vpop.f32.mrb[0].mxu0
  %421 = vmatprep.mubr.f32.mxu0 %v335
  %422 = vmatmul.mubr.f32.gmra.mrb[0].mxu0 %v319
  %v423 = vpop.f32.mrb[0].mxu0
  %v424 = vadd.f32 0.0, %v423
  %v425 = vpop.f32.mrb[0].mxu0
  %426 = vmatprep.mubr.f32.mxu0 %v338
  %427 = vmatmul.mubr.f32.gmra.mrb[0].mxu0 %v321
  %v428 = vpop.f32.mrb[0].mxu0
  %v429 = vadd.f32 0.0, %v428
  %v430 = vpop.f32.mrb[0].mxu0
  %431 = vmatprep.mubr.f32.mxu0 %v341
  %432 = vmatmul.mubr.f32.gmra.mrb[0].mxu0 %v323
  %v433 = vpop.f32.mrb[0].mxu0
  %v434 = vadd.f32 0.0, %v433
  %v435 = vpop.f32.mrb[0].mxu0
  %436 = vmatprep.mubr.f32.mxu0 %v344
  %437 = vmatmul.mubr.f32.gmra.mrb[0].mxu0 %v325
  %v438 = vpop.f32.mrb[0].mxu0
  %v439 = vadd.f32 0.0, %v438
  %v440 = vpop.f32.mrb[0].mxu0
  %441 = vmatprep.mubr.f32.mxu0 %v347
  %442 = vmatmul.mubr.f32.gmra.mrb[0].mxu0 %v327
  %v443 = vpop.f32.mrb[0].mxu0
  %v444 = vadd.f32 0.0, %v443
  %v445 = vpop.f32.mrb[0].mxu0
  %446 = vmatprep.mubr.f32.mxu0 %v350
  %447 = vmatmul.mubr.f32.gmra.mrb[0].mxu0 %v329
  %v448 = vpop.f32.mrb[0].mxu0
  %v449 = vadd.f32 0.0, %v448
  %v450 = vpop.f32.mrb[0].mxu0
  %451 = vdwg.mxu0
  %s452 = scalar_lea.vmem %s0, 336
  %v453 = vld [vmem:[%s452] sm:$0xff]
  %v454 = vld [vmem:[%s452 + $0x8] sm:$0xff]
  %v455 = vld [vmem:[%s452 + $0x10] sm:$0xff]
  %v456 = vld [vmem:[%s452 + $0x18] sm:$0xff]
  %v457 = vld [vmem:[%s452 + $0x20] sm:$0xff]
  %v458 = vld [vmem:[%s452 + $0x28] sm:$0xff]
  %v459 = vld [vmem:[%s452 + $0x30] sm:$0xff]
  %v460 = vld [vmem:[%s452 + $0x38] sm:$0xff]
  %v461 = vld [vmem:[%s452 + $0x40] sm:$0xff]
  %v462 = vld [vmem:[%s452 + $0x48] sm:$0xff]
  %v463 = vld [vmem:[%s452 + $0x50] sm:$0xff]
  %v464 = vld [vmem:[%s452 + $0x58] sm:$0xff]
  %v465 = vld [vmem:[%s452 + $0x60] sm:$0x3]
  %v466 = vld [vmem:[%s452 + $0x68] sm:$0x3]
  %v468 = vsel %vm47, %v454, 0
  %v471 = vsel %vm47, %v456, 0
  %v474 = vsel %vm47, %v458, 0
  %v477 = vsel %vm47, %v460, 0
  %v480 = vsel %vm47, %v462, 0
  %v483 = vsel %vm47, %v464, 0
  %v486 = vsel %vm47, %v466, 0
  %488 = vmatprep.subr.mxu0 0.0
  %489 = vmatpush1.msra.mxu0 %v14
  %490 = vmatprep.subr.mxu0 0.0
  %491 = vmatpush1.msra.mxu0 %v15
  %492 = vmatprep.subr.mxu0 0.0
  %493 = vmatpush1.msra.mxu0 %v16
  %494 = vmatprep.subr.mxu0 0.0
  %495 = vmatpush1.msra.mxu0 %v17
  %496 = vmatprep.subr.mxu0 0.0
  %497 = vmatpush1.msra.mxu0 %v18
  %498 = vmatprep.subr.mxu0 0.0
  %499 = vmatpush1.msra.mxu0 %v19
  %500 = vmatprep.subr.mxu0 0.0
  %501 = vmatpush1.msra.mxu0 %v20
  %502 = vmatprep.subr.mxu0 0.0
  %503 = vmatpush1.msra.mxu0 %v21
  %504 = vmatprep.subr.mxu0 0.0
  %505 = vmatpush1.msra.mxu0 %v22
  %506 = vmatprep.subr.mxu0 0.0
  %507 = vmatpush1.msra.mxu0 %v23
  %508 = vmatprep.subr.mxu0 0.0
  %509 = vmatpush1.msra.mxu0 %v24
  %510 = vmatprep.subr.mxu0 0.0
  %511 = vmatpush1.msra.mxu0 %v25
  %512 = vmatprep.subr.mxu0 0.0
  %513 = vmatpush1.msra.mxu0 %v26
  %514 = vmatprep.subr.mxu0 0.0
  %515 = vmatpush1.msra.mxu0 %v27
  %516 = vmatprep.subr.mxu0 0.0
  %517 = vmatpush1.msra.mxu0 %v28
  %518 = vmatprep.subr.mxu0 0.0
  %519 = vmatpush1.msra.mxu0 %v29
  %520 = vmatprep.subr.mxu0 0.0
  %521 = vmatpush1.msra.mxu0 %v30
  %522 = vmatprep.subr.mxu0 0.0
  %523 = vmatpush1.msra.mxu0 %v31
  %524 = vmatprep.subr.mxu0 0.0
  %525 = vmatpush1.msra.mxu0 %v71
  %526 = vmatprep.subr.mxu0 0.0
  %527 = vmatpush1.msra.mxu0 0.0
  %528 = vmatprep.subr.mxu0 0.0
  %529 = vmatpush1.msra.mxu0 0.0
  %530 = vmatprep.subr.mxu0 0.0
  %531 = vmatpush1.msra.mxu0 0.0
  %532 = vmatprep.subr.mxu0 0.0
  %533 = vmatpush1.msra.mxu0 0.0
  %534 = vmatprep.subr.mxu0 0.0
  %535 = vmatpush1.msra.mxu0 0.0
  %536 = vmatprep.subr.mxu0 0.0
  %537 = vmatpush1.msra.mxu0 0.0
  %538 = vmatprep.subr.mxu0 0.0
  %539 = vmatpush1.msra.mxu0 0.0
  %540 = vmatprep.subr.mxu0 0.0
  %541 = vmatpush1.msra.mxu0 0.0
  %542 = vmatprep.subr.mxu0 0.0
  %543 = vmatpush1.msra.mxu0 0.0
  %544 = vmatprep.subr.mxu0 0.0
  %545 = vmatpush1.msra.mxu0 0.0
  %546 = vmatprep.subr.mxu0 0.0
  %547 = vmatpush1.msra.mxu0 0.0
  %548 = vmatprep.subr.mxu0 0.0
  %549 = vmatpush1.msra.mxu0 0.0
  %550 = vmatprep.subr.mxu0 0.0
  %551 = vmatpush1.msra.mxu0 0.0
  %552 = vmatprep.mubr.f32.mxu0 %v468
  %553 = vmatmul.mubr.f32.gmra.mrb[0].mxu0 %v453
  %v554 = vpop.f32.mrb[0].mxu0
  %v555 = vadd.f32 0.0, %v554
  %v556 = vpop.f32.mrb[0].mxu0
  %557 = vmatprep.mubr.f32.mxu0 %v471
  %558 = vmatmul.mubr.f32.gmra.mrb[0].mxu0 %v455
  %v559 = vpop.f32.mrb[0].mxu0
  %v560 = vadd.f32 0.0, %v559
  %v561 = vpop.f32.mrb[0].mxu0
  %562 = vmatprep.mubr.f32.mxu0 %v474
  %563 = vmatmul.mubr.f32.gmra.mrb[0].mxu0 %v457
  %v564 = vpop.f32.mrb[0].mxu0
  %v565 = vadd.f32 0.0, %v564
  %v566 = vpop.f32.mrb[0].mxu0
  %567 = vmatprep.mubr.f32.mxu0 %v477
  %568 = vmatmul.mubr.f32.gmra.mrb[0].mxu0 %v459
  %v569 = vpop.f32.mrb[0].mxu0
  %v570 = vadd.f32 0.0, %v569
  %v571 = vpop.f32.mrb[0].mxu0
  %572 = vmatprep.mubr.f32.mxu0 %v480
  %573 = vmatmul.mubr.f32.gmra.mrb[0].mxu0 %v461
  %v574 = vpop.f32.mrb[0].mxu0
  %v575 = vadd.f32 0.0, %v574
  %v576 = vpop.f32.mrb[0].mxu0
  %577 = vmatprep.mubr.f32.mxu0 %v483
  %578 = vmatmul.mubr.f32.gmra.mrb[0].mxu0 %v463
  %v579 = vpop.f32.mrb[0].mxu0
  %v580 = vadd.f32 0.0, %v579
  %v581 = vpop.f32.mrb[0].mxu0
  %582 = vmatprep.mubr.f32.mxu0 %v486
  %583 = vmatmul.mubr.f32.gmra.mrb[0].mxu0 %v465
  %v584 = vpop.f32.mrb[0].mxu0
  %v585 = vadd.f32 0.0, %v584
  %v586 = vpop.f32.mrb[0].mxu0
  %587 = vdwg.mxu0
  %v588 = vmax.f32 %v419, %v555
  %v589 = vmax.f32 %v424, %v560
  %v590 = vmax.f32 %v429, %v565
  %v591 = vmax.f32 %v434, %v570
  %v592 = vmax.f32 %v439, %v575
  %v593 = vmax.f32 %v444, %v580
  %v594 = vmax.f32 %v449, %v585
  %v595 = vmax.f32 %v309, %v588
  %v596 = vmax.f32 %v310, %v589
  %v597 = vmax.f32 %v311, %v590
  %v598 = vmax.f32 %v312, %v591
  %v599 = vmax.f32 %v313, %v592
  %v600 = vmax.f32 %v314, %v593
  %v601 = vmax.f32 %v315, %v594
  %v602 = vld [vmem:[%s2] sm:$0x1]
  %v604 = vlaneseq
  %v605 = vshrl.u32 %v604, 7
  %v606 = vsub.s32 0, %v605
  %v607 = vrot.slane %v602, %v606
  %v609 = vadd.f32 %v595, %v607
  %v610 = vadd.f32 %v596, %v607
  %v611 = vadd.f32 %v597, %v607
  %v612 = vadd.f32 %v598, %v607
  %v613 = vadd.f32 %v599, %v607
  %v614 = vadd.f32 %v600, %v607
  %v615 = vadd.f32 %v601, %v607
  %v616 = vmax.f32 %v609, 0.0
  %v617 = vmax.f32 %v610, 0.0
  %v618 = vmax.f32 %v611, 0.0
  %v619 = vmax.f32 %v612, 0.0
  %v620 = vmax.f32 %v613, 0.0
  %v621 = vmax.f32 %v614, 0.0
  %v622 = vmax.f32 %v615, 0.0
  %vm623 = vcmask 130048
  %624 = vst.msk [vmem:[%s3] sm:$0xff] %vm623, %v616
  %625 = vst.msk [vmem:[%s3 + $0x8] sm:$0xff] %vm623, %v617
  %626 = vst.msk [vmem:[%s3 + $0x10] sm:$0xff] %vm623, %v618
  %627 = vst.msk [vmem:[%s3 + $0x18] sm:$0xff] %vm623, %v619
  %628 = vst.msk [vmem:[%s3 + $0x20] sm:$0xff] %vm623, %v620
  %629 = vst.msk [vmem:[%s3 + $0x28] sm:$0xff] %vm623, %v621
  %vm630 = vcmask 123904
  %631 = vst.msk [vmem:[%s3 + $0x30] sm:$0x3] %vm630, %v622
  // Predicated region
  $region14: #{net_forward.4} parent=0 // pred_check
    _
  $region15: #{net_forward.4} parent=0 // pred_check_branch
    %633 = sbr.rel (0) target = $region17
  $region16: #{net_forward.4} parent=0 // pred_region
    _
  $region17: #{net_forward.4} parent=0 // pred_fallthru
    _
  // Predicated region
  $region18: #{net_forward.4} parent=0 // pred_check
    _
  $region19: #{net_forward.4} parent=0 // pred_check_branch
    %635 = sbr.rel (0) target = $region21
  $region20: #{net_forward.4} parent=0 // pred_region
    _
  $region21: #{net_forward.4} parent=0 // pred_fallthru
    _

// kernel: net_forward.5
$region0: #{net_forward.5}
  #allocation0 [shape = 'u32[]', space=smem, size = 0x4, offset = 0x4, fixed_abs, tag = 'smem constant byte address 0x4 - core index']
  #allocation1 [shape = 'u32[144,128]{1,0:T(1,128)}', space=vmem, size = 0x12000, scoped, tag = 'internal scratch']
  %s0 = inlined_call_operand.vmem [shape: f32[2,400], index: 0, kind: input, shape index: {}]
  %s1 = inlined_call_operand.vmem [shape: f32[400,120], index: 1, kind: input, shape index: {}]
  %s2 = inlined_call_operand.vmem [shape: f32[1,120], index: 2, kind: input, shape index: {}]
  %s3 = inlined_call_operand.vmem [shape: f32[120,84], index: 3, kind: input, shape index: {}]
  %s4 = inlined_call_operand.vmem [shape: f32[1,84], index: 4, kind: input, shape index: {}]
  %s5 = inlined_call_operand.vmem [shape: f32[84,10], index: 5, kind: input, shape index: {}]
  %s6 = inlined_call_operand.vmem [shape: f32[1,10], index: 6, kind: input, shape index: {}]
  %s7 = inlined_call_operand.hbm [shape: f32[2,10], index: 7, kind: output, shape index: {}]
  %s8 = sld [smem:[#allocation0]]
  $region38: #{net_forward.5} parent=0
    _
  %s10 = ssub.s32 1, %s8
  %s11 = scalar_select 0, %s10, %s8
  $region1: #{net_forward.5} parent=0
    #allocation2 [shape = 'u8[1024]{0}', space=vmem, size = 0x400, scoped, tag = 'output window, operand 0, single buffered']
    #allocation3 [shape = 's32[1]{0}', space=sflag, size = 0x4, scoped, tag = 'scoped memory for net_forward.5']
    %12 = vsyncpa [#allocation3], 0
    // Predicated region
    $region2: #{net_forward.5} parent=1 // pred_check
      _
    $region3: #{net_forward.5} parent=1 // pred_check_branch
      %14 = sbr.rel (0) target = $region5
    $region4: #{net_forward.5} parent=1 // pred_region
      _
    $region5: #{net_forward.5} parent=1 // pred_fallthru
      _
    // Predicated region
    $region6: #{net_forward.5} parent=1 // pred_check
      _
    $region7: #{net_forward.5} parent=1 // pred_check_branch
      %16 = sbr.rel (0) target = $region9
    $region8: #{net_forward.5} parent=1 // pred_region
      _
    $region9: #{net_forward.5} parent=1 // pred_fallthru
      _
    // Predicated region
    $region10: #{net_forward.5} parent=1 // pred_check
      _
    $region11: #{net_forward.5} parent=1 // pred_check_branch
      %18 = sbr.rel (0) target = $region13
    $region12: #{net_forward.5} parent=1 // pred_region
      _
    $region13: #{net_forward.5} parent=1 // pred_fallthru
      _
    // Predicated region
    $region14: #{net_forward.5} parent=1 // pred_check
      _
    $region15: #{net_forward.5} parent=1 // pred_check_branch
      %20 = sbr.rel (0) target = $region17
    $region16: #{net_forward.5} parent=1 // pred_region
      _
    $region17: #{net_forward.5} parent=1 // pred_fallthru
      _
    // Predicated region
    $region18: #{net_forward.5} parent=1 // pred_check
      _
    $region19: #{net_forward.5} parent=1 // pred_check_branch
      %22 = sbr.rel (0) target = $region21
    $region20: #{net_forward.5} parent=1 // pred_region
      _
    $region21: #{net_forward.5} parent=1 // pred_fallthru
      _
    // Predicated region
    $region22: #{net_forward.5} parent=1 // pred_check
      _
    $region23: #{net_forward.5} parent=1 // pred_check_branch
      %24 = sbr.rel (0) target = $region25
    $region24: #{net_forward.5} parent=1 // pred_region
      _
    $region25: #{net_forward.5} parent=1 // pred_fallthru
      _
    // Predicated region
    $region26: #{net_forward.5} parent=1 // pred_check
      _
    $region27: #{net_forward.5} parent=1 // pred_check_branch
      %26 = sbr.rel (0) target = $region29
    $region28: #{net_forward.5} parent=1 // pred_region
      _
    $region29: #{net_forward.5} parent=1 // pred_fallthru
      _
    %v27 = vld [vmem:[%s0] sm:$0xff]
    %v28 = vld [vmem:[%s1] sm:$0xff]
    %v29 = vld [vmem:[%s1 + $0x8] sm:$0xff]
    %v30 = vld [vmem:[%s1 + $0x10] sm:$0xff]
    %v31 = vld [vmem:[%s1 + $0x18] sm:$0xff]
    %v32 = vld [vmem:[%s1 + $0x20] sm:$0xff]
    %v33 = vld [vmem:[%s1 + $0x28] sm:$0xff]
    %v34 = vld [vmem:[%s1 + $0x30] sm:$0xff]
    %v35 = vld [vmem:[%s1 + $0x38] sm:$0xff]
    %v36 = vld [vmem:[%s1 + $0x40] sm:$0xff]
    %v37 = vld [vmem:[%s1 + $0x48] sm:$0xff]
    %v38 = vld [vmem:[%s1 + $0x50] sm:$0xff]
    %v39 = vld [vmem:[%s1 + $0x58] sm:$0xff]
    %v40 = vld [vmem:[%s1 + $0x60] sm:$0xff]
    %v41 = vld [vmem:[%s1 + $0x68] sm:$0xff]
    %v42 = vld [vmem:[%s1 + $0x70] sm:$0xff]
    %v43 = vld [vmem:[%s1 + $0x78] sm:$0xff]
    %v44 = vld [vmem:[%s1 + $0x80] sm:$0xff]
    %v45 = vld [vmem:[%s1 + $0x88] sm:$0xff]
    %v46 = vld [vmem:[%s1 + $0x90] sm:$0xff]
    %v47 = vld [vmem:[%s1 + $0x98] sm:$0xff]
    %v48 = vld [vmem:[%s1 + $0xa0] sm:$0xff]
    %v49 = vld [vmem:[%s1 + $0xa8] sm:$0xff]
    %v50 = vld [vmem:[%s1 + $0xb0] sm:$0xff]
    %v51 = vld [vmem:[%s1 + $0xb8] sm:$0xff]
    %v52 = vld [vmem:[%s1 + $0xc0] sm:$0xff]
    %v53 = vld [vmem:[%s1 + $0xc8] sm:$0xff]
    %v54 = vld [vmem:[%s1 + $0xd0] sm:$0xff]
    %v55 = vld [vmem:[%s1 + $0xd8] sm:$0xff]
    %v56 = vld [vmem:[%s1 + $0xe0] sm:$0xff]
    %v57 = vld [vmem:[%s1 + $0xe8] sm:$0xff]
    %v58 = vld [vmem:[%s1 + $0xf0] sm:$0xff]
    %v59 = vld [vmem:[%s1 + $0xf8] sm:$0xff]
    %v60 = vld [vmem:[%s1 + $0x100] sm:$0xff]
    %v61 = vld [vmem:[%s1 + $0x108] sm:$0xff]
    %v62 = vld [vmem:[%s1 + $0x110] sm:$0xff]
    %v63 = vld [vmem:[%s1 + $0x118] sm:$0xff]
    %v64 = vld [vmem:[%s1 + $0x120] sm:$0xff]
    %v65 = vld [vmem:[%s1 + $0x128] sm:$0xff]
    %v66 = vld [vmem:[%s1 + $0x130] sm:$0xff]
    %v67 = vld [vmem:[%s1 + $0x138] sm:$0xff]
    %v68 = vld [vmem:[%s1 + $0x140] sm:$0xff]
    %v69 = vld [vmem:[%s1 + $0x148] sm:$0xff]
    %v70 = vld [vmem:[%s1 + $0x150] sm:$0xff]
    %v71 = vld [vmem:[%s1 + $0x158] sm:$0xff]
    %v72 = vld [vmem:[%s1 + $0x160] sm:$0xff]
    %v73 = vld [vmem:[%s1 + $0x168] sm:$0xff]
    %v74 = vld [vmem:[%s1 + $0x170] sm:$0xff]
    %v75 = vld [vmem:[%s1 + $0x178] sm:$0xff]
    %v76 = vld [vmem:[%s1 + $0x180] sm:$0xff]
    %v77 = vld [vmem:[%s1 + $0x188] sm:$0xff]
    %v78 = vld [vmem:[%s2] sm:$0x1]
    %v80 = vlaneseq
    %v81 = vshrl.u32 %v80, 7
    %v82 = vsub.s32 0, %v81
    %v83 = vrot.slane %v78, %v82
    %v86 = vcombine.high %v27, %v27
    %v88 = vunpack.c.l.s4 1983009808
    %v89 = vunpack.c.0.s8 %v88
    %v90 = vlaneseq
    %v91 = vshrl.u32 %v90, 7
    %v92 = vsub.s32 %v89, %v91
    %v93 = vrot.slane %v27, %v92
    %v95 = vunpack.c.l.s4 1983009808
    %v96 = vunpack.c.0.s8 %v95
    %v97 = vlaneseq
    %v98 = vshrl.u32 %v97, 7
    %v99 = vsub.s32 %v96, %v98
    %v100 = vrot.slane %v86, %v99
    %v101 = vcombine.high %v93, %v93
    %v102 = vcombine.high %v100, %v100
    %vm106 = vcmask 130048
    %v107 = vsel %vm106, %v102, 0
    %109 = vmatprep.subr.mxu0 0.0
    %110 = vmatpush1.msra.mxu0 %v28
    %111 = vmatprep.subr.mxu0 0.0
    %112 = vmatpush1.msra.mxu0 %v29
    %113 = vmatprep.subr.mxu0 0.0
    %114 = vmatpush1.msra.mxu0 %v30
    %115 = vmatprep.subr.mxu0 0.0
    %116 = vmatpush1.msra.mxu0 %v31
    %117 = vmatprep.subr.mxu0 0.0
    %118 = vmatpush1.msra.mxu0 %v32
    %119 = vmatprep.subr.mxu0 0.0
    %120 = vmatpush1.msra.mxu0 %v33
    %121 = vmatprep.subr.mxu0 0.0
    %122 = vmatpush1.msra.mxu0 %v34
    %123 = vmatprep.subr.mxu0 0.0
    %124 = vmatpush1.msra.mxu0 %v35
    %125 = vmatprep.subr.mxu0 0.0
    %126 = vmatpush1.msra.mxu0 %v36
    %127 = vmatprep.subr.mxu0 0.0
    %128 = vmatpush1.msra.mxu0 %v37
    %129 = vmatprep.subr.mxu0 0.0
    %130 = vmatpush1.msra.mxu0 %v38
    %131 = vmatprep.subr.mxu0 0.0
    %132 = vmatpush1.msra.mxu0 %v39
    %133 = vmatprep.subr.mxu0 0.0
    %134 = vmatpush1.msra.mxu0 %v40
    %135 = vmatprep.subr.mxu0 0.0
    %136 = vmatpush1.msra.mxu0 %v41
    %137 = vmatprep.subr.mxu0 0.0
    %138 = vmatpush1.msra.mxu0 %v42
    %139 = vmatprep.subr.mxu0 0.0
    %140 = vmatpush1.msra.mxu0 %v43
    %141 = vmatprep.subr.mxu0 0.0
    %142 = vmatpush1.msra.mxu0 %v44
    %143 = vmatprep.subr.mxu0 0.0
    %144 = vmatpush1.msra.mxu0 %v45
    %145 = vmatprep.subr.mxu0 0.0
    %146 = vmatpush1.msra.mxu0 %v46
    %147 = vmatprep.subr.mxu0 0.0
    %148 = vmatpush1.msra.mxu0 %v47
    %149 = vmatprep.subr.mxu0 0.0
    %150 = vmatpush1.msra.mxu0 %v48
    %151 = vmatprep.subr.mxu0 0.0
    %152 = vmatpush1.msra.mxu0 %v49
    %153 = vmatprep.subr.mxu0 0.0
    %154 = vmatpush1.msra.mxu0 %v50
    %155 = vmatprep.subr.mxu0 0.0
    %156 = vmatpush1.msra.mxu0 %v51
    %157 = vmatprep.subr.mxu0 0.0
    %158 = vmatpush1.msra.mxu0 %v52
    %159 = vmatprep.subr.mxu0 0.0
    %160 = vmatpush1.msra.mxu0 %v53
    %161 = vmatprep.subr.mxu0 0.0
    %162 = vmatpush1.msra.mxu0 %v54
    %163 = vmatprep.subr.mxu0 0.0
    %164 = vmatpush1.msra.mxu0 %v55
    %165 = vmatprep.subr.mxu0 0.0
    %166 = vmatpush1.msra.mxu0 %v56
    %167 = vmatprep.subr.mxu0 0.0
    %168 = vmatpush1.msra.mxu0 %v57
    %169 = vmatprep.subr.mxu0 0.0
    %170 = vmatpush1.msra.mxu0 %v58
    %171 = vmatprep.subr.mxu0 0.0
    %172 = vmatpush1.msra.mxu0 %v59
    %173 = vmatprep.mubr.f32.mxu0 %v101
    %174 = vmatmul.mubr.f32.gmra.mrb[0].mxu0 %v93
    %v175 = vpop.f32.mrb[0].mxu0
    %v176 = vadd.f32 %v83, %v175
    %v177 = vpop.f32.mrb[0].mxu0
    %178 = vdwg.mxu0
    %179 = vmatprep.subr.mxu0 0.0
    %180 = vmatpush1.msra.mxu0 %v60
    %181 = vmatprep.subr.mxu0 0.0
    %182 = vmatpush1.msra.mxu0 %v61
    %183 = vmatprep.subr.mxu0 0.0
    %184 = vmatpush1.msra.mxu0 %v62
    %185 = vmatprep.subr.mxu0 0.0
    %186 = vmatpush1.msra.mxu0 %v63
    %187 = vmatprep.subr.mxu0 0.0
    %188 = vmatpush1.msra.mxu0 %v64
    %189 = vmatprep.subr.mxu0 0.0
    %190 = vmatpush1.msra.mxu0 %v65
    %191 = vmatprep.subr.mxu0 0.0
    %192 = vmatpush1.msra.mxu0 %v66
    %193 = vmatprep.subr.mxu0 0.0
    %194 = vmatpush1.msra.mxu0 %v67
    %195 = vmatprep.subr.mxu0 0.0
    %196 = vmatpush1.msra.mxu0 %v68
    %197 = vmatprep.subr.mxu0 0.0
    %198 = vmatpush1.msra.mxu0 %v69
    %199 = vmatprep.subr.mxu0 0.0
    %200 = vmatpush1.msra.mxu0 %v70
    %201 = vmatprep.subr.mxu0 0.0
    %202 = vmatpush1.msra.mxu0 %v71
    %203 = vmatprep.subr.mxu0 0.0
    %204 = vmatpush1.msra.mxu0 %v72
    %205 = vmatprep.subr.mxu0 0.0
    %206 = vmatpush1.msra.mxu0 %v73
    %207 = vmatprep.subr.mxu0 0.0
    %208 = vmatpush1.msra.mxu0 %v74
    %209 = vmatprep.subr.mxu0 0.0
    %210 = vmatpush1.msra.mxu0 %v75
    %211 = vmatprep.subr.mxu0 0.0
    %212 = vmatpush1.msra.mxu0 %v76
    %213 = vmatprep.subr.mxu0 0.0
    %214 = vmatpush1.msra.mxu0 %v77
    %215 = vmatprep.subr.mxu0 0.0
    %216 = vmatpush1.msra.mxu0 0.0
    %217 = vmatprep.subr.mxu0 0.0
    %218 = vmatpush1.msra.mxu0 0.0
    %219 = vmatprep.subr.mxu0 0.0
    %220 = vmatpush1.msra.mxu0 0.0
    %221 = vmatprep.subr.mxu0 0.0
    %222 = vmatpush1.msra.mxu0 0.0
    %223 = vmatprep.subr.mxu0 0.0
    %224 = vmatpush1.msra.mxu0 0.0
    %225 = vmatprep.subr.mxu0 0.0
    %226 = vmatpush1.msra.mxu0 0.0
    %227 = vmatprep.subr.mxu0 0.0
    %228 = vmatpush1.msra.mxu0 0.0
    %229 = vmatprep.subr.mxu0 0.0
    %230 = vmatpush1.msra.mxu0 0.0
    %231 = vmatprep.subr.mxu0 0.0
    %232 = vmatpush1.msra.mxu0 0.0
    %233 = vmatprep.subr.mxu0 0.0
    %234 = vmatpush1.msra.mxu0 0.0
    %235 = vmatprep.subr.mxu0 0.0
    %236 = vmatpush1.msra.mxu0 0.0
    %237 = vmatprep.subr.mxu0 0.0
    %238 = vmatpush1.msra.mxu0 0.0
    %239 = vmatprep.subr.mxu0 0.0
    %240 = vmatpush1.msra.mxu0 0.0
    %241 = vmatprep.subr.mxu0 0.0
    %242 = vmatpush1.msra.mxu0 0.0
    %243 = vmatprep.mubr.f32.mxu0 %v107
    %244 = vmatmul.mubr.f32.gmra.mrb[0].mxu0 %v100
    %v245 = vpop.f32.mrb[0].mxu0
    %v246 = vadd.f32 %v176, %v245
    %v247 = vpop.f32.mrb[0].mxu0
    %248 = vdwg.mxu0
    %v249 = vmax.f32 %v246, 0.0
    %v250 = vld [vmem:[%s3] sm:$0xff]
    %v251 = vld [vmem:[%s3 + $0x8] sm:$0xff]
    %v252 = vld [vmem:[%s3 + $0x10] sm:$0xff]
    %v253 = vld [vmem:[%s3 + $0x18] sm:$0xff]
    %v254 = vld [vmem:[%s3 + $0x20] sm:$0xff]
    %v255 = vld [vmem:[%s3 + $0x28] sm:$0xff]
    %v256 = vld [vmem:[%s3 + $0x30] sm:$0xff]
    %v257 = vld [vmem:[%s3 + $0x38] sm:$0xff]
    %v258 = vld [vmem:[%s3 + $0x40] sm:$0xff]
    %v259 = vld [vmem:[%s3 + $0x48] sm:$0xff]
    %v260 = vld [vmem:[%s3 + $0x50] sm:$0xff]
    %v261 = vld [vmem:[%s3 + $0x58] sm:$0xff]
    %v262 = vld [vmem:[%s3 + $0x60] sm:$0xff]
    %v263 = vld [vmem:[%s3 + $0x68] sm:$0xff]
    %v264 = vld [vmem:[%s3 + $0x70] sm:$0xff]
    %v265 = vld [vmem:[%s4] sm:$0x1]
    %v267 = vlaneseq
    %v268 = vshrl.u32 %v267, 7
    %v269 = vsub.s32 0, %v268
    %v270 = vrot.slane %v265, %v269
    %vm272 = vcmask 982016
    %v274 = vsel %vm272, %v249, 0
    %276 = vmatprep.subr.mxu0 0.0
    %277 = vmatpush1.msra.mxu0 %v250
    %278 = vmatprep.subr.mxu0 0.0
    %279 = vmatpush1.msra.mxu0 %v251
    %280 = vmatprep.subr.mxu0 0.0
    %281 = vmatpush1.msra.mxu0 %v252
    %282 = vmatprep.subr.mxu0 0.0
    %283 = vmatpush1.msra.mxu0 %v253
    %284 = vmatprep.subr.mxu0 0.0
    %285 = vmatpush1.msra.mxu0 %v254
    %286 = vmatprep.subr.mxu0 0.0
    %287 = vmatpush1.msra.mxu0 %v255
    %288 = vmatprep.subr.mxu0 0.0
    %289 = vmatpush1.msra.mxu0 %v256
    %290 = vmatprep.subr.mxu0 0.0
    %291 = vmatpush1.msra.mxu0 %v257
    %292 = vmatprep.subr.mxu0 0.0
    %293 = vmatpush1.msra.mxu0 %v258
    %294 = vmatprep.subr.mxu0 0.0
    %295 = vmatpush1.msra.mxu0 %v259
    %296 = vmatprep.subr.mxu0 0.0
    %297 = vmatpush1.msra.mxu0 %v260
    %298 = vmatprep.subr.mxu0 0.0
    %299 = vmatpush1.msra.mxu0 %v261
    %300 = vmatprep.subr.mxu0 0.0
    %301 = vmatpush1.msra.mxu0 %v262
    %302 = vmatprep.subr.mxu0 0.0
    %303 = vmatpush1.msra.mxu0 %v263
    %304 = vmatprep.subr.mxu0 0.0
    %305 = vmatpush1.msra.mxu0 %v264
    %306 = vmatprep.subr.mxu0 0.0
    %307 = vmatpush1.msra.mxu0 0.0
    %308 = vmatprep.subr.mxu0 0.0
    %309 = vmatpush1.msra.mxu0 0.0
    %310 = vmatprep.subr.mxu0 0.0
    %311 = vmatpush1.msra.mxu0 0.0
    %312 = vmatprep.subr.mxu0 0.0
    %313 = vmatpush1.msra.mxu0 0.0
    %314 = vmatprep.subr.mxu0 0.0
    %315 = vmatpush1.msra.mxu0 0.0
    %316 = vmatprep.subr.mxu0 0.0
    %317 = vmatpush1.msra.mxu0 0.0
    %318 = vmatprep.subr.mxu0 0.0
    %319 = vmatpush1.msra.mxu0 0.0
    %320 = vmatprep.subr.mxu0 0.0
    %321 = vmatpush1.msra.mxu0 0.0
    %322 = vmatprep.subr.mxu0 0.0
    %323 = vmatpush1.msra.mxu0 0.0
    %324 = vmatprep.subr.mxu0 0.0
    %325 = vmatpush1.msra.mxu0 0.0
    %326 = vmatprep.subr.mxu0 0.0
    %327 = vmatpush1.msra.mxu0 0.0
    %328 = vmatprep.subr.mxu0 0.0
    %329 = vmatpush1.msra.mxu0 0.0
    %330 = vmatprep.subr.mxu0 0.0
    %331 = vmatpush1.msra.mxu0 0.0
    %332 = vmatprep.subr.mxu0 0.0
    %333 = vmatpush1.msra.mxu0 0.0
    %334 = vmatprep.subr.mxu0 0.0
    %335 = vmatpush1.msra.mxu0 0.0
    %336 = vmatprep.subr.mxu0 0.0
    %337 = vmatpush1.msra.mxu0 0.0
    %338 = vmatprep.subr.mxu0 0.0
    %339 = vmatpush1.msra.mxu0 0.0
    %340 = vmatprep.mubr.f32.mxu0 0.0
    %341 = vmatmul.mubr.f32.gmra.mrb[0].mxu0 %v274
    %v342 = vpop.f32.mrb[0].mxu0
    %v343 = vadd.f32 %v270, %v342
    %v344 = vpop.f32.mrb[0].mxu0
    %345 = vdwg.mxu0
    %v346 = vmax.f32 %v343, 0.0
    %v347 = vld [vmem:[%s5] sm:$0xff]
    %v348 = vld [vmem:[%s5 + $0x8] sm:$0xff]
    %v349 = vld [vmem:[%s5 + $0x10] sm:$0xff]
    %v350 = vld [vmem:[%s5 + $0x18] sm:$0xff]
    %v351 = vld [vmem:[%s5 + $0x20] sm:$0xff]
    %v352 = vld [vmem:[%s5 + $0x28] sm:$0xff]
    %v353 = vld [vmem:[%s5 + $0x30] sm:$0xff]
    %v354 = vld [vmem:[%s5 + $0x38] sm:$0xff]
    %v355 = vld [vmem:[%s5 + $0x40] sm:$0xff]
    %v356 = vld [vmem:[%s5 + $0x48] sm:$0xff]
    %v357 = vld [vmem:[%s5 + $0x50] sm:$0xf]
    %v358 = vld [vmem:[%s6] sm:$0x1]
    %v360 = vlaneseq
    %v361 = vshrl.u32 %v360, 7
    %v362 = vsub.s32 0, %v361
    %v363 = vrot.slane %v358, %v362
    %vm365 = vcmask 687104
    %v367 = vsel %vm365, %v346, 0
    %vm369 = vcmask 1043456
    %v371 = vsel %vm369, %v357, 0
    %373 = vmatprep.subr.mxu0 0.0
    %374 = vmatpush1.msra.mxu0 %v347
    %375 = vmatprep.subr.mxu0 0.0
    %376 = vmatpush1.msra.mxu0 %v348
    %377 = vmatprep.subr.mxu0 0.0
    %378 = vmatpush1.msra.mxu0 %v349
    %379 = vmatprep.subr.mxu0 0.0
    %380 = vmatpush1.msra.mxu0 %v350
    %381 = vmatprep.subr.mxu0 0.0
    %382 = vmatpush1.msra.mxu0 %v351
    %383 = vmatprep.subr.mxu0 0.0
    %384 = vmatpush1.msra.mxu0 %v352
    %385 = vmatprep.subr.mxu0 0.0
    %386 = vmatpush1.msra.mxu0 %v353
    %387 = vmatprep.subr.mxu0 0.0
    %388 = vmatpush1.msra.mxu0 %v354
    %389 = vmatprep.subr.mxu0 0.0
    %390 = vmatpush1.msra.mxu0 %v355
    %391 = vmatprep.subr.mxu0 0.0
    %392 = vmatpush1.msra.mxu0 %v356
    %393 = vmatprep.subr.mxu0 0.0
    %394 = vmatpush1.msra.mxu0 %v371
    %395 = vmatprep.subr.mxu0 0.0
    %396 = vmatpush1.msra.mxu0 0.0
    %397 = vmatprep.subr.mxu0 0.0
    %398 = vmatpush1.msra.mxu0 0.0
    %399 = vmatprep.subr.mxu0 0.0
    %400 = vmatpush1.msra.mxu0 0.0
    %401 = vmatprep.subr.mxu0 0.0
    %402 = vmatpush1.msra.mxu0 0.0
    %403 = vmatprep.subr.mxu0 0.0
    %404 = vmatpush1.msra.mxu0 0.0
    %405 = vmatprep.subr.mxu0 0.0
    %406 = vmatpush1.msra.mxu0 0.0
    %407 = vmatprep.subr.mxu0 0.0
    %408 = vmatpush1.msra.mxu0 0.0
    %409 = vmatprep.subr.mxu0 0.0
    %410 = vmatpush1.msra.mxu0 0.0
    %411 = vmatprep.subr.mxu0 0.0
    %412 = vmatpush1.msra.mxu0 0.0
    %413 = vmatprep.subr.mxu0 0.0
    %414 = vmatpush1.msra.mxu0 0.0
    %415 = vmatprep.subr.mxu0 0.0
    %416 = vmatpush1.msra.mxu0 0.0
    %417 = vmatprep.subr.mxu0 0.0
    %418 = vmatpush1.msra.mxu0 0.0
    %419 = vmatprep.subr.mxu0 0.0
    %420 = vmatpush1.msra.mxu0 0.0
    %421 = vmatprep.subr.mxu0 0.0
    %422 = vmatpush1.msra.mxu0 0.0
    %423 = vmatprep.subr.mxu0 0.0
    %424 = vmatpush1.msra.mxu0 0.0
    %425 = vmatprep.subr.mxu0 0.0
    %426 = vmatpush1.msra.mxu0 0.0
    %427 = vmatprep.subr.mxu0 0.0
    %428 = vmatpush1.msra.mxu0 0.0
    %429 = vmatprep.subr.mxu0 0.0
    %430 = vmatpush1.msra.mxu0 0.0
    %431 = vmatprep.subr.mxu0 0.0
    %432 = vmatpush1.msra.mxu0 0.0
    %433 = vmatprep.subr.mxu0 0.0
    %434 = vmatpush1.msra.mxu0 0.0
    %435 = vmatprep.subr.mxu0 0.0
    %436 = vmatpush1.msra.mxu0 0.0
    %437 = vmatprep.mubr.f32.mxu0 0.0
    %438 = vmatmul.mubr.f32.gmra.mrb[0].mxu0 %v367
    %v439 = vpop.f32.mrb[0].mxu0
    %v440 = vadd.f32 %v363, %v439
    %v441 = vpop.f32.mrb[0].mxu0
    %442 = vdwg.mxu0
    %vm443 = vcmask 74752
    %v444 = vsel %vm443, %v440, -inf
    %445 = vmax.xlane.f32.xlu0 %v444
    %v446 = vpop.xlane.xlu0 %445
    %v447 = vsub.f32 %v440, %v446
    %v448 = vmul.f32 %v447, 1.442695
    %v449 = vpow.pop %v448
    %v450 = vsel %vm443, %v449, 0.0
    %451 = vadd.xlane.f32.xlu0 %v450
    %v452 = vpop.xlane.xlu0 %451
    %v453 = vrcp.pop %v452
    %v454 = vmul.f32 %v449, %v453
    %455 = vst.msk [vmem:[#allocation2] sm:$0x3] %vm443, %v454
    // Predicated region
    $region30: #{net_forward.5} parent=1 // pred_check
      _
    $region31: #{net_forward.5} parent=1 // pred_check_branch
      %457 = sbr.rel (0) target = $region33
    $region32: #{net_forward.5} parent=1 // pred_region
      %s459 = ssub.s32 32, 32
      %460 = vsyncadd [#allocation3], %s459
      %s462 = sshll.u32 [#allocation2], 4
      %s463 = int_to_ptr.vmem [resolvable:$true] %s462
      %465 = dma.vmem_to_hbm [thread:$0]  %s463, 32, %s7, [#allocation3]
    $region33: #{net_forward.5} parent=1 // pred_fallthru
      _
    // Predicated region
    $region34: #{net_forward.5} parent=1 // pred_check
      _
    $region35: #{net_forward.5} parent=1 // pred_check_branch
      %467 = sbr.rel (0) target = $region37
    $region36: #{net_forward.5} parent=1 // pred_region
      %468 = dma.done [#allocation3], 32
    $region37: #{net_forward.5} parent=1 // pred_fallthru
      _
    %469 = vsyncpa [#allocation3], 1

</llo_original>
